<compile_context>
chip_gen: v7x
topology: tpu7x:2x2x1
jax: 0.10.0
libtpu: 0.0.40
codegen_flags: <defaults>
</compile_context>

<pallas_src>
import functools

import jax
import jax.numpy as jnp
from jax.experimental import pallas as pl
from jax.experimental.pallas import tpu as pltpu


def decoder_kernel(enc_ref, yh_ref, se_ref, sg_ref, sd_ref, out_ref,
                   *, T, E, D, F):
    enc = enc_ref[...]                       # (Bb, T, E)
    yh = yh_ref[...]                         # (Bb, T, 1)   (F == 1)
    Bb = enc.shape[0]

    # ---- static views into the 3 packed weight slabs (one DMA each) ----
    w1_hc = se_ref[0:2 * D, :]               # (2D, E)  attn weight for hidden||cell
    w1e = se_ref[2 * D:2 * D + E, :]         # (E, E)   attn weight for encoder part
    r = 2 * D + E
    b1 = se_ref[r + 0:r + 1, :]              # (1, E)
    w2 = se_ref[r + 1:r + 2, :]              # (1, E)   second attn Linear (score)
    wfc_c = se_ref[r + 2:r + 3, :]           # (1, E)   fc weight, context part
    wfin_c = se_ref[r + 3:r + 4, :]          # (1, E)   fc_final weight, context part

    whh = sg_ref[0:D, :]                     # (D, 4D)  hidden->gates, i|f|g|o fused
    wih = sg_ref[D:D + 1, :]                 # (1, 4D)  input->gates (F == 1)
    blstm = sg_ref[D + 1:D + 2, :]           # (1, 4D)  b_ih + b_hh

    wfin_h = sd_ref[0:1, :]                  # (1, D)   fc_final weight, hidden part
    wfc_y = sd_ref[1:2, 0:1]                 # (1, 1)   fc weight, y_history part
    bfc = sd_ref[2:3, 0:1]                   # (1, 1)
    bfin = sd_ref[3:4, 0:1]                  # (1, 1)

    # ---- loop-invariant encoder term of the attention pre-activation ----
    enc_term = (jnp.dot(enc.reshape(Bb * T, E), w1e,
                        preferred_element_type=jnp.float32)
                .reshape(Bb, T, E) + b1)     # (Bb, T, E)

    hidden = jnp.zeros((Bb, D), jnp.float32)
    cell = jnp.zeros((Bb, D), jnp.float32)
    context = jnp.zeros((Bb, E), jnp.float32)

    # T is static -> fully unrolled recurrence (static y_history slices,
    # cross-iteration scheduling visibility; no spills at this residency).
    for t in range(T):
        # --- temporal attention over encoder steps ---
        hc_cat = jnp.concatenate([hidden, cell], axis=1)        # (Bb, 2D) lane concat
        hc_term = jnp.dot(hc_cat, w1_hc,
                          preferred_element_type=jnp.float32)   # (Bb, E)   1 MXU op
        # hidden -> gate contribution issued early: single fused (D,4D) dot that
        # only depends on `hidden`, so it overlaps the VPU/EUP/XLU softmax chain.
        h_gate = jnp.dot(hidden, whh,
                         preferred_element_type=jnp.float32)    # (Bb, 4D)  1 MXU op

        pre = jnp.tanh(enc_term + hc_term[:, None, :])          # (Bb, T, E)
        scores = jnp.sum(pre * w2, axis=2, keepdims=True)       # (Bb, T, 1)
        # b2 would shift every logit equally -> softmax no-op (dropped host-side).
        scores = scores - jnp.max(scores, axis=1, keepdims=True)
        ex = jnp.exp(scores)
        inv_den = pl.reciprocal(jnp.sum(ex, axis=1, keepdims=True), approx=True)
        attn = ex * inv_den                                     # (Bb, T, 1)

        # context = bmm(attn, enc)
        context = jnp.sum(attn * enc, axis=1)                   # (Bb, E)

        # y_tilde = fc(cat(context, y_history[:, t]))  -- F == 1 degenerate path:
        # lane reduction + VPU broadcast, no MXU round-trip.
        y_t = yh[:, t, :]                                       # (Bb, 1)
        y_tilde = (jnp.sum(context * wfc_c, axis=1, keepdims=True)
                   + y_t * wfc_y + bfc)                         # (Bb, 1)

        # --- single LSTM cell step, all four gates in one lane-dense vector ---
        gates = y_tilde * wih + h_gate + blstm                  # (Bb, 4D)
        i_g = jax.nn.sigmoid(gates[:, 0 * D:1 * D])
        f_g = jax.nn.sigmoid(gates[:, 1 * D:2 * D])
        g_g = jnp.tanh(gates[:, 2 * D:3 * D])
        o_g = jax.nn.sigmoid(gates[:, 3 * D:4 * D])
        cell = f_g * cell + i_g * g_g
        hidden = o_g * jnp.tanh(cell)

    # fc_final(cat(hidden[0], context))
    # TODO(synk): `opt.bin` / `opt.device` are undefined globals in the source
    # module; implementing the opt.bin == False branch (no final sigmoid).
    out = (jnp.sum(hidden * wfin_h, axis=1, keepdims=True)
           + jnp.sum(context * wfin_c, axis=1, keepdims=True)
           + bfin)                                              # (Bb, 1)
    out_ref[...] = out.reshape(Bb, 1, F)


def init_params(key, E, D, F):
    ks = jax.random.split(key, 12)
    s = 0.1
    return {
        "W1": jax.random.normal(ks[0], (E, 2 * D + E), jnp.float32) * s,
        "b1": jax.random.normal(ks[1], (E,), jnp.float32) * s,
        "W2": jax.random.normal(ks[2], (1, E), jnp.float32) * s,
        "b2": jax.random.normal(ks[3], (1,), jnp.float32) * s,
        "W_ih": jax.random.normal(ks[4], (4 * D, F), jnp.float32) * s,
        "W_hh": jax.random.normal(ks[5], (4 * D, D), jnp.float32) * s,
        "b_ih": jax.random.normal(ks[6], (4 * D,), jnp.float32) * s,
        "b_hh": jax.random.normal(ks[7], (4 * D,), jnp.float32) * s,
        # fc.weight.data.normal_() in the original module -> std-normal init
        "W_fc": jax.random.normal(ks[8], (F, E + F), jnp.float32),
        "b_fc": jax.random.normal(ks[9], (F,), jnp.float32) * s,
        "W_fin": jax.random.normal(ks[10], (F, D + E), jnp.float32) * s,
        "b_fin": jax.random.normal(ks[11], (F,), jnp.float32) * s,
    }


def pack_params(p, E, D, F):
    """Pack all weights/biases into 3 contiguous f32 slabs (3 DMAs total)."""
    assert F == 1
    # slab_e: width E  -> [w1_hc (2D,E); w1e (E,E); b1; w2; wfc_c; wfin_c]
    W1 = p["W1"]
    w1_hc = jnp.transpose(W1[:, :2 * D])                       # (2D, E)
    w1e = jnp.transpose(W1[:, 2 * D:])                         # (E, E)
    b1 = p["b1"].reshape(1, E)
    w2 = p["W2"].reshape(1, E)
    wfc_c = p["W_fc"][:, :E].reshape(1, E)
    wfin_c = p["W_fin"][:, D:].reshape(1, E)
    slab_e = jnp.concatenate([w1_hc, w1e, b1, w2, wfc_c, wfin_c], axis=0)

    # slab_g: width 4D -> [W_hh^T (D,4D); W_ih row (1,4D); b_ih+b_hh (1,4D)]
    whh = jnp.transpose(p["W_hh"])                             # (D, 4D), i|f|g|o
    wih = p["W_ih"].reshape(1, 4 * D)                          # (1, 4D)  (F == 1)
    blstm = (p["b_ih"] + p["b_hh"]).reshape(1, 4 * D)          # (1, 4D)
    slab_g = jnp.concatenate([whh, wih, blstm], axis=0)

    # slab_d: width D  -> [wfin_h; wfc_y; bfc; bfin] (scalars at lane 0)
    def srow(x):
        return jnp.zeros((1, D), jnp.float32).at[0, 0].set(x)
    wfin_h = p["W_fin"][:, :D].reshape(1, D)
    slab_d = jnp.concatenate(
        [wfin_h, srow(p["W_fc"][0, E]), srow(p["b_fc"][0]), srow(p["b_fin"][0])],
        axis=0)
    # p["b2"] is a softmax-invariant constant -> intentionally not passed.
    return slab_e, slab_g, slab_d


def decoder_forward(enc, yhist, p, *, num_shards=1):
    B, T, E = enc.shape
    F = yhist.shape[2]
    D = p["W_hh"].shape[1]
    if F != 1:
        # TODO(synk): out_feats > 1 path not packed into slabs (module default is 1).
        raise NotImplementedError("packed kernel implemented for out_feats == 1")
    assert B % num_shards == 0
    Bb = B // num_shards   # num_shards=2 shards the batch across v7x's two TCs

    slab_e, slab_g, slab_d = pack_params(p, E, D, F)

    kernel = functools.partial(decoder_kernel, T=T, E=E, D=D, F=F)

    def wspec(a):
        return pl.BlockSpec(a.shape, lambda g: (0, 0))

    out = pl.pallas_call(
        kernel,
        grid=(num_shards,),
        out_shape=jax.ShapeDtypeStruct((B, 1, F), jnp.float32),
        in_specs=[pl.BlockSpec((Bb, T, E), lambda g: (g, 0, 0)),
                  pl.BlockSpec((Bb, T, F), lambda g: (g, 0, 0)),
                  wspec(slab_e), wspec(slab_g), wspec(slab_d)],
        out_specs=pl.BlockSpec((Bb, 1, F), lambda g: (g, 0, 0)),
        compiler_params=pltpu.CompilerParams(
            dimension_semantics=("parallel",)),
    )(enc, yhist, slab_e, slab_g, slab_d)
    return out.reshape(B, F)


def decoder_reference(enc, yhist, p):
    """Pure-JAX mirror of the PyTorch forward (opt.bin == False branch)."""
    B, T, E = enc.shape
    D = p["W_hh"].shape[1]
    hidden = jnp.zeros((B, D), jnp.float32)
    cell = jnp.zeros((B, D), jnp.float32)
    context = jnp.zeros((B, E), jnp.float32)
    for t in range(T):
        hrep = jnp.broadcast_to(hidden[:, None, :], (B, T, D))
        crep = jnp.broadcast_to(cell[:, None, :], (B, T, D))
        x = jnp.concatenate([hrep, crep, enc], axis=2).reshape(B * T, -1)
        z = jnp.tanh(x @ p["W1"].T + p["b1"])
        s = (z @ p["W2"].T + p["b2"]).reshape(B, T)
        a = jax.nn.softmax(s, axis=1)
        context = jnp.einsum("bt,bte->be", a, enc)
        y_tilde = (jnp.concatenate([context, yhist[:, t, :]], axis=1)
                   @ p["W_fc"].T + p["b_fc"])
        gates = (y_tilde @ p["W_ih"].T + p["b_ih"]
                 + hidden @ p["W_hh"].T + p["b_hh"])
        i = jax.nn.sigmoid(gates[:, :D])
        f = jax.nn.sigmoid(gates[:, D:2 * D])
        g = jnp.tanh(gates[:, 2 * D:3 * D])
        o = jax.nn.sigmoid(gates[:, 3 * D:4 * D])
        cell = f * cell + i * g
        hidden = o * jnp.tanh(cell)
    return jnp.concatenate([hidden, context], axis=1) @ p["W_fin"].T + p["b_fin"]


if __name__ == "__main__":
    B, T, E, D, F = 2, 8, 32, 32, 1   # batch, T, encoder_hidden, decoder_hidden, out_feats
    key = jax.random.PRNGKey(0)
    k_enc, k_y, k_p = jax.random.split(key, 3)
    input_encoded = jax.random.normal(k_enc, (B, T, E), jnp.float32)
    y_history = jax.random.normal(k_y, (B, T, F), jnp.float32)
    params = init_params(k_p, E, D, F)

    out = decoder_forward(input_encoded, y_history, params)
    jax.block_until_ready(out)

    ref = decoder_reference(input_encoded, y_history, params)
    assert out.shape == (B, F)
    # Tolerance relaxed slightly (~2e-3) to accommodate the EUP approximate
    # reciprocal (rel err ~2^-12) used for the softmax normalization.
    assert jnp.allclose(out, ref, atol=2e-3, rtol=2e-3), (out, ref)
    print("KERNEL_OK")
</pallas_src>

<mosaic_0001>
module attributes {stable_mosaic.version = 11 : i64} {
  func.func @decoder_kernel(%arg0: i32, %arg1: memref<2x8x32xf32, #tpu.memory_space<vmem>>, %arg2: memref<2x8x1xf32, #tpu.memory_space<vmem>>, %arg3: memref<100x32xf32, #tpu.memory_space<vmem>>, %arg4: memref<34x128xf32, #tpu.memory_space<vmem>>, %arg5: memref<4x32xf32, #tpu.memory_space<vmem>>, %arg6: memref<2x1x1xf32, #tpu.memory_space<vmem>>) attributes {dimension_semantics = [#tpu.dimension_semantics<parallel>], iteration_bounds = array<i64: 1>, scalar_prefetch = 0 : i64, scratch_operands = 0 : i64, tpu.core_type = #tpu.core_type<tc>, window_params = [{transform_indices = @transform_0, window_bounds = array<i64: 2, 8, 32>}, {transform_indices = @transform_1, window_bounds = array<i64: 2, 8, 1>}, {pipeline_mode = #tpu.pipeline_mode<synchronous>, transform_indices = @transform_2, window_bounds = array<i64: 100, 32>}, {pipeline_mode = #tpu.pipeline_mode<synchronous>, transform_indices = @transform_3, window_bounds = array<i64: 34, 128>}, {pipeline_mode = #tpu.pipeline_mode<synchronous>, transform_indices = @transform_4, window_bounds = array<i64: 4, 32>}, {transform_indices = @transform_5, window_bounds = array<i64: 2, 1, 1>}]} {
    %c0 = arith.constant 0 : index
    %c0_0 = arith.constant 0 : index
    %c0_1 = arith.constant 0 : index
    %0 = vector.load %arg1[%c0, %c0_0, %c0_1] : memref<2x8x32xf32, #tpu.memory_space<vmem>>, vector<2x8x32xf32>
    %c0_2 = arith.constant 0 : index
    %c0_3 = arith.constant 0 : index
    %c0_4 = arith.constant 0 : index
    %1 = vector.load %arg2[%c0_2, %c0_3, %c0_4] : memref<2x8x1xf32, #tpu.memory_space<vmem>>, vector<2x8x1xf32>
    %c0_5 = arith.constant 0 : index
    %c0_6 = arith.constant 0 : index
    %2 = vector.load %arg3[%c0_5, %c0_6] : memref<100x32xf32, #tpu.memory_space<vmem>>, vector<64x32xf32>
    %c64 = arith.constant 64 : index
    %c0_7 = arith.constant 0 : index
    %3 = vector.load %arg3[%c64, %c0_7] : memref<100x32xf32, #tpu.memory_space<vmem>>, vector<32x32xf32>
    %c96 = arith.constant 96 : index
    %c0_8 = arith.constant 0 : index
    %4 = vector.load %arg3[%c96, %c0_8] : memref<100x32xf32, #tpu.memory_space<vmem>>, vector<1x32xf32>
    %c97 = arith.constant 97 : index
    %c0_9 = arith.constant 0 : index
    %5 = vector.load %arg3[%c97, %c0_9] : memref<100x32xf32, #tpu.memory_space<vmem>>, vector<1x32xf32>
    %c98 = arith.constant 98 : index
    %c0_10 = arith.constant 0 : index
    %6 = vector.load %arg3[%c98, %c0_10] : memref<100x32xf32, #tpu.memory_space<vmem>>, vector<1x32xf32>
    %c99 = arith.constant 99 : index
    %c0_11 = arith.constant 0 : index
    %7 = vector.load %arg3[%c99, %c0_11] : memref<100x32xf32, #tpu.memory_space<vmem>>, vector<1x32xf32>
    %c0_12 = arith.constant 0 : index
    %c0_13 = arith.constant 0 : index
    %8 = vector.load %arg4[%c0_12, %c0_13] : memref<34x128xf32, #tpu.memory_space<vmem>>, vector<32x128xf32>
    %c32 = arith.constant 32 : index
    %c0_14 = arith.constant 0 : index
    %9 = vector.load %arg4[%c32, %c0_14] : memref<34x128xf32, #tpu.memory_space<vmem>>, vector<1x128xf32>
    %c33 = arith.constant 33 : index
    %c0_15 = arith.constant 0 : index
    %10 = vector.load %arg4[%c33, %c0_15] : memref<34x128xf32, #tpu.memory_space<vmem>>, vector<1x128xf32>
    %c0_16 = arith.constant 0 : index
    %c0_17 = arith.constant 0 : index
    %11 = vector.load %arg5[%c0_16, %c0_17] : memref<4x32xf32, #tpu.memory_space<vmem>>, vector<1x32xf32>
    %c1 = arith.constant 1 : index
    %c0_18 = arith.constant 0 : index
    %12 = vector.load %arg5[%c1, %c0_18] : memref<4x32xf32, #tpu.memory_space<vmem>>, vector<1x1xf32>
    %c2 = arith.constant 2 : index
    %c0_19 = arith.constant 0 : index
    %13 = vector.load %arg5[%c2, %c0_19] : memref<4x32xf32, #tpu.memory_space<vmem>>, vector<1x1xf32>
    %c3 = arith.constant 3 : index
    %c0_20 = arith.constant 0 : index
    %14 = vector.load %arg5[%c3, %c0_20] : memref<4x32xf32, #tpu.memory_space<vmem>>, vector<1x1xf32>
    %15 = vector.shape_cast %0 : vector<2x8x32xf32> to vector<16x32xf32>
    %cst = arith.constant dense<0.000000e+00> : vector<16x32xf32>
    %16 = tpu.matmul %15, %3, %cst {dimension_numbers = #tpu.dot_dimension_numbers<[1], [0], [0], [1], [0, 0, 1, 1], [], []>} : vector<16x32xf32>, vector<32x32xf32>, vector<16x32xf32> -> vector<16x32xf32>
    %17 = vector.shape_cast %16 : vector<16x32xf32> to vector<2x8x32xf32>
    %18 = vector.shape_cast %4 : vector<1x32xf32> to vector<1x1x32xf32>
    %19 = vector.broadcast %18 : vector<1x1x32xf32> to vector<2x8x32xf32>
    %20 = arith.addf %17, %19 : vector<2x8x32xf32>
    %cst_21 = arith.constant 0.000000e+00 : f32
    %21 = vector.broadcast %cst_21 : f32 to vector<2x32xf32>
    %cst_22 = arith.constant 0.000000e+00 : f32
    %22 = vector.broadcast %cst_22 : f32 to vector<2x32xf32>
    %23 = tpu.concatenate %21, %22 in 1 : vector<2x32xf32>, vector<2x32xf32> -> vector<2x64xf32>
    %cst_23 = arith.constant dense<0.000000e+00> : vector<2x32xf32>
    %24 = tpu.matmul %23, %2, %cst_23 {dimension_numbers = #tpu.dot_dimension_numbers<[1], [0], [0], [1], [0, 0, 1, 1], [], []>} : vector<2x64xf32>, vector<64x32xf32>, vector<2x32xf32> -> vector<2x32xf32>
    %cst_24 = arith.constant dense<0.000000e+00> : vector<2x128xf32>
    %25 = tpu.matmul %21, %8, %cst_24 {dimension_numbers = #tpu.dot_dimension_numbers<[1], [0], [0], [1], [0, 0, 1, 1], [], []>} : vector<2x32xf32>, vector<32x128xf32>, vector<2x128xf32> -> vector<2x128xf32>
    %26 = vector.shape_cast %24 : vector<2x32xf32> to vector<2x1x32xf32>
    %27 = vector.broadcast %26 : vector<2x1x32xf32> to vector<2x8x32xf32>
    %28 = arith.addf %20, %27 : vector<2x8x32xf32>
    %29 = math.tanh %28 : vector<2x8x32xf32>
    %30 = vector.shape_cast %5 : vector<1x32xf32> to vector<1x1x32xf32>
    %31 = vector.broadcast %30 : vector<1x1x32xf32> to vector<2x8x32xf32>
    %32 = arith.mulf %29, %31 : vector<2x8x32xf32>
    %cst_25 = arith.constant dense<0.000000e+00> : vector<2x8xf32>
    %33 = vector.multi_reduction <add>, %32, %cst_25 [2] : vector<2x8x32xf32> to vector<2x8xf32>
    %34 = vector.shape_cast %33 : vector<2x8xf32> to vector<2x8x1xf32>
    %cst_26 = arith.constant dense<0xFF800000> : vector<2x1xf32>
    %35 = vector.multi_reduction <maximumf>, %34, %cst_26 [1] : vector<2x8x1xf32> to vector<2x1xf32>
    %36 = vector.shape_cast %35 : vector<2x1xf32> to vector<2x1x1xf32>
    %37 = vector.broadcast %36 : vector<2x1x1xf32> to vector<2x8x1xf32>
    %38 = arith.subf %34, %37 : vector<2x8x1xf32>
    %39 = math.exp %38 : vector<2x8x1xf32>
    %cst_27 = arith.constant dense<0.000000e+00> : vector<2x1xf32>
    %40 = vector.multi_reduction <add>, %39, %cst_27 [1] : vector<2x8x1xf32> to vector<2x1xf32>
    %41 = vector.shape_cast %40 : vector<2x1xf32> to vector<2x1x1xf32>
    %42 = tpu.reciprocal %41 {approx = true} : vector<2x1x1xf32> -> vector<2x1x1xf32>
    %43 = vector.broadcast %42 : vector<2x1x1xf32> to vector<2x8x1xf32>
    %44 = arith.mulf %39, %43 : vector<2x8x1xf32>
    %45 = vector.broadcast %44 : vector<2x8x1xf32> to vector<2x8x32xf32>
    %46 = arith.mulf %45, %0 : vector<2x8x32xf32>
    %cst_28 = arith.constant dense<0.000000e+00> : vector<2x32xf32>
    %47 = vector.multi_reduction <add>, %46, %cst_28 [1] : vector<2x8x32xf32> to vector<2x32xf32>
    %48 = vector.extract_strided_slice %1 {offsets = [0, 0, 0], sizes = [2, 1, 1], strides = [1, 1, 1]} : vector<2x8x1xf32> to vector<2x1x1xf32>
    %49 = vector.shape_cast %48 : vector<2x1x1xf32> to vector<2x1xf32>
    %50 = vector.broadcast %6 : vector<1x32xf32> to vector<2x32xf32>
    %51 = arith.mulf %47, %50 : vector<2x32xf32>
    %cst_29 = arith.constant dense<0.000000e+00> : vector<2xf32>
    %52 = vector.multi_reduction <add>, %51, %cst_29 [1] : vector<2x32xf32> to vector<2xf32>
    %53 = vector.shape_cast %52 : vector<2xf32> to vector<2x1xf32>
    %54 = vector.broadcast %12 : vector<1x1xf32> to vector<2x1xf32>
    %55 = arith.mulf %49, %54 : vector<2x1xf32>
    %56 = arith.addf %53, %55 : vector<2x1xf32>
    %57 = vector.broadcast %13 : vector<1x1xf32> to vector<2x1xf32>
    %58 = arith.addf %56, %57 : vector<2x1xf32>
    %59 = vector.broadcast %58 : vector<2x1xf32> to vector<2x128xf32>
    %60 = vector.broadcast %9 : vector<1x128xf32> to vector<2x128xf32>
    %61 = arith.mulf %59, %60 : vector<2x128xf32>
    %62 = arith.addf %61, %25 : vector<2x128xf32>
    %63 = vector.broadcast %10 : vector<1x128xf32> to vector<2x128xf32>
    %64 = arith.addf %62, %63 : vector<2x128xf32>
    %65 = vector.extract_strided_slice %64 {offsets = [0, 0], sizes = [2, 32], strides = [1, 1]} : vector<2x128xf32> to vector<2x32xf32>
    %66 = arith.negf %65 : vector<2x32xf32>
    %67 = math.exp %66 : vector<2x32xf32>
    %cst_30 = arith.constant 1.000000e+00 : f32
    %68 = vector.broadcast %cst_30 : f32 to vector<2x32xf32>
    %69 = arith.addf %68, %67 : vector<2x32xf32>
    %70 = arith.divf %68, %69 : vector<2x32xf32>
    %71 = vector.extract_strided_slice %64 {offsets = [0, 32], sizes = [2, 32], strides = [1, 1]} : vector<2x128xf32> to vector<2x32xf32>
    %72 = arith.negf %71 : vector<2x32xf32>
    %73 = math.exp %72 : vector<2x32xf32>
    %cst_31 = arith.constant 1.000000e+00 : f32
    %74 = vector.broadcast %cst_31 : f32 to vector<2x32xf32>
    %75 = arith.addf %74, %73 : vector<2x32xf32>
    %76 = arith.divf %74, %75 : vector<2x32xf32>
    %77 = vector.extract_strided_slice %64 {offsets = [0, 64], sizes = [2, 32], strides = [1, 1]} : vector<2x128xf32> to vector<2x32xf32>
    %78 = math.tanh %77 : vector<2x32xf32>
    %79 = vector.extract_strided_slice %64 {offsets = [0, 96], sizes = [2, 32], strides = [1, 1]} : vector<2x128xf32> to vector<2x32xf32>
    %80 = arith.negf %79 : vector<2x32xf32>
    %81 = math.exp %80 : vector<2x32xf32>
    %cst_32 = arith.constant 1.000000e+00 : f32
    %82 = vector.broadcast %cst_32 : f32 to vector<2x32xf32>
    %83 = arith.addf %82, %81 : vector<2x32xf32>
    %84 = arith.divf %82, %83 : vector<2x32xf32>
    %85 = arith.mulf %76, %22 : vector<2x32xf32>
    %86 = arith.mulf %70, %78 : vector<2x32xf32>
    %87 = arith.addf %85, %86 : vector<2x32xf32>
    %88 = math.tanh %87 : vector<2x32xf32>
    %89 = arith.mulf %84, %88 : vector<2x32xf32>
    %90 = tpu.concatenate %89, %87 in 1 : vector<2x32xf32>, vector<2x32xf32> -> vector<2x64xf32>
    %cst_33 = arith.constant dense<0.000000e+00> : vector<2x32xf32>
    %91 = tpu.matmul %90, %2, %cst_33 {dimension_numbers = #tpu.dot_dimension_numbers<[1], [0], [0], [1], [0, 0, 1, 1], [], []>} : vector<2x64xf32>, vector<64x32xf32>, vector<2x32xf32> -> vector<2x32xf32>
    %cst_34 = arith.constant dense<0.000000e+00> : vector<2x128xf32>
    %92 = tpu.matmul %89, %8, %cst_34 {dimension_numbers = #tpu.dot_dimension_numbers<[1], [0], [0], [1], [0, 0, 1, 1], [], []>} : vector<2x32xf32>, vector<32x128xf32>, vector<2x128xf32> -> vector<2x128xf32>
    %93 = vector.shape_cast %91 : vector<2x32xf32> to vector<2x1x32xf32>
    %94 = vector.broadcast %93 : vector<2x1x32xf32> to vector<2x8x32xf32>
    %95 = arith.addf %20, %94 : vector<2x8x32xf32>
    %96 = math.tanh %95 : vector<2x8x32xf32>
    %97 = vector.shape_cast %5 : vector<1x32xf32> to vector<1x1x32xf32>
    %98 = vector.broadcast %97 : vector<1x1x32xf32> to vector<2x8x32xf32>
    %99 = arith.mulf %96, %98 : vector<2x8x32xf32>
    %cst_35 = arith.constant dense<0.000000e+00> : vector<2x8xf32>
    %100 = vector.multi_reduction <add>, %99, %cst_35 [2] : vector<2x8x32xf32> to vector<2x8xf32>
    %101 = vector.shape_cast %100 : vector<2x8xf32> to vector<2x8x1xf32>
    %cst_36 = arith.constant dense<0xFF800000> : vector<2x1xf32>
    %102 = vector.multi_reduction <maximumf>, %101, %cst_36 [1] : vector<2x8x1xf32> to vector<2x1xf32>
    %103 = vector.shape_cast %102 : vector<2x1xf32> to vector<2x1x1xf32>
    %104 = vector.broadcast %103 : vector<2x1x1xf32> to vector<2x8x1xf32>
    %105 = arith.subf %101, %104 : vector<2x8x1xf32>
    %106 = math.exp %105 : vector<2x8x1xf32>
    %cst_37 = arith.constant dense<0.000000e+00> : vector<2x1xf32>
    %107 = vector.multi_reduction <add>, %106, %cst_37 [1] : vector<2x8x1xf32> to vector<2x1xf32>
    %108 = vector.shape_cast %107 : vector<2x1xf32> to vector<2x1x1xf32>
    %109 = tpu.reciprocal %108 {approx = true} : vector<2x1x1xf32> -> vector<2x1x1xf32>
    %110 = vector.broadcast %109 : vector<2x1x1xf32> to vector<2x8x1xf32>
    %111 = arith.mulf %106, %110 : vector<2x8x1xf32>
    %112 = vector.broadcast %111 : vector<2x8x1xf32> to vector<2x8x32xf32>
    %113 = arith.mulf %112, %0 : vector<2x8x32xf32>
    %cst_38 = arith.constant dense<0.000000e+00> : vector<2x32xf32>
    %114 = vector.multi_reduction <add>, %113, %cst_38 [1] : vector<2x8x32xf32> to vector<2x32xf32>
    %115 = vector.extract_strided_slice %1 {offsets = [0, 1, 0], sizes = [2, 1, 1], strides = [1, 1, 1]} : vector<2x8x1xf32> to vector<2x1x1xf32>
    %116 = vector.shape_cast %115 : vector<2x1x1xf32> to vector<2x1xf32>
    %117 = vector.broadcast %6 : vector<1x32xf32> to vector<2x32xf32>
    %118 = arith.mulf %114, %117 : vector<2x32xf32>
    %cst_39 = arith.constant dense<0.000000e+00> : vector<2xf32>
    %119 = vector.multi_reduction <add>, %118, %cst_39 [1] : vector<2x32xf32> to vector<2xf32>
    %120 = vector.shape_cast %119 : vector<2xf32> to vector<2x1xf32>
    %121 = vector.broadcast %12 : vector<1x1xf32> to vector<2x1xf32>
    %122 = arith.mulf %116, %121 : vector<2x1xf32>
    %123 = arith.addf %120, %122 : vector<2x1xf32>
    %124 = vector.broadcast %13 : vector<1x1xf32> to vector<2x1xf32>
    %125 = arith.addf %123, %124 : vector<2x1xf32>
    %126 = vector.broadcast %125 : vector<2x1xf32> to vector<2x128xf32>
    %127 = vector.broadcast %9 : vector<1x128xf32> to vector<2x128xf32>
    %128 = arith.mulf %126, %127 : vector<2x128xf32>
    %129 = arith.addf %128, %92 : vector<2x128xf32>
    %130 = vector.broadcast %10 : vector<1x128xf32> to vector<2x128xf32>
    %131 = arith.addf %129, %130 : vector<2x128xf32>
    %132 = vector.extract_strided_slice %131 {offsets = [0, 0], sizes = [2, 32], strides = [1, 1]} : vector<2x128xf32> to vector<2x32xf32>
    %133 = arith.negf %132 : vector<2x32xf32>
    %134 = math.exp %133 : vector<2x32xf32>
    %cst_40 = arith.constant 1.000000e+00 : f32
    %135 = vector.broadcast %cst_40 : f32 to vector<2x32xf32>
    %136 = arith.addf %135, %134 : vector<2x32xf32>
    %137 = arith.divf %135, %136 : vector<2x32xf32>
    %138 = vector.extract_strided_slice %131 {offsets = [0, 32], sizes = [2, 32], strides = [1, 1]} : vector<2x128xf32> to vector<2x32xf32>
    %139 = arith.negf %138 : vector<2x32xf32>
    %140 = math.exp %139 : vector<2x32xf32>
    %cst_41 = arith.constant 1.000000e+00 : f32
    %141 = vector.broadcast %cst_41 : f32 to vector<2x32xf32>
    %142 = arith.addf %141, %140 : vector<2x32xf32>
    %143 = arith.divf %141, %142 : vector<2x32xf32>
    %144 = vector.extract_strided_slice %131 {offsets = [0, 64], sizes = [2, 32], strides = [1, 1]} : vector<2x128xf32> to vector<2x32xf32>
    %145 = math.tanh %144 : vector<2x32xf32>
    %146 = vector.extract_strided_slice %131 {offsets = [0, 96], sizes = [2, 32], strides = [1, 1]} : vector<2x128xf32> to vector<2x32xf32>
    %147 = arith.negf %146 : vector<2x32xf32>
    %148 = math.exp %147 : vector<2x32xf32>
    %cst_42 = arith.constant 1.000000e+00 : f32
    %149 = vector.broadcast %cst_42 : f32 to vector<2x32xf32>
    %150 = arith.addf %149, %148 : vector<2x32xf32>
    %151 = arith.divf %149, %150 : vector<2x32xf32>
    %152 = arith.mulf %143, %87 : vector<2x32xf32>
    %153 = arith.mulf %137, %145 : vector<2x32xf32>
    %154 = arith.addf %152, %153 : vector<2x32xf32>
    %155 = math.tanh %154 : vector<2x32xf32>
    %156 = arith.mulf %151, %155 : vector<2x32xf32>
    %157 = tpu.concatenate %156, %154 in 1 : vector<2x32xf32>, vector<2x32xf32> -> vector<2x64xf32>
    %cst_43 = arith.constant dense<0.000000e+00> : vector<2x32xf32>
    %158 = tpu.matmul %157, %2, %cst_43 {dimension_numbers = #tpu.dot_dimension_numbers<[1], [0], [0], [1], [0, 0, 1, 1], [], []>} : vector<2x64xf32>, vector<64x32xf32>, vector<2x32xf32> -> vector<2x32xf32>
    %cst_44 = arith.constant dense<0.000000e+00> : vector<2x128xf32>
    %159 = tpu.matmul %156, %8, %cst_44 {dimension_numbers = #tpu.dot_dimension_numbers<[1], [0], [0], [1], [0, 0, 1, 1], [], []>} : vector<2x32xf32>, vector<32x128xf32>, vector<2x128xf32> -> vector<2x128xf32>
    %160 = vector.shape_cast %158 : vector<2x32xf32> to vector<2x1x32xf32>
    %161 = vector.broadcast %160 : vector<2x1x32xf32> to vector<2x8x32xf32>
    %162 = arith.addf %20, %161 : vector<2x8x32xf32>
    %163 = math.tanh %162 : vector<2x8x32xf32>
    %164 = vector.shape_cast %5 : vector<1x32xf32> to vector<1x1x32xf32>
    %165 = vector.broadcast %164 : vector<1x1x32xf32> to vector<2x8x32xf32>
    %166 = arith.mulf %163, %165 : vector<2x8x32xf32>
    %cst_45 = arith.constant dense<0.000000e+00> : vector<2x8xf32>
    %167 = vector.multi_reduction <add>, %166, %cst_45 [2] : vector<2x8x32xf32> to vector<2x8xf32>
    %168 = vector.shape_cast %167 : vector<2x8xf32> to vector<2x8x1xf32>
    %cst_46 = arith.constant dense<0xFF800000> : vector<2x1xf32>
    %169 = vector.multi_reduction <maximumf>, %168, %cst_46 [1] : vector<2x8x1xf32> to vector<2x1xf32>
    %170 = vector.shape_cast %169 : vector<2x1xf32> to vector<2x1x1xf32>
    %171 = vector.broadcast %170 : vector<2x1x1xf32> to vector<2x8x1xf32>
    %172 = arith.subf %168, %171 : vector<2x8x1xf32>
    %173 = math.exp %172 : vector<2x8x1xf32>
    %cst_47 = arith.constant dense<0.000000e+00> : vector<2x1xf32>
    %174 = vector.multi_reduction <add>, %173, %cst_47 [1] : vector<2x8x1xf32> to vector<2x1xf32>
    %175 = vector.shape_cast %174 : vector<2x1xf32> to vector<2x1x1xf32>
    %176 = tpu.reciprocal %175 {approx = true} : vector<2x1x1xf32> -> vector<2x1x1xf32>
    %177 = vector.broadcast %176 : vector<2x1x1xf32> to vector<2x8x1xf32>
    %178 = arith.mulf %173, %177 : vector<2x8x1xf32>
    %179 = vector.broadcast %178 : vector<2x8x1xf32> to vector<2x8x32xf32>
    %180 = arith.mulf %179, %0 : vector<2x8x32xf32>
    %cst_48 = arith.constant dense<0.000000e+00> : vector<2x32xf32>
    %181 = vector.multi_reduction <add>, %180, %cst_48 [1] : vector<2x8x32xf32> to vector<2x32xf32>
    %182 = vector.extract_strided_slice %1 {offsets = [0, 2, 0], sizes = [2, 1, 1], strides = [1, 1, 1]} : vector<2x8x1xf32> to vector<2x1x1xf32>
    %183 = vector.shape_cast %182 : vector<2x1x1xf32> to vector<2x1xf32>
    %184 = vector.broadcast %6 : vector<1x32xf32> to vector<2x32xf32>
    %185 = arith.mulf %181, %184 : vector<2x32xf32>
    %cst_49 = arith.constant dense<0.000000e+00> : vector<2xf32>
    %186 = vector.multi_reduction <add>, %185, %cst_49 [1] : vector<2x32xf32> to vector<2xf32>
    %187 = vector.shape_cast %186 : vector<2xf32> to vector<2x1xf32>
    %188 = vector.broadcast %12 : vector<1x1xf32> to vector<2x1xf32>
    %189 = arith.mulf %183, %188 : vector<2x1xf32>
    %190 = arith.addf %187, %189 : vector<2x1xf32>
    %191 = vector.broadcast %13 : vector<1x1xf32> to vector<2x1xf32>
    %192 = arith.addf %190, %191 : vector<2x1xf32>
    %193 = vector.broadcast %192 : vector<2x1xf32> to vector<2x128xf32>
    %194 = vector.broadcast %9 : vector<1x128xf32> to vector<2x128xf32>
    %195 = arith.mulf %193, %194 : vector<2x128xf32>
    %196 = arith.addf %195, %159 : vector<2x128xf32>
    %197 = vector.broadcast %10 : vector<1x128xf32> to vector<2x128xf32>
    %198 = arith.addf %196, %197 : vector<2x128xf32>
    %199 = vector.extract_strided_slice %198 {offsets = [0, 0], sizes = [2, 32], strides = [1, 1]} : vector<2x128xf32> to vector<2x32xf32>
    %200 = arith.negf %199 : vector<2x32xf32>
    %201 = math.exp %200 : vector<2x32xf32>
    %cst_50 = arith.constant 1.000000e+00 : f32
    %202 = vector.broadcast %cst_50 : f32 to vector<2x32xf32>
    %203 = arith.addf %202, %201 : vector<2x32xf32>
    %204 = arith.divf %202, %203 : vector<2x32xf32>
    %205 = vector.extract_strided_slice %198 {offsets = [0, 32], sizes = [2, 32], strides = [1, 1]} : vector<2x128xf32> to vector<2x32xf32>
    %206 = arith.negf %205 : vector<2x32xf32>
    %207 = math.exp %206 : vector<2x32xf32>
    %cst_51 = arith.constant 1.000000e+00 : f32
    %208 = vector.broadcast %cst_51 : f32 to vector<2x32xf32>
    %209 = arith.addf %208, %207 : vector<2x32xf32>
    %210 = arith.divf %208, %209 : vector<2x32xf32>
    %211 = vector.extract_strided_slice %198 {offsets = [0, 64], sizes = [2, 32], strides = [1, 1]} : vector<2x128xf32> to vector<2x32xf32>
    %212 = math.tanh %211 : vector<2x32xf32>
    %213 = vector.extract_strided_slice %198 {offsets = [0, 96], sizes = [2, 32], strides = [1, 1]} : vector<2x128xf32> to vector<2x32xf32>
    %214 = arith.negf %213 : vector<2x32xf32>
    %215 = math.exp %214 : vector<2x32xf32>
    %cst_52 = arith.constant 1.000000e+00 : f32
    %216 = vector.broadcast %cst_52 : f32 to vector<2x32xf32>
    %217 = arith.addf %216, %215 : vector<2x32xf32>
    %218 = arith.divf %216, %217 : vector<2x32xf32>
    %219 = arith.mulf %210, %154 : vector<2x32xf32>
    %220 = arith.mulf %204, %212 : vector<2x32xf32>
    %221 = arith.addf %219, %220 : vector<2x32xf32>
    %222 = math.tanh %221 : vector<2x32xf32>
    %223 = arith.mulf %218, %222 : vector<2x32xf32>
    %224 = tpu.concatenate %223, %221 in 1 : vector<2x32xf32>, vector<2x32xf32> -> vector<2x64xf32>
    %cst_53 = arith.constant dense<0.000000e+00> : vector<2x32xf32>
    %225 = tpu.matmul %224, %2, %cst_53 {dimension_numbers = #tpu.dot_dimension_numbers<[1], [0], [0], [1], [0, 0, 1, 1], [], []>} : vector<2x64xf32>, vector<64x32xf32>, vector<2x32xf32> -> vector<2x32xf32>
    %cst_54 = arith.constant dense<0.000000e+00> : vector<2x128xf32>
    %226 = tpu.matmul %223, %8, %cst_54 {dimension_numbers = #tpu.dot_dimension_numbers<[1], [0], [0], [1], [0, 0, 1, 1], [], []>} : vector<2x32xf32>, vector<32x128xf32>, vector<2x128xf32> -> vector<2x128xf32>
    %227 = vector.shape_cast %225 : vector<2x32xf32> to vector<2x1x32xf32>
    %228 = vector.broadcast %227 : vector<2x1x32xf32> to vector<2x8x32xf32>
    %229 = arith.addf %20, %228 : vector<2x8x32xf32>
    %230 = math.tanh %229 : vector<2x8x32xf32>
    %231 = vector.shape_cast %5 : vector<1x32xf32> to vector<1x1x32xf32>
    %232 = vector.broadcast %231 : vector<1x1x32xf32> to vector<2x8x32xf32>
    %233 = arith.mulf %230, %232 : vector<2x8x32xf32>
    %cst_55 = arith.constant dense<0.000000e+00> : vector<2x8xf32>
    %234 = vector.multi_reduction <add>, %233, %cst_55 [2] : vector<2x8x32xf32> to vector<2x8xf32>
    %235 = vector.shape_cast %234 : vector<2x8xf32> to vector<2x8x1xf32>
    %cst_56 = arith.constant dense<0xFF800000> : vector<2x1xf32>
    %236 = vector.multi_reduction <maximumf>, %235, %cst_56 [1] : vector<2x8x1xf32> to vector<2x1xf32>
    %237 = vector.shape_cast %236 : vector<2x1xf32> to vector<2x1x1xf32>
    %238 = vector.broadcast %237 : vector<2x1x1xf32> to vector<2x8x1xf32>
    %239 = arith.subf %235, %238 : vector<2x8x1xf32>
    %240 = math.exp %239 : vector<2x8x1xf32>
    %cst_57 = arith.constant dense<0.000000e+00> : vector<2x1xf32>
    %241 = vector.multi_reduction <add>, %240, %cst_57 [1] : vector<2x8x1xf32> to vector<2x1xf32>
    %242 = vector.shape_cast %241 : vector<2x1xf32> to vector<2x1x1xf32>
    %243 = tpu.reciprocal %242 {approx = true} : vector<2x1x1xf32> -> vector<2x1x1xf32>
    %244 = vector.broadcast %243 : vector<2x1x1xf32> to vector<2x8x1xf32>
    %245 = arith.mulf %240, %244 : vector<2x8x1xf32>
    %246 = vector.broadcast %245 : vector<2x8x1xf32> to vector<2x8x32xf32>
    %247 = arith.mulf %246, %0 : vector<2x8x32xf32>
    %cst_58 = arith.constant dense<0.000000e+00> : vector<2x32xf32>
    %248 = vector.multi_reduction <add>, %247, %cst_58 [1] : vector<2x8x32xf32> to vector<2x32xf32>
    %249 = vector.extract_strided_slice %1 {offsets = [0, 3, 0], sizes = [2, 1, 1], strides = [1, 1, 1]} : vector<2x8x1xf32> to vector<2x1x1xf32>
    %250 = vector.shape_cast %249 : vector<2x1x1xf32> to vector<2x1xf32>
    %251 = vector.broadcast %6 : vector<1x32xf32> to vector<2x32xf32>
    %252 = arith.mulf %248, %251 : vector<2x32xf32>
    %cst_59 = arith.constant dense<0.000000e+00> : vector<2xf32>
    %253 = vector.multi_reduction <add>, %252, %cst_59 [1] : vector<2x32xf32> to vector<2xf32>
    %254 = vector.shape_cast %253 : vector<2xf32> to vector<2x1xf32>
    %255 = vector.broadcast %12 : vector<1x1xf32> to vector<2x1xf32>
    %256 = arith.mulf %250, %255 : vector<2x1xf32>
    %257 = arith.addf %254, %256 : vector<2x1xf32>
    %258 = vector.broadcast %13 : vector<1x1xf32> to vector<2x1xf32>
    %259 = arith.addf %257, %258 : vector<2x1xf32>
    %260 = vector.broadcast %259 : vector<2x1xf32> to vector<2x128xf32>
    %261 = vector.broadcast %9 : vector<1x128xf32> to vector<2x128xf32>
    %262 = arith.mulf %260, %261 : vector<2x128xf32>
    %263 = arith.addf %262, %226 : vector<2x128xf32>
    %264 = vector.broadcast %10 : vector<1x128xf32> to vector<2x128xf32>
    %265 = arith.addf %263, %264 : vector<2x128xf32>
    %266 = vector.extract_strided_slice %265 {offsets = [0, 0], sizes = [2, 32], strides = [1, 1]} : vector<2x128xf32> to vector<2x32xf32>
    %267 = arith.negf %266 : vector<2x32xf32>
    %268 = math.exp %267 : vector<2x32xf32>
    %cst_60 = arith.constant 1.000000e+00 : f32
    %269 = vector.broadcast %cst_60 : f32 to vector<2x32xf32>
    %270 = arith.addf %269, %268 : vector<2x32xf32>
    %271 = arith.divf %269, %270 : vector<2x32xf32>
    %272 = vector.extract_strided_slice %265 {offsets = [0, 32], sizes = [2, 32], strides = [1, 1]} : vector<2x128xf32> to vector<2x32xf32>
    %273 = arith.negf %272 : vector<2x32xf32>
    %274 = math.exp %273 : vector<2x32xf32>
    %cst_61 = arith.constant 1.000000e+00 : f32
    %275 = vector.broadcast %cst_61 : f32 to vector<2x32xf32>
    %276 = arith.addf %275, %274 : vector<2x32xf32>
    %277 = arith.divf %275, %276 : vector<2x32xf32>
    %278 = vector.extract_strided_slice %265 {offsets = [0, 64], sizes = [2, 32], strides = [1, 1]} : vector<2x128xf32> to vector<2x32xf32>
    %279 = math.tanh %278 : vector<2x32xf32>
    %280 = vector.extract_strided_slice %265 {offsets = [0, 96], sizes = [2, 32], strides = [1, 1]} : vector<2x128xf32> to vector<2x32xf32>
    %281 = arith.negf %280 : vector<2x32xf32>
    %282 = math.exp %281 : vector<2x32xf32>
    %cst_62 = arith.constant 1.000000e+00 : f32
    %283 = vector.broadcast %cst_62 : f32 to vector<2x32xf32>
    %284 = arith.addf %283, %282 : vector<2x32xf32>
    %285 = arith.divf %283, %284 : vector<2x32xf32>
    %286 = arith.mulf %277, %221 : vector<2x32xf32>
    %287 = arith.mulf %271, %279 : vector<2x32xf32>
    %288 = arith.addf %286, %287 : vector<2x32xf32>
    %289 = math.tanh %288 : vector<2x32xf32>
    %290 = arith.mulf %285, %289 : vector<2x32xf32>
    %291 = tpu.concatenate %290, %288 in 1 : vector<2x32xf32>, vector<2x32xf32> -> vector<2x64xf32>
    %cst_63 = arith.constant dense<0.000000e+00> : vector<2x32xf32>
    %292 = tpu.matmul %291, %2, %cst_63 {dimension_numbers = #tpu.dot_dimension_numbers<[1], [0], [0], [1], [0, 0, 1, 1], [], []>} : vector<2x64xf32>, vector<64x32xf32>, vector<2x32xf32> -> vector<2x32xf32>
    %cst_64 = arith.constant dense<0.000000e+00> : vector<2x128xf32>
    %293 = tpu.matmul %290, %8, %cst_64 {dimension_numbers = #tpu.dot_dimension_numbers<[1], [0], [0], [1], [0, 0, 1, 1], [], []>} : vector<2x32xf32>, vector<32x128xf32>, vector<2x128xf32> -> vector<2x128xf32>
    %294 = vector.shape_cast %292 : vector<2x32xf32> to vector<2x1x32xf32>
    %295 = vector.broadcast %294 : vector<2x1x32xf32> to vector<2x8x32xf32>
    %296 = arith.addf %20, %295 : vector<2x8x32xf32>
    %297 = math.tanh %296 : vector<2x8x32xf32>
    %298 = vector.shape_cast %5 : vector<1x32xf32> to vector<1x1x32xf32>
    %299 = vector.broadcast %298 : vector<1x1x32xf32> to vector<2x8x32xf32>
    %300 = arith.mulf %297, %299 : vector<2x8x32xf32>
    %cst_65 = arith.constant dense<0.000000e+00> : vector<2x8xf32>
    %301 = vector.multi_reduction <add>, %300, %cst_65 [2] : vector<2x8x32xf32> to vector<2x8xf32>
    %302 = vector.shape_cast %301 : vector<2x8xf32> to vector<2x8x1xf32>
    %cst_66 = arith.constant dense<0xFF800000> : vector<2x1xf32>
    %303 = vector.multi_reduction <maximumf>, %302, %cst_66 [1] : vector<2x8x1xf32> to vector<2x1xf32>
    %304 = vector.shape_cast %303 : vector<2x1xf32> to vector<2x1x1xf32>
    %305 = vector.broadcast %304 : vector<2x1x1xf32> to vector<2x8x1xf32>
    %306 = arith.subf %302, %305 : vector<2x8x1xf32>
    %307 = math.exp %306 : vector<2x8x1xf32>
    %cst_67 = arith.constant dense<0.000000e+00> : vector<2x1xf32>
    %308 = vector.multi_reduction <add>, %307, %cst_67 [1] : vector<2x8x1xf32> to vector<2x1xf32>
    %309 = vector.shape_cast %308 : vector<2x1xf32> to vector<2x1x1xf32>
    %310 = tpu.reciprocal %309 {approx = true} : vector<2x1x1xf32> -> vector<2x1x1xf32>
    %311 = vector.broadcast %310 : vector<2x1x1xf32> to vector<2x8x1xf32>
    %312 = arith.mulf %307, %311 : vector<2x8x1xf32>
    %313 = vector.broadcast %312 : vector<2x8x1xf32> to vector<2x8x32xf32>
    %314 = arith.mulf %313, %0 : vector<2x8x32xf32>
    %cst_68 = arith.constant dense<0.000000e+00> : vector<2x32xf32>
    %315 = vector.multi_reduction <add>, %314, %cst_68 [1] : vector<2x8x32xf32> to vector<2x32xf32>
    %316 = vector.extract_strided_slice %1 {offsets = [0, 4, 0], sizes = [2, 1, 1], strides = [1, 1, 1]} : vector<2x8x1xf32> to vector<2x1x1xf32>
    %317 = vector.shape_cast %316 : vector<2x1x1xf32> to vector<2x1xf32>
    %318 = vector.broadcast %6 : vector<1x32xf32> to vector<2x32xf32>
    %319 = arith.mulf %315, %318 : vector<2x32xf32>
    %cst_69 = arith.constant dense<0.000000e+00> : vector<2xf32>
    %320 = vector.multi_reduction <add>, %319, %cst_69 [1] : vector<2x32xf32> to vector<2xf32>
    %321 = vector.shape_cast %320 : vector<2xf32> to vector<2x1xf32>
    %322 = vector.broadcast %12 : vector<1x1xf32> to vector<2x1xf32>
    %323 = arith.mulf %317, %322 : vector<2x1xf32>
    %324 = arith.addf %321, %323 : vector<2x1xf32>
    %325 = vector.broadcast %13 : vector<1x1xf32> to vector<2x1xf32>
    %326 = arith.addf %324, %325 : vector<2x1xf32>
    %327 = vector.broadcast %326 : vector<2x1xf32> to vector<2x128xf32>
    %328 = vector.broadcast %9 : vector<1x128xf32> to vector<2x128xf32>
    %329 = arith.mulf %327, %328 : vector<2x128xf32>
    %330 = arith.addf %329, %293 : vector<2x128xf32>
    %331 = vector.broadcast %10 : vector<1x128xf32> to vector<2x128xf32>
    %332 = arith.addf %330, %331 : vector<2x128xf32>
    %333 = vector.extract_strided_slice %332 {offsets = [0, 0], sizes = [2, 32], strides = [1, 1]} : vector<2x128xf32> to vector<2x32xf32>
    %334 = arith.negf %333 : vector<2x32xf32>
    %335 = math.exp %334 : vector<2x32xf32>
    %cst_70 = arith.constant 1.000000e+00 : f32
    %336 = vector.broadcast %cst_70 : f32 to vector<2x32xf32>
    %337 = arith.addf %336, %335 : vector<2x32xf32>
    %338 = arith.divf %336, %337 : vector<2x32xf32>
    %339 = vector.extract_strided_slice %332 {offsets = [0, 32], sizes = [2, 32], strides = [1, 1]} : vector<2x128xf32> to vector<2x32xf32>
    %340 = arith.negf %339 : vector<2x32xf32>
    %341 = math.exp %340 : vector<2x32xf32>
    %cst_71 = arith.constant 1.000000e+00 : f32
    %342 = vector.broadcast %cst_71 : f32 to vector<2x32xf32>
    %343 = arith.addf %342, %341 : vector<2x32xf32>
    %344 = arith.divf %342, %343 : vector<2x32xf32>
    %345 = vector.extract_strided_slice %332 {offsets = [0, 64], sizes = [2, 32], strides = [1, 1]} : vector<2x128xf32> to vector<2x32xf32>
    %346 = math.tanh %345 : vector<2x32xf32>
    %347 = vector.extract_strided_slice %332 {offsets = [0, 96], sizes = [2, 32], strides = [1, 1]} : vector<2x128xf32> to vector<2x32xf32>
    %348 = arith.negf %347 : vector<2x32xf32>
    %349 = math.exp %348 : vector<2x32xf32>
    %cst_72 = arith.constant 1.000000e+00 : f32
    %350 = vector.broadcast %cst_72 : f32 to vector<2x32xf32>
    %351 = arith.addf %350, %349 : vector<2x32xf32>
    %352 = arith.divf %350, %351 : vector<2x32xf32>
    %353 = arith.mulf %344, %288 : vector<2x32xf32>
    %354 = arith.mulf %338, %346 : vector<2x32xf32>
    %355 = arith.addf %353, %354 : vector<2x32xf32>
    %356 = math.tanh %355 : vector<2x32xf32>
    %357 = arith.mulf %352, %356 : vector<2x32xf32>
    %358 = tpu.concatenate %357, %355 in 1 : vector<2x32xf32>, vector<2x32xf32> -> vector<2x64xf32>
    %cst_73 = arith.constant dense<0.000000e+00> : vector<2x32xf32>
    %359 = tpu.matmul %358, %2, %cst_73 {dimension_numbers = #tpu.dot_dimension_numbers<[1], [0], [0], [1], [0, 0, 1, 1], [], []>} : vector<2x64xf32>, vector<64x32xf32>, vector<2x32xf32> -> vector<2x32xf32>
    %cst_74 = arith.constant dense<0.000000e+00> : vector<2x128xf32>
    %360 = tpu.matmul %357, %8, %cst_74 {dimension_numbers = #tpu.dot_dimension_numbers<[1], [0], [0], [1], [0, 0, 1, 1], [], []>} : vector<2x32xf32>, vector<32x128xf32>, vector<2x128xf32> -> vector<2x128xf32>
    %361 = vector.shape_cast %359 : vector<2x32xf32> to vector<2x1x32xf32>
    %362 = vector.broadcast %361 : vector<2x1x32xf32> to vector<2x8x32xf32>
    %363 = arith.addf %20, %362 : vector<2x8x32xf32>
    %364 = math.tanh %363 : vector<2x8x32xf32>
    %365 = vector.shape_cast %5 : vector<1x32xf32> to vector<1x1x32xf32>
    %366 = vector.broadcast %365 : vector<1x1x32xf32> to vector<2x8x32xf32>
    %367 = arith.mulf %364, %366 : vector<2x8x32xf32>
    %cst_75 = arith.constant dense<0.000000e+00> : vector<2x8xf32>
    %368 = vector.multi_reduction <add>, %367, %cst_75 [2] : vector<2x8x32xf32> to vector<2x8xf32>
    %369 = vector.shape_cast %368 : vector<2x8xf32> to vector<2x8x1xf32>
    %cst_76 = arith.constant dense<0xFF800000> : vector<2x1xf32>
    %370 = vector.multi_reduction <maximumf>, %369, %cst_76 [1] : vector<2x8x1xf32> to vector<2x1xf32>
    %371 = vector.shape_cast %370 : vector<2x1xf32> to vector<2x1x1xf32>
    %372 = vector.broadcast %371 : vector<2x1x1xf32> to vector<2x8x1xf32>
    %373 = arith.subf %369, %372 : vector<2x8x1xf32>
    %374 = math.exp %373 : vector<2x8x1xf32>
    %cst_77 = arith.constant dense<0.000000e+00> : vector<2x1xf32>
    %375 = vector.multi_reduction <add>, %374, %cst_77 [1] : vector<2x8x1xf32> to vector<2x1xf32>
    %376 = vector.shape_cast %375 : vector<2x1xf32> to vector<2x1x1xf32>
    %377 = tpu.reciprocal %376 {approx = true} : vector<2x1x1xf32> -> vector<2x1x1xf32>
    %378 = vector.broadcast %377 : vector<2x1x1xf32> to vector<2x8x1xf32>
    %379 = arith.mulf %374, %378 : vector<2x8x1xf32>
    %380 = vector.broadcast %379 : vector<2x8x1xf32> to vector<2x8x32xf32>
    %381 = arith.mulf %380, %0 : vector<2x8x32xf32>
    %cst_78 = arith.constant dense<0.000000e+00> : vector<2x32xf32>
    %382 = vector.multi_reduction <add>, %381, %cst_78 [1] : vector<2x8x32xf32> to vector<2x32xf32>
    %383 = vector.extract_strided_slice %1 {offsets = [0, 5, 0], sizes = [2, 1, 1], strides = [1, 1, 1]} : vector<2x8x1xf32> to vector<2x1x1xf32>
    %384 = vector.shape_cast %383 : vector<2x1x1xf32> to vector<2x1xf32>
    %385 = vector.broadcast %6 : vector<1x32xf32> to vector<2x32xf32>
    %386 = arith.mulf %382, %385 : vector<2x32xf32>
    %cst_79 = arith.constant dense<0.000000e+00> : vector<2xf32>
    %387 = vector.multi_reduction <add>, %386, %cst_79 [1] : vector<2x32xf32> to vector<2xf32>
    %388 = vector.shape_cast %387 : vector<2xf32> to vector<2x1xf32>
    %389 = vector.broadcast %12 : vector<1x1xf32> to vector<2x1xf32>
    %390 = arith.mulf %384, %389 : vector<2x1xf32>
    %391 = arith.addf %388, %390 : vector<2x1xf32>
    %392 = vector.broadcast %13 : vector<1x1xf32> to vector<2x1xf32>
    %393 = arith.addf %391, %392 : vector<2x1xf32>
    %394 = vector.broadcast %393 : vector<2x1xf32> to vector<2x128xf32>
    %395 = vector.broadcast %9 : vector<1x128xf32> to vector<2x128xf32>
    %396 = arith.mulf %394, %395 : vector<2x128xf32>
    %397 = arith.addf %396, %360 : vector<2x128xf32>
    %398 = vector.broadcast %10 : vector<1x128xf32> to vector<2x128xf32>
    %399 = arith.addf %397, %398 : vector<2x128xf32>
    %400 = vector.extract_strided_slice %399 {offsets = [0, 0], sizes = [2, 32], strides = [1, 1]} : vector<2x128xf32> to vector<2x32xf32>
    %401 = arith.negf %400 : vector<2x32xf32>
    %402 = math.exp %401 : vector<2x32xf32>
    %cst_80 = arith.constant 1.000000e+00 : f32
    %403 = vector.broadcast %cst_80 : f32 to vector<2x32xf32>
    %404 = arith.addf %403, %402 : vector<2x32xf32>
    %405 = arith.divf %403, %404 : vector<2x32xf32>
    %406 = vector.extract_strided_slice %399 {offsets = [0, 32], sizes = [2, 32], strides = [1, 1]} : vector<2x128xf32> to vector<2x32xf32>
    %407 = arith.negf %406 : vector<2x32xf32>
    %408 = math.exp %407 : vector<2x32xf32>
    %cst_81 = arith.constant 1.000000e+00 : f32
    %409 = vector.broadcast %cst_81 : f32 to vector<2x32xf32>
    %410 = arith.addf %409, %408 : vector<2x32xf32>
    %411 = arith.divf %409, %410 : vector<2x32xf32>
    %412 = vector.extract_strided_slice %399 {offsets = [0, 64], sizes = [2, 32], strides = [1, 1]} : vector<2x128xf32> to vector<2x32xf32>
    %413 = math.tanh %412 : vector<2x32xf32>
    %414 = vector.extract_strided_slice %399 {offsets = [0, 96], sizes = [2, 32], strides = [1, 1]} : vector<2x128xf32> to vector<2x32xf32>
    %415 = arith.negf %414 : vector<2x32xf32>
    %416 = math.exp %415 : vector<2x32xf32>
    %cst_82 = arith.constant 1.000000e+00 : f32
    %417 = vector.broadcast %cst_82 : f32 to vector<2x32xf32>
    %418 = arith.addf %417, %416 : vector<2x32xf32>
    %419 = arith.divf %417, %418 : vector<2x32xf32>
    %420 = arith.mulf %411, %355 : vector<2x32xf32>
    %421 = arith.mulf %405, %413 : vector<2x32xf32>
    %422 = arith.addf %420, %421 : vector<2x32xf32>
    %423 = math.tanh %422 : vector<2x32xf32>
    %424 = arith.mulf %419, %423 : vector<2x32xf32>
    %425 = tpu.concatenate %424, %422 in 1 : vector<2x32xf32>, vector<2x32xf32> -> vector<2x64xf32>
    %cst_83 = arith.constant dense<0.000000e+00> : vector<2x32xf32>
    %426 = tpu.matmul %425, %2, %cst_83 {dimension_numbers = #tpu.dot_dimension_numbers<[1], [0], [0], [1], [0, 0, 1, 1], [], []>} : vector<2x64xf32>, vector<64x32xf32>, vector<2x32xf32> -> vector<2x32xf32>
    %cst_84 = arith.constant dense<0.000000e+00> : vector<2x128xf32>
    %427 = tpu.matmul %424, %8, %cst_84 {dimension_numbers = #tpu.dot_dimension_numbers<[1], [0], [0], [1], [0, 0, 1, 1], [], []>} : vector<2x32xf32>, vector<32x128xf32>, vector<2x128xf32> -> vector<2x128xf32>
    %428 = vector.shape_cast %426 : vector<2x32xf32> to vector<2x1x32xf32>
    %429 = vector.broadcast %428 : vector<2x1x32xf32> to vector<2x8x32xf32>
    %430 = arith.addf %20, %429 : vector<2x8x32xf32>
    %431 = math.tanh %430 : vector<2x8x32xf32>
    %432 = vector.shape_cast %5 : vector<1x32xf32> to vector<1x1x32xf32>
    %433 = vector.broadcast %432 : vector<1x1x32xf32> to vector<2x8x32xf32>
    %434 = arith.mulf %431, %433 : vector<2x8x32xf32>
    %cst_85 = arith.constant dense<0.000000e+00> : vector<2x8xf32>
    %435 = vector.multi_reduction <add>, %434, %cst_85 [2] : vector<2x8x32xf32> to vector<2x8xf32>
    %436 = vector.shape_cast %435 : vector<2x8xf32> to vector<2x8x1xf32>
    %cst_86 = arith.constant dense<0xFF800000> : vector<2x1xf32>
    %437 = vector.multi_reduction <maximumf>, %436, %cst_86 [1] : vector<2x8x1xf32> to vector<2x1xf32>
    %438 = vector.shape_cast %437 : vector<2x1xf32> to vector<2x1x1xf32>
    %439 = vector.broadcast %438 : vector<2x1x1xf32> to vector<2x8x1xf32>
    %440 = arith.subf %436, %439 : vector<2x8x1xf32>
    %441 = math.exp %440 : vector<2x8x1xf32>
    %cst_87 = arith.constant dense<0.000000e+00> : vector<2x1xf32>
    %442 = vector.multi_reduction <add>, %441, %cst_87 [1] : vector<2x8x1xf32> to vector<2x1xf32>
    %443 = vector.shape_cast %442 : vector<2x1xf32> to vector<2x1x1xf32>
    %444 = tpu.reciprocal %443 {approx = true} : vector<2x1x1xf32> -> vector<2x1x1xf32>
    %445 = vector.broadcast %444 : vector<2x1x1xf32> to vector<2x8x1xf32>
    %446 = arith.mulf %441, %445 : vector<2x8x1xf32>
    %447 = vector.broadcast %446 : vector<2x8x1xf32> to vector<2x8x32xf32>
    %448 = arith.mulf %447, %0 : vector<2x8x32xf32>
    %cst_88 = arith.constant dense<0.000000e+00> : vector<2x32xf32>
    %449 = vector.multi_reduction <add>, %448, %cst_88 [1] : vector<2x8x32xf32> to vector<2x32xf32>
    %450 = vector.extract_strided_slice %1 {offsets = [0, 6, 0], sizes = [2, 1, 1], strides = [1, 1, 1]} : vector<2x8x1xf32> to vector<2x1x1xf32>
    %451 = vector.shape_cast %450 : vector<2x1x1xf32> to vector<2x1xf32>
    %452 = vector.broadcast %6 : vector<1x32xf32> to vector<2x32xf32>
    %453 = arith.mulf %449, %452 : vector<2x32xf32>
    %cst_89 = arith.constant dense<0.000000e+00> : vector<2xf32>
    %454 = vector.multi_reduction <add>, %453, %cst_89 [1] : vector<2x32xf32> to vector<2xf32>
    %455 = vector.shape_cast %454 : vector<2xf32> to vector<2x1xf32>
    %456 = vector.broadcast %12 : vector<1x1xf32> to vector<2x1xf32>
    %457 = arith.mulf %451, %456 : vector<2x1xf32>
    %458 = arith.addf %455, %457 : vector<2x1xf32>
    %459 = vector.broadcast %13 : vector<1x1xf32> to vector<2x1xf32>
    %460 = arith.addf %458, %459 : vector<2x1xf32>
    %461 = vector.broadcast %460 : vector<2x1xf32> to vector<2x128xf32>
    %462 = vector.broadcast %9 : vector<1x128xf32> to vector<2x128xf32>
    %463 = arith.mulf %461, %462 : vector<2x128xf32>
    %464 = arith.addf %463, %427 : vector<2x128xf32>
    %465 = vector.broadcast %10 : vector<1x128xf32> to vector<2x128xf32>
    %466 = arith.addf %464, %465 : vector<2x128xf32>
    %467 = vector.extract_strided_slice %466 {offsets = [0, 0], sizes = [2, 32], strides = [1, 1]} : vector<2x128xf32> to vector<2x32xf32>
    %468 = arith.negf %467 : vector<2x32xf32>
    %469 = math.exp %468 : vector<2x32xf32>
    %cst_90 = arith.constant 1.000000e+00 : f32
    %470 = vector.broadcast %cst_90 : f32 to vector<2x32xf32>
    %471 = arith.addf %470, %469 : vector<2x32xf32>
    %472 = arith.divf %470, %471 : vector<2x32xf32>
    %473 = vector.extract_strided_slice %466 {offsets = [0, 32], sizes = [2, 32], strides = [1, 1]} : vector<2x128xf32> to vector<2x32xf32>
    %474 = arith.negf %473 : vector<2x32xf32>
    %475 = math.exp %474 : vector<2x32xf32>
    %cst_91 = arith.constant 1.000000e+00 : f32
    %476 = vector.broadcast %cst_91 : f32 to vector<2x32xf32>
    %477 = arith.addf %476, %475 : vector<2x32xf32>
    %478 = arith.divf %476, %477 : vector<2x32xf32>
    %479 = vector.extract_strided_slice %466 {offsets = [0, 64], sizes = [2, 32], strides = [1, 1]} : vector<2x128xf32> to vector<2x32xf32>
    %480 = math.tanh %479 : vector<2x32xf32>
    %481 = vector.extract_strided_slice %466 {offsets = [0, 96], sizes = [2, 32], strides = [1, 1]} : vector<2x128xf32> to vector<2x32xf32>
    %482 = arith.negf %481 : vector<2x32xf32>
    %483 = math.exp %482 : vector<2x32xf32>
    %cst_92 = arith.constant 1.000000e+00 : f32
    %484 = vector.broadcast %cst_92 : f32 to vector<2x32xf32>
    %485 = arith.addf %484, %483 : vector<2x32xf32>
    %486 = arith.divf %484, %485 : vector<2x32xf32>
    %487 = arith.mulf %478, %422 : vector<2x32xf32>
    %488 = arith.mulf %472, %480 : vector<2x32xf32>
    %489 = arith.addf %487, %488 : vector<2x32xf32>
    %490 = math.tanh %489 : vector<2x32xf32>
    %491 = arith.mulf %486, %490 : vector<2x32xf32>
    %492 = tpu.concatenate %491, %489 in 1 : vector<2x32xf32>, vector<2x32xf32> -> vector<2x64xf32>
    %cst_93 = arith.constant dense<0.000000e+00> : vector<2x32xf32>
    %493 = tpu.matmul %492, %2, %cst_93 {dimension_numbers = #tpu.dot_dimension_numbers<[1], [0], [0], [1], [0, 0, 1, 1], [], []>} : vector<2x64xf32>, vector<64x32xf32>, vector<2x32xf32> -> vector<2x32xf32>
    %cst_94 = arith.constant dense<0.000000e+00> : vector<2x128xf32>
    %494 = tpu.matmul %491, %8, %cst_94 {dimension_numbers = #tpu.dot_dimension_numbers<[1], [0], [0], [1], [0, 0, 1, 1], [], []>} : vector<2x32xf32>, vector<32x128xf32>, vector<2x128xf32> -> vector<2x128xf32>
    %495 = vector.shape_cast %493 : vector<2x32xf32> to vector<2x1x32xf32>
    %496 = vector.broadcast %495 : vector<2x1x32xf32> to vector<2x8x32xf32>
    %497 = arith.addf %20, %496 : vector<2x8x32xf32>
    %498 = math.tanh %497 : vector<2x8x32xf32>
    %499 = vector.shape_cast %5 : vector<1x32xf32> to vector<1x1x32xf32>
    %500 = vector.broadcast %499 : vector<1x1x32xf32> to vector<2x8x32xf32>
    %501 = arith.mulf %498, %500 : vector<2x8x32xf32>
    %cst_95 = arith.constant dense<0.000000e+00> : vector<2x8xf32>
    %502 = vector.multi_reduction <add>, %501, %cst_95 [2] : vector<2x8x32xf32> to vector<2x8xf32>
    %503 = vector.shape_cast %502 : vector<2x8xf32> to vector<2x8x1xf32>
    %cst_96 = arith.constant dense<0xFF800000> : vector<2x1xf32>
    %504 = vector.multi_reduction <maximumf>, %503, %cst_96 [1] : vector<2x8x1xf32> to vector<2x1xf32>
    %505 = vector.shape_cast %504 : vector<2x1xf32> to vector<2x1x1xf32>
    %506 = vector.broadcast %505 : vector<2x1x1xf32> to vector<2x8x1xf32>
    %507 = arith.subf %503, %506 : vector<2x8x1xf32>
    %508 = math.exp %507 : vector<2x8x1xf32>
    %cst_97 = arith.constant dense<0.000000e+00> : vector<2x1xf32>
    %509 = vector.multi_reduction <add>, %508, %cst_97 [1] : vector<2x8x1xf32> to vector<2x1xf32>
    %510 = vector.shape_cast %509 : vector<2x1xf32> to vector<2x1x1xf32>
    %511 = tpu.reciprocal %510 {approx = true} : vector<2x1x1xf32> -> vector<2x1x1xf32>
    %512 = vector.broadcast %511 : vector<2x1x1xf32> to vector<2x8x1xf32>
    %513 = arith.mulf %508, %512 : vector<2x8x1xf32>
    %514 = vector.broadcast %513 : vector<2x8x1xf32> to vector<2x8x32xf32>
    %515 = arith.mulf %514, %0 : vector<2x8x32xf32>
    %cst_98 = arith.constant dense<0.000000e+00> : vector<2x32xf32>
    %516 = vector.multi_reduction <add>, %515, %cst_98 [1] : vector<2x8x32xf32> to vector<2x32xf32>
    %517 = vector.extract_strided_slice %1 {offsets = [0, 7, 0], sizes = [2, 1, 1], strides = [1, 1, 1]} : vector<2x8x1xf32> to vector<2x1x1xf32>
    %518 = vector.shape_cast %517 : vector<2x1x1xf32> to vector<2x1xf32>
    %519 = vector.broadcast %6 : vector<1x32xf32> to vector<2x32xf32>
    %520 = arith.mulf %516, %519 : vector<2x32xf32>
    %cst_99 = arith.constant dense<0.000000e+00> : vector<2xf32>
    %521 = vector.multi_reduction <add>, %520, %cst_99 [1] : vector<2x32xf32> to vector<2xf32>
    %522 = vector.shape_cast %521 : vector<2xf32> to vector<2x1xf32>
    %523 = vector.broadcast %12 : vector<1x1xf32> to vector<2x1xf32>
    %524 = arith.mulf %518, %523 : vector<2x1xf32>
    %525 = arith.addf %522, %524 : vector<2x1xf32>
    %526 = vector.broadcast %13 : vector<1x1xf32> to vector<2x1xf32>
    %527 = arith.addf %525, %526 : vector<2x1xf32>
    %528 = vector.broadcast %527 : vector<2x1xf32> to vector<2x128xf32>
    %529 = vector.broadcast %9 : vector<1x128xf32> to vector<2x128xf32>
    %530 = arith.mulf %528, %529 : vector<2x128xf32>
    %531 = arith.addf %530, %494 : vector<2x128xf32>
    %532 = vector.broadcast %10 : vector<1x128xf32> to vector<2x128xf32>
    %533 = arith.addf %531, %532 : vector<2x128xf32>
    %534 = vector.extract_strided_slice %533 {offsets = [0, 0], sizes = [2, 32], strides = [1, 1]} : vector<2x128xf32> to vector<2x32xf32>
    %535 = arith.negf %534 : vector<2x32xf32>
    %536 = math.exp %535 : vector<2x32xf32>
    %cst_100 = arith.constant 1.000000e+00 : f32
    %537 = vector.broadcast %cst_100 : f32 to vector<2x32xf32>
    %538 = arith.addf %537, %536 : vector<2x32xf32>
    %539 = arith.divf %537, %538 : vector<2x32xf32>
    %540 = vector.extract_strided_slice %533 {offsets = [0, 32], sizes = [2, 32], strides = [1, 1]} : vector<2x128xf32> to vector<2x32xf32>
    %541 = arith.negf %540 : vector<2x32xf32>
    %542 = math.exp %541 : vector<2x32xf32>
    %cst_101 = arith.constant 1.000000e+00 : f32
    %543 = vector.broadcast %cst_101 : f32 to vector<2x32xf32>
    %544 = arith.addf %543, %542 : vector<2x32xf32>
    %545 = arith.divf %543, %544 : vector<2x32xf32>
    %546 = vector.extract_strided_slice %533 {offsets = [0, 64], sizes = [2, 32], strides = [1, 1]} : vector<2x128xf32> to vector<2x32xf32>
    %547 = math.tanh %546 : vector<2x32xf32>
    %548 = vector.extract_strided_slice %533 {offsets = [0, 96], sizes = [2, 32], strides = [1, 1]} : vector<2x128xf32> to vector<2x32xf32>
    %549 = arith.negf %548 : vector<2x32xf32>
    %550 = math.exp %549 : vector<2x32xf32>
    %cst_102 = arith.constant 1.000000e+00 : f32
    %551 = vector.broadcast %cst_102 : f32 to vector<2x32xf32>
    %552 = arith.addf %551, %550 : vector<2x32xf32>
    %553 = arith.divf %551, %552 : vector<2x32xf32>
    %554 = arith.mulf %545, %489 : vector<2x32xf32>
    %555 = arith.mulf %539, %547 : vector<2x32xf32>
    %556 = arith.addf %554, %555 : vector<2x32xf32>
    %557 = math.tanh %556 : vector<2x32xf32>
    %558 = arith.mulf %553, %557 : vector<2x32xf32>
    %559 = vector.broadcast %11 : vector<1x32xf32> to vector<2x32xf32>
    %560 = arith.mulf %558, %559 : vector<2x32xf32>
    %cst_103 = arith.constant dense<0.000000e+00> : vector<2xf32>
    %561 = vector.multi_reduction <add>, %560, %cst_103 [1] : vector<2x32xf32> to vector<2xf32>
    %562 = vector.shape_cast %561 : vector<2xf32> to vector<2x1xf32>
    %563 = vector.broadcast %7 : vector<1x32xf32> to vector<2x32xf32>
    %564 = arith.mulf %516, %563 : vector<2x32xf32>
    %cst_104 = arith.constant dense<0.000000e+00> : vector<2xf32>
    %565 = vector.multi_reduction <add>, %564, %cst_104 [1] : vector<2x32xf32> to vector<2xf32>
    %566 = vector.shape_cast %565 : vector<2xf32> to vector<2x1xf32>
    %567 = arith.addf %562, %566 : vector<2x1xf32>
    %568 = vector.broadcast %14 : vector<1x1xf32> to vector<2x1xf32>
    %569 = arith.addf %567, %568 : vector<2x1xf32>
    %570 = vector.shape_cast %569 : vector<2x1xf32> to vector<2x1x1xf32>
    %c0_105 = arith.constant 0 : index
    %c0_106 = arith.constant 0 : index
    %c0_107 = arith.constant 0 : index
    %571 = vector.load %arg6[%c0_105, %c0_106, %c0_107] : memref<2x1x1xf32, #tpu.memory_space<vmem>>, vector<2x1x1xf32>
    tpu.vector_store %arg6[%c0_105, %c0_106, %c0_107], %570 {strides = array<i32>} : memref<2x1x1xf32, #tpu.memory_space<vmem>>, vector<2x1x1xf32>,
    return
  }
  func.func @transform_0(%arg0: i32) -> (i32, i32, i32) {
    %c0_i32 = arith.constant 0 : i32
    %c0_i32_0 = arith.constant 0 : i32
    %c0_i32_1 = arith.constant 0 : i32
    return %arg0, %c0_i32, %c0_i32_0 : i32, i32, i32
  }
  func.func @transform_1(%arg0: i32) -> (i32, i32, i32) {
    %c0_i32 = arith.constant 0 : i32
    %c0_i32_0 = arith.constant 0 : i32
    %c0_i32_1 = arith.constant 0 : i32
    return %arg0, %c0_i32, %c0_i32_0 : i32, i32, i32
  }
  func.func @transform_2(%arg0: i32) -> (i32, i32) {
    %c0_i32 = arith.constant 0 : i32
    %c0_i32_0 = arith.constant 0 : i32
    %c0_i32_1 = arith.constant 0 : i32
    return %c0_i32, %c0_i32_0 : i32, i32
  }
  func.func @transform_3(%arg0: i32) -> (i32, i32) {
    %c0_i32 = arith.constant 0 : i32
    %c0_i32_0 = arith.constant 0 : i32
    %c0_i32_1 = arith.constant 0 : i32
    return %c0_i32, %c0_i32_0 : i32, i32
  }
  func.func @transform_4(%arg0: i32) -> (i32, i32) {
    %c0_i32 = arith.constant 0 : i32
    %c0_i32_0 = arith.constant 0 : i32
    %c0_i32_1 = arith.constant 0 : i32
    return %c0_i32, %c0_i32_0 : i32, i32
  }
  func.func @transform_5(%arg0: i32) -> (i32, i32, i32) {
    %c0_i32 = arith.constant 0 : i32
    %c0_i32_0 = arith.constant 0 : i32
    %c0_i32_1 = arith.constant 0 : i32
    return %arg0, %c0_i32, %c0_i32_0 : i32, i32, i32
  }
}

</mosaic_0001>

<llo_original>
// kernel: tpu_custom_call.1
$region0: #{tpu_custom_call.1}
  #allocation0 [shape = 'u32[]', space=smem, size = 0x4, offset = 0x4, fixed_abs, tag = 'smem constant byte address 0x4 - core index']
  #allocation1 [shape = 'u32[144,128]{1,0:T(1,128)}', space=vmem, size = 0x12000, scoped, tag = 'internal scratch']
  %s0 = inlined_call_operand.vmem [shape: f32[2,8,32], index: 0, kind: input, shape index: {}]
  %s1 = inlined_call_operand.vmem [shape: f32[2,8,1], index: 1, kind: input, shape index: {}]
  %s2 = inlined_call_operand.vmem [shape: f32[100,32], index: 2, kind: input, shape index: {}]
  %s3 = inlined_call_operand.vmem [shape: f32[34,128], index: 3, kind: input, shape index: {}]
  %s4 = inlined_call_operand.vmem [shape: f32[4,32], index: 4, kind: input, shape index: {}]
  %s5 = inlined_call_operand.vmem [shape: f32[2,1,1], index: 5, kind: output, shape index: {}]
  %s6 = sld [smem:[#allocation0]]
  $region30: #{tpu_custom_call.1} parent=0
    _
  %s8 = ssub.s32 1, %s6
  %s9 = scalar_select 0, %s8, %s6
  // Predicated region
  $region2: #{tpu_custom_call.1} parent=0 // pred_check
    _
  $region3: #{tpu_custom_call.1} parent=0 // pred_check_branch
    %11 = sbr.rel (0) target = $region5
  $region4: #{tpu_custom_call.1} parent=0 // pred_region
    _
  $region5: #{tpu_custom_call.1} parent=0 // pred_fallthru
    _
  // Predicated region
  $region6: #{tpu_custom_call.1} parent=0 // pred_check
    _
  $region7: #{tpu_custom_call.1} parent=0 // pred_check_branch
    %13 = sbr.rel (0) target = $region9
  $region8: #{tpu_custom_call.1} parent=0 // pred_region
    _
  $region9: #{tpu_custom_call.1} parent=0 // pred_fallthru
    _
  // Predicated region
  $region10: #{tpu_custom_call.1} parent=0 // pred_check
    _
  $region11: #{tpu_custom_call.1} parent=0 // pred_check_branch
    %15 = sbr.rel (0) target = $region13
  $region12: #{tpu_custom_call.1} parent=0 // pred_region
    _
  $region13: #{tpu_custom_call.1} parent=0 // pred_fallthru
    _
  // Predicated region
  $region14: #{tpu_custom_call.1} parent=0 // pred_check
    _
  $region15: #{tpu_custom_call.1} parent=0 // pred_check_branch
    %17 = sbr.rel (0) target = $region17
  $region16: #{tpu_custom_call.1} parent=0 // pred_region
    _
  $region17: #{tpu_custom_call.1} parent=0 // pred_fallthru
    _
  // Predicated region
  $region18: #{tpu_custom_call.1} parent=0 // pred_check
    _
  $region19: #{tpu_custom_call.1} parent=0 // pred_check_branch
    %19 = sbr.rel (0) target = $region21
  $region20: #{tpu_custom_call.1} parent=0 // pred_region
    _
  $region21: #{tpu_custom_call.1} parent=0 // pred_fallthru
    _
  %v20 = vld [vmem:[%s0] sm:$0xff]
  %v21 = vld [vmem:[%s0 + $0x8] sm:$0xff]
  %v22 = vld [vmem:[%s1] sm:$0xff]
  %v23 = vld [vmem:[%s1 + $0x8] sm:$0xff]
  %v24 = vld [vmem:[%s2] sm:$0xff]
  %v25 = vld [vmem:[%s2 + $0x8] sm:$0xff]
  %v26 = vld [vmem:[%s2 + $0x10] sm:$0xff]
  %v27 = vld [vmem:[%s2 + $0x18] sm:$0xff]
  %v28 = vld [vmem:[%s2 + $0x20] sm:$0xff]
  %v29 = vld [vmem:[%s2 + $0x28] sm:$0xff]
  %v30 = vld [vmem:[%s2 + $0x30] sm:$0xff]
  %v31 = vld [vmem:[%s2 + $0x38] sm:$0xff]
  %v32 = vld [vmem:[%s2 + $0x40] sm:$0xff]
  %v33 = vld [vmem:[%s2 + $0x48] sm:$0xff]
  %v34 = vld [vmem:[%s2 + $0x50] sm:$0xff]
  %v35 = vld [vmem:[%s2 + $0x58] sm:$0xff]
  %v36 = vld [vmem:[%s2 + $0x60] sm:$0x1]
  %v37 = vld [vmem:[%s2 + $0x61] sm:$0x1]
  %v38 = vld [vmem:[%s2 + $0x62] sm:$0x1]
  %v39 = vld [vmem:[%s2 + $0x63] sm:$0x1]
  %v40 = vld [vmem:[%s3] sm:$0xff]
  %v41 = vld [vmem:[%s3 + $0x8] sm:$0xff]
  %v42 = vld [vmem:[%s3 + $0x10] sm:$0xff]
  %v43 = vld [vmem:[%s3 + $0x18] sm:$0xff]
  %v44 = vld [vmem:[%s3 + $0x20] sm:$0x1]
  %v45 = vld [vmem:[%s3 + $0x21] sm:$0x1]
  %v46 = vld [vmem:[%s4] sm:$0x1]
  %v47 = vld [vmem:[%s4 + $0x1] sm:$0x1]
  %v48 = vld [vmem:[%s4 + $0x2] sm:$0x1]
  %v49 = vld [vmem:[%s4 + $0x3] sm:$0x1]
  %vm50 = vcmask 261120
  %v52 = vsel %vm50, %v20, 0
  %v55 = vsel %vm50, %v21, 0
  %57 = vmatprep.subr.mxu0 0.0
  %58 = vmatpush1.msra.mxu0 %v32
  %59 = vmatprep.subr.mxu0 0.0
  %60 = vmatpush1.msra.mxu0 %v33
  %61 = vmatprep.subr.mxu0 0.0
  %62 = vmatpush1.msra.mxu0 %v34
  %63 = vmatprep.subr.mxu0 0.0
  %64 = vmatpush1.msra.mxu0 %v35
  %65 = vmatprep.subr.mxu0 0.0
  %66 = vmatpush1.msra.mxu0 0.0
  %67 = vmatprep.subr.mxu0 0.0
  %68 = vmatpush1.msra.mxu0 0.0
  %69 = vmatprep.subr.mxu0 0.0
  %70 = vmatpush1.msra.mxu0 0.0
  %71 = vmatprep.subr.mxu0 0.0
  %72 = vmatpush1.msra.mxu0 0.0
  %73 = vmatprep.subr.mxu0 0.0
  %74 = vmatpush1.msra.mxu0 0.0
  %75 = vmatprep.subr.mxu0 0.0
  %76 = vmatpush1.msra.mxu0 0.0
  %77 = vmatprep.subr.mxu0 0.0
  %78 = vmatpush1.msra.mxu0 0.0
  %79 = vmatprep.subr.mxu0 0.0
  %80 = vmatpush1.msra.mxu0 0.0
  %81 = vmatprep.subr.mxu0 0.0
  %82 = vmatpush1.msra.mxu0 0.0
  %83 = vmatprep.subr.mxu0 0.0
  %84 = vmatpush1.msra.mxu0 0.0
  %85 = vmatprep.subr.mxu0 0.0
  %86 = vmatpush1.msra.mxu0 0.0
  %87 = vmatprep.subr.mxu0 0.0
  %88 = vmatpush1.msra.mxu0 0.0
  %89 = vmatprep.subr.mxu0 0.0
  %90 = vmatpush1.msra.mxu0 0.0
  %91 = vmatprep.subr.mxu0 0.0
  %92 = vmatpush1.msra.mxu0 0.0
  %93 = vmatprep.subr.mxu0 0.0
  %94 = vmatpush1.msra.mxu0 0.0
  %95 = vmatprep.subr.mxu0 0.0
  %96 = vmatpush1.msra.mxu0 0.0
  %97 = vmatprep.subr.mxu0 0.0
  %98 = vmatpush1.msra.mxu0 0.0
  %99 = vmatprep.subr.mxu0 0.0
  %100 = vmatpush1.msra.mxu0 0.0
  %101 = vmatprep.subr.mxu0 0.0
  %102 = vmatpush1.msra.mxu0 0.0
  %103 = vmatprep.subr.mxu0 0.0
  %104 = vmatpush1.msra.mxu0 0.0
  %105 = vmatprep.subr.mxu0 0.0
  %106 = vmatpush1.msra.mxu0 0.0
  %107 = vmatprep.subr.mxu0 0.0
  %108 = vmatpush1.msra.mxu0 0.0
  %109 = vmatprep.subr.mxu0 0.0
  %110 = vmatpush1.msra.mxu0 0.0
  %111 = vmatprep.subr.mxu0 0.0
  %112 = vmatpush1.msra.mxu0 0.0
  %113 = vmatprep.subr.mxu0 0.0
  %114 = vmatpush1.msra.mxu0 0.0
  %115 = vmatprep.subr.mxu0 0.0
  %116 = vmatpush1.msra.mxu0 0.0
  %117 = vmatprep.subr.mxu0 0.0
  %118 = vmatpush1.msra.mxu0 0.0
  %119 = vmatprep.subr.mxu0 0.0
  %120 = vmatpush1.msra.mxu0 0.0
  %121 = vmatprep.mubr.f32.mxu0 0.0
  %122 = vmatmul.mubr.f32.gmra.mrb[0].mxu0 %v52
  %v123 = vpop.f32.mrb[0].mxu0
  %v124 = vadd.f32 0.0, %v123
  %v125 = vpop.f32.mrb[0].mxu0
  %126 = vmatprep.mubr.f32.mxu0 0.0
  %127 = vmatmul.mubr.f32.gmra.mrb[0].mxu0 %v55
  %v128 = vpop.f32.mrb[0].mxu0
  %v129 = vadd.f32 0.0, %v128
  %v130 = vpop.f32.mrb[0].mxu0
  %131 = vdwg.mxu0
  %v132 = vlaneseq
  %v133 = vshrl.u32 %v132, 7
  %v134 = vsub.s32 0, %v133
  %v135 = vrot.slane %v36, %v134
  %v136 = vadd.f32 %v124, %v135
  %v137 = vadd.f32 %v129, %v135
  %vm138 = vcmask 523264
  %v140 = vsel %vm138, 0.0, 0
  %142 = vmatprep.subr.mxu0 0.0
  %143 = vmatpush1.msra.mxu0 %v24
  %144 = vmatprep.subr.mxu0 0.0
  %145 = vmatpush1.msra.mxu0 %v25
  %146 = vmatprep.subr.mxu0 0.0
  %147 = vmatpush1.msra.mxu0 %v26
  %148 = vmatprep.subr.mxu0 0.0
  %149 = vmatpush1.msra.mxu0 %v27
  %150 = vmatprep.subr.mxu0 0.0
  %151 = vmatpush1.msra.mxu0 %v28
  %152 = vmatprep.subr.mxu0 0.0
  %153 = vmatpush1.msra.mxu0 %v29
  %154 = vmatprep.subr.mxu0 0.0
  %155 = vmatpush1.msra.mxu0 %v30
  %156 = vmatprep.subr.mxu0 0.0
  %157 = vmatpush1.msra.mxu0 %v31
  %158 = vmatprep.subr.mxu0 0.0
  %159 = vmatpush1.msra.mxu0 0.0
  %160 = vmatprep.subr.mxu0 0.0
  %161 = vmatpush1.msra.mxu0 0.0
  %162 = vmatprep.subr.mxu0 0.0
  %163 = vmatpush1.msra.mxu0 0.0
  %164 = vmatprep.subr.mxu0 0.0
  %165 = vmatpush1.msra.mxu0 0.0
  %166 = vmatprep.subr.mxu0 0.0
  %167 = vmatpush1.msra.mxu0 0.0
  %168 = vmatprep.subr.mxu0 0.0
  %169 = vmatpush1.msra.mxu0 0.0
  %170 = vmatprep.subr.mxu0 0.0
  %171 = vmatpush1.msra.mxu0 0.0
  %172 = vmatprep.subr.mxu0 0.0
  %173 = vmatpush1.msra.mxu0 0.0
  %174 = vmatprep.subr.mxu0 0.0
  %175 = vmatpush1.msra.mxu0 0.0
  %176 = vmatprep.subr.mxu0 0.0
  %177 = vmatpush1.msra.mxu0 0.0
  %178 = vmatprep.subr.mxu0 0.0
  %179 = vmatpush1.msra.mxu0 0.0
  %180 = vmatprep.subr.mxu0 0.0
  %181 = vmatpush1.msra.mxu0 0.0
  %182 = vmatprep.subr.mxu0 0.0
  %183 = vmatpush1.msra.mxu0 0.0
  %184 = vmatprep.subr.mxu0 0.0
  %185 = vmatpush1.msra.mxu0 0.0
  %186 = vmatprep.subr.mxu0 0.0
  %187 = vmatpush1.msra.mxu0 0.0
  %188 = vmatprep.subr.mxu0 0.0
  %189 = vmatpush1.msra.mxu0 0.0
  %190 = vmatprep.subr.mxu0 0.0
  %191 = vmatpush1.msra.mxu0 0.0
  %192 = vmatprep.subr.mxu0 0.0
  %193 = vmatpush1.msra.mxu0 0.0
  %194 = vmatprep.subr.mxu0 0.0
  %195 = vmatpush1.msra.mxu0 0.0
  %196 = vmatprep.subr.mxu0 0.0
  %197 = vmatpush1.msra.mxu0 0.0
  %198 = vmatprep.subr.mxu0 0.0
  %199 = vmatpush1.msra.mxu0 0.0
  %200 = vmatprep.subr.mxu0 0.0
  %201 = vmatpush1.msra.mxu0 0.0
  %202 = vmatprep.subr.mxu0 0.0
  %203 = vmatpush1.msra.mxu0 0.0
  %204 = vmatprep.subr.mxu0 0.0
  %205 = vmatpush1.msra.mxu0 0.0
  %206 = vmatprep.mubr.f32.mxu0 0.0
  %207 = vmatmul.mubr.f32.gmra.mrb[0].mxu0 %v140
  %v208 = vpop.f32.mrb[0].mxu0
  %v209 = vadd.f32 0.0, %v208
  %v210 = vpop.f32.mrb[0].mxu0
  %211 = vdwg.mxu0
  %v212 = vsel %vm50, 0.0, 0
  %214 = vmatprep.subr.mxu0 0.0
  %215 = vmatpush1.msra.mxu0 %v40
  %216 = vmatprep.subr.mxu0 0.0
  %217 = vmatpush1.msra.mxu0 %v41
  %218 = vmatprep.subr.mxu0 0.0
  %219 = vmatpush1.msra.mxu0 %v42
  %220 = vmatprep.subr.mxu0 0.0
  %221 = vmatpush1.msra.mxu0 %v43
  %222 = vmatprep.subr.mxu0 0.0
  %223 = vmatpush1.msra.mxu0 0.0
  %224 = vmatprep.subr.mxu0 0.0
  %225 = vmatpush1.msra.mxu0 0.0
  %226 = vmatprep.subr.mxu0 0.0
  %227 = vmatpush1.msra.mxu0 0.0
  %228 = vmatprep.subr.mxu0 0.0
  %229 = vmatpush1.msra.mxu0 0.0
  %230 = vmatprep.subr.mxu0 0.0
  %231 = vmatpush1.msra.mxu0 0.0
  %232 = vmatprep.subr.mxu0 0.0
  %233 = vmatpush1.msra.mxu0 0.0
  %234 = vmatprep.subr.mxu0 0.0
  %235 = vmatpush1.msra.mxu0 0.0
  %236 = vmatprep.subr.mxu0 0.0
  %237 = vmatpush1.msra.mxu0 0.0
  %238 = vmatprep.subr.mxu0 0.0
  %239 = vmatpush1.msra.mxu0 0.0
  %240 = vmatprep.subr.mxu0 0.0
  %241 = vmatpush1.msra.mxu0 0.0
  %242 = vmatprep.subr.mxu0 0.0
  %243 = vmatpush1.msra.mxu0 0.0
  %244 = vmatprep.subr.mxu0 0.0
  %245 = vmatpush1.msra.mxu0 0.0
  %246 = vmatprep.subr.mxu0 0.0
  %247 = vmatpush1.msra.mxu0 0.0
  %248 = vmatprep.subr.mxu0 0.0
  %249 = vmatpush1.msra.mxu0 0.0
  %250 = vmatprep.subr.mxu0 0.0
  %251 = vmatpush1.msra.mxu0 0.0
  %252 = vmatprep.subr.mxu0 0.0
  %253 = vmatpush1.msra.mxu0 0.0
  %254 = vmatprep.subr.mxu0 0.0
  %255 = vmatpush1.msra.mxu0 0.0
  %256 = vmatprep.subr.mxu0 0.0
  %257 = vmatpush1.msra.mxu0 0.0
  %258 = vmatprep.subr.mxu0 0.0
  %259 = vmatpush1.msra.mxu0 0.0
  %260 = vmatprep.subr.mxu0 0.0
  %261 = vmatpush1.msra.mxu0 0.0
  %262 = vmatprep.subr.mxu0 0.0
  %263 = vmatpush1.msra.mxu0 0.0
  %264 = vmatprep.subr.mxu0 0.0
  %265 = vmatpush1.msra.mxu0 0.0
  %266 = vmatprep.subr.mxu0 0.0
  %267 = vmatpush1.msra.mxu0 0.0
  %268 = vmatprep.subr.mxu0 0.0
  %269 = vmatpush1.msra.mxu0 0.0
  %270 = vmatprep.subr.mxu0 0.0
  %271 = vmatpush1.msra.mxu0 0.0
  %272 = vmatprep.subr.mxu0 0.0
  %273 = vmatpush1.msra.mxu0 0.0
  %274 = vmatprep.subr.mxu0 0.0
  %275 = vmatpush1.msra.mxu0 0.0
  %276 = vmatprep.subr.mxu0 0.0
  %277 = vmatpush1.msra.mxu0 0.0
  %278 = vmatprep.mubr.f32.mxu0 0.0
  %279 = vmatmul.mubr.f32.gmra.mrb[0].mxu0 %v212
  %v280 = vpop.f32.mrb[0].mxu0
  %v281 = vadd.f32 0.0, %v280
  %v282 = vpop.f32.mrb[0].mxu0
  %283 = vdwg.mxu0
  %v286 = vunpack.c.l.s4 1966171168
  %v287 = vunpack.c.0.s8 %v286
  %v288 = vlaneseq
  %v289 = vshrl.u32 %v288, 7
  %v290 = vsub.s32 %v287, %v289
  %v291 = vrot.slane %v209, %v290
  %v292 = vcombine.high %v291, %v291
  %v294 = vunpack.c.l.s4 1966171168
  %v295 = vunpack.c.0.s8 %v294
  %v296 = vlaneseq
  %v297 = vshrl.u32 %v296, 7
  %v298 = vsub.s32 %v295, %v297
  %v299 = vrot.slane %v291, %v298
  %v301 = vunpack.c.l.s4 1966171168
  %v302 = vunpack.c.0.s8 %v301
  %v303 = vlaneseq
  %v304 = vshrl.u32 %v303, 7
  %v305 = vsub.s32 %v302, %v304
  %v306 = vrot.slane %v292, %v305
  %v307 = vlaneseq
  %v308 = vshrl.u32 %v307, 7
  %v309 = vsub.s32 0, %v308
  %v310 = vrot.slane %v299, %v309
  %v311 = vlaneseq
  %v312 = vshrl.u32 %v311, 7
  %v313 = vsub.s32 0, %v312
  %v314 = vrot.slane %v306, %v313
  %v317 = vadd.f32 %v136, %v310
  %v318 = vadd.f32 %v137, %v314
  %v319 = vtanh.pop %v317
  %v320 = vtanh.pop %v318
  %v321 = vlaneseq
  %v322 = vshrl.u32 %v321, 7
  %v323 = vsub.s32 0, %v322
  %v324 = vrot.slane %v37, %v323
  %v325 = vmul.f32 %v319, %v324
  %v326 = vmul.f32 %v320, %v324
  %v327 = vsel %vm50, %v325, 0.0
  %328 = vadd.xlane.f32.xlu0 %v327
  %v329 = vpop.xlane.xlu0 %328
  %v330 = vsel %vm50, %v326, 0.0
  %331 = vadd.xlane.f32.xlu0 %v330
  %v332 = vpop.xlane.xlu0 %331
  %v333 = vrot.slane %v329, 4
  %v334 = vmax.f32 %v329, %v333
  %v335 = vrot.slane %v334, 2
  %v336 = vmax.f32 %v334, %v335
  %v337 = vrot.slane %v336, 1
  %v338 = vmax.f32 %v336, %v337
  %v339 = vrot.slane %v332, 4
  %v340 = vmax.f32 %v332, %v339
  %v341 = vrot.slane %v340, 2
  %v342 = vmax.f32 %v340, %v341
  %v343 = vrot.slane %v342, 1
  %v344 = vmax.f32 %v342, %v343
  %v345 = vsub.f32 %v329, %v338
  %v346 = vsub.f32 %v332, %v344
  %v347 = vmul.f32 %v345, 1.442695
  %v348 = vpow.pop %v347
  %v349 = vmul.f32 %v346, 1.442695
  %v350 = vpow.pop %v349
  %v351 = vrot.slane %v348, 4
  %v352 = vadd.f32 %v348, %v351
  %v353 = vrot.slane %v352, 2
  %v354 = vadd.f32 %v352, %v353
  %v355 = vrot.slane %v354, 1
  %v356 = vadd.f32 %v354, %v355
  %v357 = vrot.slane %v350, 4
  %v358 = vadd.f32 %v350, %v357
  %v359 = vrot.slane %v358, 2
  %v360 = vadd.f32 %v358, %v359
  %v361 = vrot.slane %v360, 1
  %v362 = vadd.f32 %v360, %v361
  %v363 = vrcp.pop %v356
  %v364 = vrcp.pop %v362
  %v365 = vmul.f32 %v348, %v363
  %v366 = vmul.f32 %v350, %v364
  %v367 = vmul.f32 %v365, %v20
  %v368 = vmul.f32 %v366, %v21
  %v369 = vsel %vm50, %v367, 0.0
  %v370 = vrot.slane %v369, 4
  %v371 = vadd.f32 %v369, %v370
  %v372 = vrot.slane %v371, 2
  %v373 = vadd.f32 %v371, %v372
  %v374 = vrot.slane %v373, 1
  %v375 = vadd.f32 %v373, %v374
  %v376 = vsel %vm50, %v368, 0.0
  %v377 = vrot.slane %v376, 4
  %v378 = vadd.f32 %v376, %v377
  %v379 = vrot.slane %v378, 2
  %v380 = vadd.f32 %v378, %v379
  %v381 = vrot.slane %v380, 1
  %v382 = vadd.f32 %v380, %v381
  %v383 = vlaneseq
  %v384 = vshrl.u32 %v383, 7
  %v385 = vsub.s32 0, %v384
  %v386 = vrot.slane %v38, %v385
  %v387 = vmul.f32 %v375, %v386
  %v388 = vmul.f32 %v382, %v386
  %v391 = vrot.slane %v388, 7
  %vm392 = vcmask 1041409
  %v393 = vsel %vm392, %v391, %v387
  %vm395 = vcmask 254976
  %v396 = vsel %vm395, %v393, 0.0
  %397 = vadd.xlane.f32.xlu0 %v396
  %v398 = vpop.xlane.xlu0 %397
  %v399 = vlaneseq
  %v400 = vshrl.u32 %v399, 7
  %v401 = vsub.s32 0, %v400
  %v402 = vrot.slane %v47, %v401
  %v403 = vmul.f32 %v22, %v402
  %v404 = vmul.f32 %v23, %v402
  %v407 = vrot.slane %v404, 7
  %v408 = vsel %vm392, %v407, %v403
  %v410 = vadd.f32 %v398, %v408
  %v411 = vlaneseq
  %v412 = vshrl.u32 %v411, 7
  %v413 = vsub.s32 0, %v412
  %v414 = vrot.slane %v48, %v413
  %v415 = vadd.f32 %v410, %v414
  %417 = vset.pattern.permute.xlu0 0
  %418 = vperm.xlu0 %417, %v415
  %v419 = vpop.permute.xlu0 %418
  %v421 = vlaneseq
  %v422 = vshrl.u32 %v421, 7
  %v423 = vsub.s32 0, %v422
  %v424 = vrot.slane %v44, %v423
  %v425 = vmul.f32 %v419, %v424
  %v426 = vadd.f32 %v425, %v281
  %v427 = vlaneseq
  %v428 = vshrl.u32 %v427, 7
  %v429 = vsub.s32 0, %v428
  %v430 = vrot.slane %v45, %v429
  %v431 = vadd.f32 %v426, %v430
  %v432 = vxor.u32 %v431, 2147483648
  %v433 = vmul.f32 %v432, 1.442695
  %v434 = vpow.pop %v433
  %v435 = vadd.f32 %v434, 1.0
  %v436 = vrcp.pop %v435
  %v437 = vmul.f32 1.0, %v436
  %v438 = vtanh.pop %v431
  %v439 = vmul.f32 %v437, 0.0
  %441 = vrot.lane.b32.xlu0 %v438, 64
  %v442 = vpop.permute.xlu0 %441
  %v444 = vmul.f32 %v437, %v442
  %446 = vrot.lane.b32.xlu0 %v444, 32
  %v447 = vpop.permute.xlu0 %446
  %v449 = vadd.f32 %v439, %v447
  %v450 = vtanh.pop %v449
  %452 = vrot.lane.b32.xlu0 %v450, 64
  %v453 = vpop.permute.xlu0 %452
  %v455 = vmul.f32 %v437, %v453
  %457 = vrot.lane.b32.xlu0 %v455, 32
  %v458 = vpop.permute.xlu0 %457
  %v460 = vsel %vm50, %v458, %v449
  %v462 = vsel %vm138, %v460, 0
  %464 = vmatprep.subr.mxu0 0.0
  %465 = vmatpush1.msra.mxu0 %v24
  %466 = vmatprep.subr.mxu0 0.0
  %467 = vmatpush1.msra.mxu0 %v25
  %468 = vmatprep.subr.mxu0 0.0
  %469 = vmatpush1.msra.mxu0 %v26
  %470 = vmatprep.subr.mxu0 0.0
  %471 = vmatpush1.msra.mxu0 %v27
  %472 = vmatprep.subr.mxu0 0.0
  %473 = vmatpush1.msra.mxu0 %v28
  %474 = vmatprep.subr.mxu0 0.0
  %475 = vmatpush1.msra.mxu0 %v29
  %476 = vmatprep.subr.mxu0 0.0
  %477 = vmatpush1.msra.mxu0 %v30
  %478 = vmatprep.subr.mxu0 0.0
  %479 = vmatpush1.msra.mxu0 %v31
  %480 = vmatprep.subr.mxu0 0.0
  %481 = vmatpush1.msra.mxu0 0.0
  %482 = vmatprep.subr.mxu0 0.0
  %483 = vmatpush1.msra.mxu0 0.0
  %484 = vmatprep.subr.mxu0 0.0
  %485 = vmatpush1.msra.mxu0 0.0
  %486 = vmatprep.subr.mxu0 0.0
  %487 = vmatpush1.msra.mxu0 0.0
  %488 = vmatprep.subr.mxu0 0.0
  %489 = vmatpush1.msra.mxu0 0.0
  %490 = vmatprep.subr.mxu0 0.0
  %491 = vmatpush1.msra.mxu0 0.0
  %492 = vmatprep.subr.mxu0 0.0
  %493 = vmatpush1.msra.mxu0 0.0
  %494 = vmatprep.subr.mxu0 0.0
  %495 = vmatpush1.msra.mxu0 0.0
  %496 = vmatprep.subr.mxu0 0.0
  %497 = vmatpush1.msra.mxu0 0.0
  %498 = vmatprep.subr.mxu0 0.0
  %499 = vmatpush1.msra.mxu0 0.0
  %500 = vmatprep.subr.mxu0 0.0
  %501 = vmatpush1.msra.mxu0 0.0
  %502 = vmatprep.subr.mxu0 0.0
  %503 = vmatpush1.msra.mxu0 0.0
  %504 = vmatprep.subr.mxu0 0.0
  %505 = vmatpush1.msra.mxu0 0.0
  %506 = vmatprep.subr.mxu0 0.0
  %507 = vmatpush1.msra.mxu0 0.0
  %508 = vmatprep.subr.mxu0 0.0
  %509 = vmatpush1.msra.mxu0 0.0
  %510 = vmatprep.subr.mxu0 0.0
  %511 = vmatpush1.msra.mxu0 0.0
  %512 = vmatprep.subr.mxu0 0.0
  %513 = vmatpush1.msra.mxu0 0.0
  %514 = vmatprep.subr.mxu0 0.0
  %515 = vmatpush1.msra.mxu0 0.0
  %516 = vmatprep.subr.mxu0 0.0
  %517 = vmatpush1.msra.mxu0 0.0
  %518 = vmatprep.subr.mxu0 0.0
  %519 = vmatpush1.msra.mxu0 0.0
  %520 = vmatprep.subr.mxu0 0.0
  %521 = vmatpush1.msra.mxu0 0.0
  %522 = vmatprep.subr.mxu0 0.0
  %523 = vmatpush1.msra.mxu0 0.0
  %524 = vmatprep.subr.mxu0 0.0
  %525 = vmatpush1.msra.mxu0 0.0
  %526 = vmatprep.subr.mxu0 0.0
  %527 = vmatpush1.msra.mxu0 0.0
  %528 = vmatprep.mubr.f32.mxu0 0.0
  %529 = vmatmul.mubr.f32.gmra.mrb[0].mxu0 %v462
  %v530 = vpop.f32.mrb[0].mxu0
  %v531 = vadd.f32 0.0, %v530
  %v532 = vpop.f32.mrb[0].mxu0
  %533 = vdwg.mxu0
  %v534 = vsel %vm50, %v458, 0
  %536 = vmatprep.subr.mxu0 0.0
  %537 = vmatpush1.msra.mxu0 %v40
  %538 = vmatprep.subr.mxu0 0.0
  %539 = vmatpush1.msra.mxu0 %v41
  %540 = vmatprep.subr.mxu0 0.0
  %541 = vmatpush1.msra.mxu0 %v42
  %542 = vmatprep.subr.mxu0 0.0
  %543 = vmatpush1.msra.mxu0 %v43
  %544 = vmatprep.subr.mxu0 0.0
  %545 = vmatpush1.msra.mxu0 0.0
  %546 = vmatprep.subr.mxu0 0.0
  %547 = vmatpush1.msra.mxu0 0.0
  %548 = vmatprep.subr.mxu0 0.0
  %549 = vmatpush1.msra.mxu0 0.0
  %550 = vmatprep.subr.mxu0 0.0
  %551 = vmatpush1.msra.mxu0 0.0
  %552 = vmatprep.subr.mxu0 0.0
  %553 = vmatpush1.msra.mxu0 0.0
  %554 = vmatprep.subr.mxu0 0.0
  %555 = vmatpush1.msra.mxu0 0.0
  %556 = vmatprep.subr.mxu0 0.0
  %557 = vmatpush1.msra.mxu0 0.0
  %558 = vmatprep.subr.mxu0 0.0
  %559 = vmatpush1.msra.mxu0 0.0
  %560 = vmatprep.subr.mxu0 0.0
  %561 = vmatpush1.msra.mxu0 0.0
  %562 = vmatprep.subr.mxu0 0.0
  %563 = vmatpush1.msra.mxu0 0.0
  %564 = vmatprep.subr.mxu0 0.0
  %565 = vmatpush1.msra.mxu0 0.0
  %566 = vmatprep.subr.mxu0 0.0
  %567 = vmatpush1.msra.mxu0 0.0
  %568 = vmatprep.subr.mxu0 0.0
  %569 = vmatpush1.msra.mxu0 0.0
  %570 = vmatprep.subr.mxu0 0.0
  %571 = vmatpush1.msra.mxu0 0.0
  %572 = vmatprep.subr.mxu0 0.0
  %573 = vmatpush1.msra.mxu0 0.0
  %574 = vmatprep.subr.mxu0 0.0
  %575 = vmatpush1.msra.mxu0 0.0
  %576 = vmatprep.subr.mxu0 0.0
  %577 = vmatpush1.msra.mxu0 0.0
  %578 = vmatprep.subr.mxu0 0.0
  %579 = vmatpush1.msra.mxu0 0.0
  %580 = vmatprep.subr.mxu0 0.0
  %581 = vmatpush1.msra.mxu0 0.0
  %582 = vmatprep.subr.mxu0 0.0
  %583 = vmatpush1.msra.mxu0 0.0
  %584 = vmatprep.subr.mxu0 0.0
  %585 = vmatpush1.msra.mxu0 0.0
  %586 = vmatprep.subr.mxu0 0.0
  %587 = vmatpush1.msra.mxu0 0.0
  %588 = vmatprep.subr.mxu0 0.0
  %589 = vmatpush1.msra.mxu0 0.0
  %590 = vmatprep.subr.mxu0 0.0
  %591 = vmatpush1.msra.mxu0 0.0
  %592 = vmatprep.subr.mxu0 0.0
  %593 = vmatpush1.msra.mxu0 0.0
  %594 = vmatprep.subr.mxu0 0.0
  %595 = vmatpush1.msra.mxu0 0.0
  %596 = vmatprep.subr.mxu0 0.0
  %597 = vmatpush1.msra.mxu0 0.0
  %598 = vmatprep.subr.mxu0 0.0
  %599 = vmatpush1.msra.mxu0 0.0
  %600 = vmatprep.mubr.f32.mxu0 0.0
  %601 = vmatmul.mubr.f32.gmra.mrb[0].mxu0 %v534
  %v602 = vpop.f32.mrb[0].mxu0
  %v603 = vadd.f32 0.0, %v602
  %v604 = vpop.f32.mrb[0].mxu0
  %605 = vdwg.mxu0
  %v608 = vunpack.c.l.s4 1966171168
  %v609 = vunpack.c.0.s8 %v608
  %v610 = vlaneseq
  %v611 = vshrl.u32 %v610, 7
  %v612 = vsub.s32 %v609, %v611
  %v613 = vrot.slane %v531, %v612
  %v614 = vcombine.high %v613, %v613
  %v616 = vunpack.c.l.s4 1966171168
  %v617 = vunpack.c.0.s8 %v616
  %v618 = vlaneseq
  %v619 = vshrl.u32 %v618, 7
  %v620 = vsub.s32 %v617, %v619
  %v621 = vrot.slane %v613, %v620
  %v623 = vunpack.c.l.s4 1966171168
  %v624 = vunpack.c.0.s8 %v623
  %v625 = vlaneseq
  %v626 = vshrl.u32 %v625, 7
  %v627 = vsub.s32 %v624, %v626
  %v628 = vrot.slane %v614, %v627
  %v629 = vlaneseq
  %v630 = vshrl.u32 %v629, 7
  %v631 = vsub.s32 0, %v630
  %v632 = vrot.slane %v621, %v631
  %v633 = vlaneseq
  %v634 = vshrl.u32 %v633, 7
  %v635 = vsub.s32 0, %v634
  %v636 = vrot.slane %v628, %v635
  %v639 = vadd.f32 %v136, %v632
  %v640 = vadd.f32 %v137, %v636
  %v641 = vtanh.pop %v639
  %v642 = vtanh.pop %v640
  %v643 = vmul.f32 %v641, %v324
  %v644 = vmul.f32 %v642, %v324
  %v645 = vsel %vm50, %v643, 0.0
  %646 = vadd.xlane.f32.xlu0 %v645
  %v647 = vpop.xlane.xlu0 %646
  %v648 = vsel %vm50, %v644, 0.0
  %649 = vadd.xlane.f32.xlu0 %v648
  %v650 = vpop.xlane.xlu0 %649
  %v651 = vrot.slane %v647, 4
  %v652 = vmax.f32 %v647, %v651
  %v653 = vrot.slane %v652, 2
  %v654 = vmax.f32 %v652, %v653
  %v655 = vrot.slane %v654, 1
  %v656 = vmax.f32 %v654, %v655
  %v657 = vrot.slane %v650, 4
  %v658 = vmax.f32 %v650, %v657
  %v659 = vrot.slane %v658, 2
  %v660 = vmax.f32 %v658, %v659
  %v661 = vrot.slane %v660, 1
  %v662 = vmax.f32 %v660, %v661
  %v663 = vsub.f32 %v647, %v656
  %v664 = vsub.f32 %v650, %v662
  %v665 = vmul.f32 %v663, 1.442695
  %v666 = vpow.pop %v665
  %v667 = vmul.f32 %v664, 1.442695
  %v668 = vpow.pop %v667
  %v669 = vrot.slane %v666, 4
  %v670 = vadd.f32 %v666, %v669
  %v671 = vrot.slane %v670, 2
  %v672 = vadd.f32 %v670, %v671
  %v673 = vrot.slane %v672, 1
  %v674 = vadd.f32 %v672, %v673
  %v675 = vrot.slane %v668, 4
  %v676 = vadd.f32 %v668, %v675
  %v677 = vrot.slane %v676, 2
  %v678 = vadd.f32 %v676, %v677
  %v679 = vrot.slane %v678, 1
  %v680 = vadd.f32 %v678, %v679
  %v681 = vrcp.pop %v674
  %v682 = vrcp.pop %v680
  %v683 = vmul.f32 %v666, %v681
  %v684 = vmul.f32 %v668, %v682
  %v685 = vmul.f32 %v683, %v20
  %v686 = vmul.f32 %v684, %v21
  %v687 = vsel %vm50, %v685, 0.0
  %v688 = vrot.slane %v687, 4
  %v689 = vadd.f32 %v687, %v688
  %v690 = vrot.slane %v689, 2
  %v691 = vadd.f32 %v689, %v690
  %v692 = vrot.slane %v691, 1
  %v693 = vadd.f32 %v691, %v692
  %v694 = vsel %vm50, %v686, 0.0
  %v695 = vrot.slane %v694, 4
  %v696 = vadd.f32 %v694, %v695
  %v697 = vrot.slane %v696, 2
  %v698 = vadd.f32 %v696, %v697
  %v699 = vrot.slane %v698, 1
  %v700 = vadd.f32 %v698, %v699
  %v701 = vmul.f32 %v693, %v386
  %v702 = vmul.f32 %v700, %v386
  %v705 = vrot.slane %v702, 7
  %v706 = vsel %vm392, %v705, %v701
  %v708 = vsel %vm395, %v706, 0.0
  %709 = vadd.xlane.f32.xlu0 %v708
  %v710 = vpop.xlane.xlu0 %709
  %v711 = vrot.slane %v403, 1
  %v712 = vsel %vm392, %v404, %v711
  %v714 = vadd.f32 %v710, %v712
  %v715 = vadd.f32 %v714, %v414
  %717 = vset.pattern.permute.xlu0 0
  %718 = vperm.xlu0 %717, %v715
  %v719 = vpop.permute.xlu0 %718
  %v721 = vmul.f32 %v719, %v424
  %v722 = vadd.f32 %v721, %v603
  %v723 = vadd.f32 %v722, %v430
  %v724 = vxor.u32 %v723, 2147483648
  %v725 = vmul.f32 %v724, 1.442695
  %v726 = vpow.pop %v725
  %v727 = vadd.f32 %v726, 1.0
  %v728 = vrcp.pop %v727
  %v729 = vmul.f32 1.0, %v728
  %v730 = vtanh.pop %v723
  %v731 = vmul.f32 %v729, %v449
  %733 = vrot.lane.b32.xlu0 %v730, 64
  %v734 = vpop.permute.xlu0 %733
  %v736 = vmul.f32 %v729, %v734
  %738 = vrot.lane.b32.xlu0 %v736, 32
  %v739 = vpop.permute.xlu0 %738
  %v741 = vadd.f32 %v731, %v739
  %v742 = vtanh.pop %v741
  %744 = vrot.lane.b32.xlu0 %v742, 64
  %v745 = vpop.permute.xlu0 %744
  %v747 = vmul.f32 %v729, %v745
  %749 = vrot.lane.b32.xlu0 %v747, 32
  %v750 = vpop.permute.xlu0 %749
  %v752 = vsel %vm50, %v750, %v741
  %v754 = vsel %vm138, %v752, 0
  %756 = vmatprep.subr.mxu0 0.0
  %757 = vmatpush1.msra.mxu0 %v24
  %758 = vmatprep.subr.mxu0 0.0
  %759 = vmatpush1.msra.mxu0 %v25
  %760 = vmatprep.subr.mxu0 0.0
  %761 = vmatpush1.msra.mxu0 %v26
  %762 = vmatprep.subr.mxu0 0.0
  %763 = vmatpush1.msra.mxu0 %v27
  %764 = vmatprep.subr.mxu0 0.0
  %765 = vmatpush1.msra.mxu0 %v28
  %766 = vmatprep.subr.mxu0 0.0
  %767 = vmatpush1.msra.mxu0 %v29
  %768 = vmatprep.subr.mxu0 0.0
  %769 = vmatpush1.msra.mxu0 %v30
  %770 = vmatprep.subr.mxu0 0.0
  %771 = vmatpush1.msra.mxu0 %v31
  %772 = vmatprep.subr.mxu0 0.0
  %773 = vmatpush1.msra.mxu0 0.0
  %774 = vmatprep.subr.mxu0 0.0
  %775 = vmatpush1.msra.mxu0 0.0
  %776 = vmatprep.subr.mxu0 0.0
  %777 = vmatpush1.msra.mxu0 0.0
  %778 = vmatprep.subr.mxu0 0.0
  %779 = vmatpush1.msra.mxu0 0.0
  %780 = vmatprep.subr.mxu0 0.0
  %781 = vmatpush1.msra.mxu0 0.0
  %782 = vmatprep.subr.mxu0 0.0
  %783 = vmatpush1.msra.mxu0 0.0
  %784 = vmatprep.subr.mxu0 0.0
  %785 = vmatpush1.msra.mxu0 0.0
  %786 = vmatprep.subr.mxu0 0.0
  %787 = vmatpush1.msra.mxu0 0.0
  %788 = vmatprep.subr.mxu0 0.0
  %789 = vmatpush1.msra.mxu0 0.0
  %790 = vmatprep.subr.mxu0 0.0
  %791 = vmatpush1.msra.mxu0 0.0
  %792 = vmatprep.subr.mxu0 0.0
  %793 = vmatpush1.msra.mxu0 0.0
  %794 = vmatprep.subr.mxu0 0.0
  %795 = vmatpush1.msra.mxu0 0.0
  %796 = vmatprep.subr.mxu0 0.0
  %797 = vmatpush1.msra.mxu0 0.0
  %798 = vmatprep.subr.mxu0 0.0
  %799 = vmatpush1.msra.mxu0 0.0
  %800 = vmatprep.subr.mxu0 0.0
  %801 = vmatpush1.msra.mxu0 0.0
  %802 = vmatprep.subr.mxu0 0.0
  %803 = vmatpush1.msra.mxu0 0.0
  %804 = vmatprep.subr.mxu0 0.0
  %805 = vmatpush1.msra.mxu0 0.0
  %806 = vmatprep.subr.mxu0 0.0
  %807 = vmatpush1.msra.mxu0 0.0
  %808 = vmatprep.subr.mxu0 0.0
  %809 = vmatpush1.msra.mxu0 0.0
  %810 = vmatprep.subr.mxu0 0.0
  %811 = vmatpush1.msra.mxu0 0.0
  %812 = vmatprep.subr.mxu0 0.0
  %813 = vmatpush1.msra.mxu0 0.0
  %814 = vmatprep.subr.mxu0 0.0
  %815 = vmatpush1.msra.mxu0 0.0
  %816 = vmatprep.subr.mxu0 0.0
  %817 = vmatpush1.msra.mxu0 0.0
  %818 = vmatprep.subr.mxu0 0.0
  %819 = vmatpush1.msra.mxu0 0.0
  %820 = vmatprep.mubr.f32.mxu0 0.0
  %821 = vmatmul.mubr.f32.gmra.mrb[0].mxu0 %v754
  %v822 = vpop.f32.mrb[0].mxu0
  %v823 = vadd.f32 0.0, %v822
  %v824 = vpop.f32.mrb[0].mxu0
  %825 = vdwg.mxu0
  %v826 = vsel %vm50, %v750, 0
  %828 = vmatprep.subr.mxu0 0.0
  %829 = vmatpush1.msra.mxu0 %v40
  %830 = vmatprep.subr.mxu0 0.0
  %831 = vmatpush1.msra.mxu0 %v41
  %832 = vmatprep.subr.mxu0 0.0
  %833 = vmatpush1.msra.mxu0 %v42
  %834 = vmatprep.subr.mxu0 0.0
  %835 = vmatpush1.msra.mxu0 %v43
  %836 = vmatprep.subr.mxu0 0.0
  %837 = vmatpush1.msra.mxu0 0.0
  %838 = vmatprep.subr.mxu0 0.0
  %839 = vmatpush1.msra.mxu0 0.0
  %840 = vmatprep.subr.mxu0 0.0
  %841 = vmatpush1.msra.mxu0 0.0
  %842 = vmatprep.subr.mxu0 0.0
  %843 = vmatpush1.msra.mxu0 0.0
  %844 = vmatprep.subr.mxu0 0.0
  %845 = vmatpush1.msra.mxu0 0.0
  %846 = vmatprep.subr.mxu0 0.0
  %847 = vmatpush1.msra.mxu0 0.0
  %848 = vmatprep.subr.mxu0 0.0
  %849 = vmatpush1.msra.mxu0 0.0
  %850 = vmatprep.subr.mxu0 0.0
  %851 = vmatpush1.msra.mxu0 0.0
  %852 = vmatprep.subr.mxu0 0.0
  %853 = vmatpush1.msra.mxu0 0.0
  %854 = vmatprep.subr.mxu0 0.0
  %855 = vmatpush1.msra.mxu0 0.0
  %856 = vmatprep.subr.mxu0 0.0
  %857 = vmatpush1.msra.mxu0 0.0
  %858 = vmatprep.subr.mxu0 0.0
  %859 = vmatpush1.msra.mxu0 0.0
  %860 = vmatprep.subr.mxu0 0.0
  %861 = vmatpush1.msra.mxu0 0.0
  %862 = vmatprep.subr.mxu0 0.0
  %863 = vmatpush1.msra.mxu0 0.0
  %864 = vmatprep.subr.mxu0 0.0
  %865 = vmatpush1.msra.mxu0 0.0
  %866 = vmatprep.subr.mxu0 0.0
  %867 = vmatpush1.msra.mxu0 0.0
  %868 = vmatprep.subr.mxu0 0.0
  %869 = vmatpush1.msra.mxu0 0.0
  %870 = vmatprep.subr.mxu0 0.0
  %871 = vmatpush1.msra.mxu0 0.0
  %872 = vmatprep.subr.mxu0 0.0
  %873 = vmatpush1.msra.mxu0 0.0
  %874 = vmatprep.subr.mxu0 0.0
  %875 = vmatpush1.msra.mxu0 0.0
  %876 = vmatprep.subr.mxu0 0.0
  %877 = vmatpush1.msra.mxu0 0.0
  %878 = vmatprep.subr.mxu0 0.0
  %879 = vmatpush1.msra.mxu0 0.0
  %880 = vmatprep.subr.mxu0 0.0
  %881 = vmatpush1.msra.mxu0 0.0
  %882 = vmatprep.subr.mxu0 0.0
  %883 = vmatpush1.msra.mxu0 0.0
  %884 = vmatprep.subr.mxu0 0.0
  %885 = vmatpush1.msra.mxu0 0.0
  %886 = vmatprep.subr.mxu0 0.0
  %887 = vmatpush1.msra.mxu0 0.0
  %888 = vmatprep.subr.mxu0 0.0
  %889 = vmatpush1.msra.mxu0 0.0
  %890 = vmatprep.subr.mxu0 0.0
  %891 = vmatpush1.msra.mxu0 0.0
  %892 = vmatprep.mubr.f32.mxu0 0.0
  %893 = vmatmul.mubr.f32.gmra.mrb[0].mxu0 %v826
  %v894 = vpop.f32.mrb[0].mxu0
  %v895 = vadd.f32 0.0, %v894
  %v896 = vpop.f32.mrb[0].mxu0
  %897 = vdwg.mxu0
  %v900 = vunpack.c.l.s4 1966171168
  %v901 = vunpack.c.0.s8 %v900
  %v902 = vlaneseq
  %v903 = vshrl.u32 %v902, 7
  %v904 = vsub.s32 %v901, %v903
  %v905 = vrot.slane %v823, %v904
  %v906 = vcombine.high %v905, %v905
  %v908 = vunpack.c.l.s4 1966171168
  %v909 = vunpack.c.0.s8 %v908
  %v910 = vlaneseq
  %v911 = vshrl.u32 %v910, 7
  %v912 = vsub.s32 %v909, %v911
  %v913 = vrot.slane %v905, %v912
  %v915 = vunpack.c.l.s4 1966171168
  %v916 = vunpack.c.0.s8 %v915
  %v917 = vlaneseq
  %v918 = vshrl.u32 %v917, 7
  %v919 = vsub.s32 %v916, %v918
  %v920 = vrot.slane %v906, %v919
  %v921 = vlaneseq
  %v922 = vshrl.u32 %v921, 7
  %v923 = vsub.s32 0, %v922
  %v924 = vrot.slane %v913, %v923
  %v925 = vlaneseq
  %v926 = vshrl.u32 %v925, 7
  %v927 = vsub.s32 0, %v926
  %v928 = vrot.slane %v920, %v927
  %v931 = vadd.f32 %v136, %v924
  %v932 = vadd.f32 %v137, %v928
  %v933 = vtanh.pop %v931
  %v934 = vtanh.pop %v932
  %v935 = vmul.f32 %v933, %v324
  %v936 = vmul.f32 %v934, %v324
  %v937 = vsel %vm50, %v935, 0.0
  %938 = vadd.xlane.f32.xlu0 %v937
  %v939 = vpop.xlane.xlu0 %938
  %v940 = vsel %vm50, %v936, 0.0
  %941 = vadd.xlane.f32.xlu0 %v940
  %v942 = vpop.xlane.xlu0 %941
  %v943 = vrot.slane %v939, 4
  %v944 = vmax.f32 %v939, %v943
  %v945 = vrot.slane %v944, 2
  %v946 = vmax.f32 %v944, %v945
  %v947 = vrot.slane %v946, 1
  %v948 = vmax.f32 %v946, %v947
  %v949 = vrot.slane %v942, 4
  %v950 = vmax.f32 %v942, %v949
  %v951 = vrot.slane %v950, 2
  %v952 = vmax.f32 %v950, %v951
  %v953 = vrot.slane %v952, 1
  %v954 = vmax.f32 %v952, %v953
  %v955 = vsub.f32 %v939, %v948
  %v956 = vsub.f32 %v942, %v954
  %v957 = vmul.f32 %v955, 1.442695
  %v958 = vpow.pop %v957
  %v959 = vmul.f32 %v956, 1.442695
  %v960 = vpow.pop %v959
  %v961 = vrot.slane %v958, 4
  %v962 = vadd.f32 %v958, %v961
  %v963 = vrot.slane %v962, 2
  %v964 = vadd.f32 %v962, %v963
  %v965 = vrot.slane %v964, 1
  %v966 = vadd.f32 %v964, %v965
  %v967 = vrot.slane %v960, 4
  %v968 = vadd.f32 %v960, %v967
  %v969 = vrot.slane %v968, 2
  %v970 = vadd.f32 %v968, %v969
  %v971 = vrot.slane %v970, 1
  %v972 = vadd.f32 %v970, %v971
  %v973 = vrcp.pop %v966
  %v974 = vrcp.pop %v972
  %v975 = vmul.f32 %v958, %v973
  %v976 = vmul.f32 %v960, %v974
  %v977 = vmul.f32 %v975, %v20
  %v978 = vmul.f32 %v976, %v21
  %v979 = vsel %vm50, %v977, 0.0
  %v980 = vrot.slane %v979, 4
  %v981 = vadd.f32 %v979, %v980
  %v982 = vrot.slane %v981, 2
  %v983 = vadd.f32 %v981, %v982
  %v984 = vrot.slane %v983, 1
  %v985 = vadd.f32 %v983, %v984
  %v986 = vsel %vm50, %v978, 0.0
  %v987 = vrot.slane %v986, 4
  %v988 = vadd.f32 %v986, %v987
  %v989 = vrot.slane %v988, 2
  %v990 = vadd.f32 %v988, %v989
  %v991 = vrot.slane %v990, 1
  %v992 = vadd.f32 %v990, %v991
  %v993 = vmul.f32 %v985, %v386
  %v994 = vmul.f32 %v992, %v386
  %v997 = vrot.slane %v994, 7
  %v998 = vsel %vm392, %v997, %v993
  %v1000 = vsel %vm395, %v998, 0.0
  %1001 = vadd.xlane.f32.xlu0 %v1000
  %v1002 = vpop.xlane.xlu0 %1001
  %v1003 = vrot.slane %v403, 2
  %v1004 = vrot.slane %v404, 1
  %v1005 = vsel %vm392, %v1004, %v1003
  %v1007 = vadd.f32 %v1002, %v1005
  %v1008 = vadd.f32 %v1007, %v414
  %1010 = vset.pattern.permute.xlu0 0
  %1011 = vperm.xlu0 %1010, %v1008
  %v1012 = vpop.permute.xlu0 %1011
  %v1014 = vmul.f32 %v1012, %v424
  %v1015 = vadd.f32 %v1014, %v895
  %v1016 = vadd.f32 %v1015, %v430
  %v1017 = vxor.u32 %v1016, 2147483648
  %v1018 = vmul.f32 %v1017, 1.442695
  %v1019 = vpow.pop %v1018
  %v1020 = vadd.f32 %v1019, 1.0
  %v1021 = vrcp.pop %v1020
  %v1022 = vmul.f32 1.0, %v1021
  %v1023 = vtanh.pop %v1016
  %v1024 = vmul.f32 %v1022, %v741
  %1026 = vrot.lane.b32.xlu0 %v1023, 64
  %v1027 = vpop.permute.xlu0 %1026
  %v1029 = vmul.f32 %v1022, %v1027
  %1031 = vrot.lane.b32.xlu0 %v1029, 32
  %v1032 = vpop.permute.xlu0 %1031
  %v1034 = vadd.f32 %v1024, %v1032
  %v1035 = vtanh.pop %v1034
  %1037 = vrot.lane.b32.xlu0 %v1035, 64
  %v1038 = vpop.permute.xlu0 %1037
  %v1040 = vmul.f32 %v1022, %v1038
  %1042 = vrot.lane.b32.xlu0 %v1040, 32
  %v1043 = vpop.permute.xlu0 %1042
  %v1045 = vsel %vm50, %v1043, %v1034
  %v1047 = vsel %vm138, %v1045, 0
  %1049 = vmatprep.subr.mxu0 0.0
  %1050 = vmatpush1.msra.mxu0 %v24
  %1051 = vmatprep.subr.mxu0 0.0
  %1052 = vmatpush1.msra.mxu0 %v25
  %1053 = vmatprep.subr.mxu0 0.0
  %1054 = vmatpush1.msra.mxu0 %v26
  %1055 = vmatprep.subr.mxu0 0.0
  %1056 = vmatpush1.msra.mxu0 %v27
  %1057 = vmatprep.subr.mxu0 0.0
  %1058 = vmatpush1.msra.mxu0 %v28
  %1059 = vmatprep.subr.mxu0 0.0
  %1060 = vmatpush1.msra.mxu0 %v29
  %1061 = vmatprep.subr.mxu0 0.0
  %1062 = vmatpush1.msra.mxu0 %v30
  %1063 = vmatprep.subr.mxu0 0.0
  %1064 = vmatpush1.msra.mxu0 %v31
  %1065 = vmatprep.subr.mxu0 0.0
  %1066 = vmatpush1.msra.mxu0 0.0
  %1067 = vmatprep.subr.mxu0 0.0
  %1068 = vmatpush1.msra.mxu0 0.0
  %1069 = vmatprep.subr.mxu0 0.0
  %1070 = vmatpush1.msra.mxu0 0.0
  %1071 = vmatprep.subr.mxu0 0.0
  %1072 = vmatpush1.msra.mxu0 0.0
  %1073 = vmatprep.subr.mxu0 0.0
  %1074 = vmatpush1.msra.mxu0 0.0
  %1075 = vmatprep.subr.mxu0 0.0
  %1076 = vmatpush1.msra.mxu0 0.0
  %1077 = vmatprep.subr.mxu0 0.0
  %1078 = vmatpush1.msra.mxu0 0.0
  %1079 = vmatprep.subr.mxu0 0.0
  %1080 = vmatpush1.msra.mxu0 0.0
  %1081 = vmatprep.subr.mxu0 0.0
  %1082 = vmatpush1.msra.mxu0 0.0
  %1083 = vmatprep.subr.mxu0 0.0
  %1084 = vmatpush1.msra.mxu0 0.0
  %1085 = vmatprep.subr.mxu0 0.0
  %1086 = vmatpush1.msra.mxu0 0.0
  %1087 = vmatprep.subr.mxu0 0.0
  %1088 = vmatpush1.msra.mxu0 0.0
  %1089 = vmatprep.subr.mxu0 0.0
  %1090 = vmatpush1.msra.mxu0 0.0
  %1091 = vmatprep.subr.mxu0 0.0
  %1092 = vmatpush1.msra.mxu0 0.0
  %1093 = vmatprep.subr.mxu0 0.0
  %1094 = vmatpush1.msra.mxu0 0.0
  %1095 = vmatprep.subr.mxu0 0.0
  %1096 = vmatpush1.msra.mxu0 0.0
  %1097 = vmatprep.subr.mxu0 0.0
  %1098 = vmatpush1.msra.mxu0 0.0
  %1099 = vmatprep.subr.mxu0 0.0
  %1100 = vmatpush1.msra.mxu0 0.0
  %1101 = vmatprep.subr.mxu0 0.0
  %1102 = vmatpush1.msra.mxu0 0.0
  %1103 = vmatprep.subr.mxu0 0.0
  %1104 = vmatpush1.msra.mxu0 0.0
  %1105 = vmatprep.subr.mxu0 0.0
  %1106 = vmatpush1.msra.mxu0 0.0
  %1107 = vmatprep.subr.mxu0 0.0
  %1108 = vmatpush1.msra.mxu0 0.0
  %1109 = vmatprep.subr.mxu0 0.0
  %1110 = vmatpush1.msra.mxu0 0.0
  %1111 = vmatprep.subr.mxu0 0.0
  %1112 = vmatpush1.msra.mxu0 0.0
  %1113 = vmatprep.mubr.f32.mxu0 0.0
  %1114 = vmatmul.mubr.f32.gmra.mrb[0].mxu0 %v1047
  %v1115 = vpop.f32.mrb[0].mxu0
  %v1116 = vadd.f32 0.0, %v1115
  %v1117 = vpop.f32.mrb[0].mxu0
  %1118 = vdwg.mxu0
  %v1119 = vsel %vm50, %v1043, 0
  %1121 = vmatprep.subr.mxu0 0.0
  %1122 = vmatpush1.msra.mxu0 %v40
  %1123 = vmatprep.subr.mxu0 0.0
  %1124 = vmatpush1.msra.mxu0 %v41
  %1125 = vmatprep.subr.mxu0 0.0
  %1126 = vmatpush1.msra.mxu0 %v42
  %1127 = vmatprep.subr.mxu0 0.0
  %1128 = vmatpush1.msra.mxu0 %v43
  %1129 = vmatprep.subr.mxu0 0.0
  %1130 = vmatpush1.msra.mxu0 0.0
  %1131 = vmatprep.subr.mxu0 0.0
  %1132 = vmatpush1.msra.mxu0 0.0
  %1133 = vmatprep.subr.mxu0 0.0
  %1134 = vmatpush1.msra.mxu0 0.0
  %1135 = vmatprep.subr.mxu0 0.0
  %1136 = vmatpush1.msra.mxu0 0.0
  %1137 = vmatprep.subr.mxu0 0.0
  %1138 = vmatpush1.msra.mxu0 0.0
  %1139 = vmatprep.subr.mxu0 0.0
  %1140 = vmatpush1.msra.mxu0 0.0
  %1141 = vmatprep.subr.mxu0 0.0
  %1142 = vmatpush1.msra.mxu0 0.0
  %1143 = vmatprep.subr.mxu0 0.0
  %1144 = vmatpush1.msra.mxu0 0.0
  %1145 = vmatprep.subr.mxu0 0.0
  %1146 = vmatpush1.msra.mxu0 0.0
  %1147 = vmatprep.subr.mxu0 0.0
  %1148 = vmatpush1.msra.mxu0 0.0
  %1149 = vmatprep.subr.mxu0 0.0
  %1150 = vmatpush1.msra.mxu0 0.0
  %1151 = vmatprep.subr.mxu0 0.0
  %1152 = vmatpush1.msra.mxu0 0.0
  %1153 = vmatprep.subr.mxu0 0.0
  %1154 = vmatpush1.msra.mxu0 0.0
  %1155 = vmatprep.subr.mxu0 0.0
  %1156 = vmatpush1.msra.mxu0 0.0
  %1157 = vmatprep.subr.mxu0 0.0
  %1158 = vmatpush1.msra.mxu0 0.0
  %1159 = vmatprep.subr.mxu0 0.0
  %1160 = vmatpush1.msra.mxu0 0.0
  %1161 = vmatprep.subr.mxu0 0.0
  %1162 = vmatpush1.msra.mxu0 0.0
  %1163 = vmatprep.subr.mxu0 0.0
  %1164 = vmatpush1.msra.mxu0 0.0
  %1165 = vmatprep.subr.mxu0 0.0
  %1166 = vmatpush1.msra.mxu0 0.0
  %1167 = vmatprep.subr.mxu0 0.0
  %1168 = vmatpush1.msra.mxu0 0.0
  %1169 = vmatprep.subr.mxu0 0.0
  %1170 = vmatpush1.msra.mxu0 0.0
  %1171 = vmatprep.subr.mxu0 0.0
  %1172 = vmatpush1.msra.mxu0 0.0
  %1173 = vmatprep.subr.mxu0 0.0
  %1174 = vmatpush1.msra.mxu0 0.0
  %1175 = vmatprep.subr.mxu0 0.0
  %1176 = vmatpush1.msra.mxu0 0.0
  %1177 = vmatprep.subr.mxu0 0.0
  %1178 = vmatpush1.msra.mxu0 0.0
  %1179 = vmatprep.subr.mxu0 0.0
  %1180 = vmatpush1.msra.mxu0 0.0
  %1181 = vmatprep.subr.mxu0 0.0
  %1182 = vmatpush1.msra.mxu0 0.0
  %1183 = vmatprep.subr.mxu0 0.0
  %1184 = vmatpush1.msra.mxu0 0.0
  %1185 = vmatprep.mubr.f32.mxu0 0.0
  %1186 = vmatmul.mubr.f32.gmra.mrb[0].mxu0 %v1119
  %v1187 = vpop.f32.mrb[0].mxu0
  %v1188 = vadd.f32 0.0, %v1187
  %v1189 = vpop.f32.mrb[0].mxu0
  %1190 = vdwg.mxu0
  %v1193 = vunpack.c.l.s4 1966171168
  %v1194 = vunpack.c.0.s8 %v1193
  %v1195 = vlaneseq
  %v1196 = vshrl.u32 %v1195, 7
  %v1197 = vsub.s32 %v1194, %v1196
  %v1198 = vrot.slane %v1116, %v1197
  %v1199 = vcombine.high %v1198, %v1198
  %v1201 = vunpack.c.l.s4 1966171168
  %v1202 = vunpack.c.0.s8 %v1201
  %v1203 = vlaneseq
  %v1204 = vshrl.u32 %v1203, 7
  %v1205 = vsub.s32 %v1202, %v1204
  %v1206 = vrot.slane %v1198, %v1205
  %v1208 = vunpack.c.l.s4 1966171168
  %v1209 = vunpack.c.0.s8 %v1208
  %v1210 = vlaneseq
  %v1211 = vshrl.u32 %v1210, 7
  %v1212 = vsub.s32 %v1209, %v1211
  %v1213 = vrot.slane %v1199, %v1212
  %v1214 = vlaneseq
  %v1215 = vshrl.u32 %v1214, 7
  %v1216 = vsub.s32 0, %v1215
  %v1217 = vrot.slane %v1206, %v1216
  %v1218 = vlaneseq
  %v1219 = vshrl.u32 %v1218, 7
  %v1220 = vsub.s32 0, %v1219
  %v1221 = vrot.slane %v1213, %v1220
  %v1224 = vadd.f32 %v136, %v1217
  %v1225 = vadd.f32 %v137, %v1221
  %v1226 = vtanh.pop %v1224
  %v1227 = vtanh.pop %v1225
  %v1228 = vmul.f32 %v1226, %v324
  %v1229 = vmul.f32 %v1227, %v324
  %v1230 = vsel %vm50, %v1228, 0.0
  %1231 = vadd.xlane.f32.xlu0 %v1230
  %v1232 = vpop.xlane.xlu0 %1231
  %v1233 = vsel %vm50, %v1229, 0.0
  %1234 = vadd.xlane.f32.xlu0 %v1233
  %v1235 = vpop.xlane.xlu0 %1234
  %v1236 = vrot.slane %v1232, 4
  %v1237 = vmax.f32 %v1232, %v1236
  %v1238 = vrot.slane %v1237, 2
  %v1239 = vmax.f32 %v1237, %v1238
  %v1240 = vrot.slane %v1239, 1
  %v1241 = vmax.f32 %v1239, %v1240
  %v1242 = vrot.slane %v1235, 4
  %v1243 = vmax.f32 %v1235, %v1242
  %v1244 = vrot.slane %v1243, 2
  %v1245 = vmax.f32 %v1243, %v1244
  %v1246 = vrot.slane %v1245, 1
  %v1247 = vmax.f32 %v1245, %v1246
  %v1248 = vsub.f32 %v1232, %v1241
  %v1249 = vsub.f32 %v1235, %v1247
  %v1250 = vmul.f32 %v1248, 1.442695
  %v1251 = vpow.pop %v1250
  %v1252 = vmul.f32 %v1249, 1.442695
  %v1253 = vpow.pop %v1252
  %v1254 = vrot.slane %v1251, 4
  %v1255 = vadd.f32 %v1251, %v1254
  %v1256 = vrot.slane %v1255, 2
  %v1257 = vadd.f32 %v1255, %v1256
  %v1258 = vrot.slane %v1257, 1
  %v1259 = vadd.f32 %v1257, %v1258
  %v1260 = vrot.slane %v1253, 4
  %v1261 = vadd.f32 %v1253, %v1260
  %v1262 = vrot.slane %v1261, 2
  %v1263 = vadd.f32 %v1261, %v1262
  %v1264 = vrot.slane %v1263, 1
  %v1265 = vadd.f32 %v1263, %v1264
  %v1266 = vrcp.pop %v1259
  %v1267 = vrcp.pop %v1265
  %v1268 = vmul.f32 %v1251, %v1266
  %v1269 = vmul.f32 %v1253, %v1267
  %v1270 = vmul.f32 %v1268, %v20
  %v1271 = vmul.f32 %v1269, %v21
  %v1272 = vsel %vm50, %v1270, 0.0
  %v1273 = vrot.slane %v1272, 4
  %v1274 = vadd.f32 %v1272, %v1273
  %v1275 = vrot.slane %v1274, 2
  %v1276 = vadd.f32 %v1274, %v1275
  %v1277 = vrot.slane %v1276, 1
  %v1278 = vadd.f32 %v1276, %v1277
  %v1279 = vsel %vm50, %v1271, 0.0
  %v1280 = vrot.slane %v1279, 4
  %v1281 = vadd.f32 %v1279, %v1280
  %v1282 = vrot.slane %v1281, 2
  %v1283 = vadd.f32 %v1281, %v1282
  %v1284 = vrot.slane %v1283, 1
  %v1285 = vadd.f32 %v1283, %v1284
  %v1286 = vmul.f32 %v1278, %v386
  %v1287 = vmul.f32 %v1285, %v386
  %v1290 = vrot.slane %v1287, 7
  %v1291 = vsel %vm392, %v1290, %v1286
  %v1293 = vsel %vm395, %v1291, 0.0
  %1294 = vadd.xlane.f32.xlu0 %v1293
  %v1295 = vpop.xlane.xlu0 %1294
  %v1296 = vrot.slane %v403, 3
  %v1297 = vrot.slane %v404, 2
  %v1298 = vsel %vm392, %v1297, %v1296
  %v1300 = vadd.f32 %v1295, %v1298
  %v1301 = vadd.f32 %v1300, %v414
  %1303 = vset.pattern.permute.xlu0 0
  %1304 = vperm.xlu0 %1303, %v1301
  %v1305 = vpop.permute.xlu0 %1304
  %v1307 = vmul.f32 %v1305, %v424
  %v1308 = vadd.f32 %v1307, %v1188
  %v1309 = vadd.f32 %v1308, %v430
  %v1310 = vxor.u32 %v1309, 2147483648
  %v1311 = vmul.f32 %v1310, 1.442695
  %v1312 = vpow.pop %v1311
  %v1313 = vadd.f32 %v1312, 1.0
  %v1314 = vrcp.pop %v1313
  %v1315 = vmul.f32 1.0, %v1314
  %v1316 = vtanh.pop %v1309
  %v1317 = vmul.f32 %v1315, %v1034
  %1319 = vrot.lane.b32.xlu0 %v1316, 64
  %v1320 = vpop.permute.xlu0 %1319
  %v1322 = vmul.f32 %v1315, %v1320
  %1324 = vrot.lane.b32.xlu0 %v1322, 32
  %v1325 = vpop.permute.xlu0 %1324
  %v1327 = vadd.f32 %v1317, %v1325
  %v1328 = vtanh.pop %v1327
  %1330 = vrot.lane.b32.xlu0 %v1328, 64
  %v1331 = vpop.permute.xlu0 %1330
  %v1333 = vmul.f32 %v1315, %v1331
  %1335 = vrot.lane.b32.xlu0 %v1333, 32
  %v1336 = vpop.permute.xlu0 %1335
  %v1338 = vsel %vm50, %v1336, %v1327
  %v1340 = vsel %vm138, %v1338, 0
  %1342 = vmatprep.subr.mxu0 0.0
  %1343 = vmatpush1.msra.mxu0 %v24
  %1344 = vmatprep.subr.mxu0 0.0
  %1345 = vmatpush1.msra.mxu0 %v25
  %1346 = vmatprep.subr.mxu0 0.0
  %1347 = vmatpush1.msra.mxu0 %v26
  %1348 = vmatprep.subr.mxu0 0.0
  %1349 = vmatpush1.msra.mxu0 %v27
  %1350 = vmatprep.subr.mxu0 0.0
  %1351 = vmatpush1.msra.mxu0 %v28
  %1352 = vmatprep.subr.mxu0 0.0
  %1353 = vmatpush1.msra.mxu0 %v29
  %1354 = vmatprep.subr.mxu0 0.0
  %1355 = vmatpush1.msra.mxu0 %v30
  %1356 = vmatprep.subr.mxu0 0.0
  %1357 = vmatpush1.msra.mxu0 %v31
  %1358 = vmatprep.subr.mxu0 0.0
  %1359 = vmatpush1.msra.mxu0 0.0
  %1360 = vmatprep.subr.mxu0 0.0
  %1361 = vmatpush1.msra.mxu0 0.0
  %1362 = vmatprep.subr.mxu0 0.0
  %1363 = vmatpush1.msra.mxu0 0.0
  %1364 = vmatprep.subr.mxu0 0.0
  %1365 = vmatpush1.msra.mxu0 0.0
  %1366 = vmatprep.subr.mxu0 0.0
  %1367 = vmatpush1.msra.mxu0 0.0
  %1368 = vmatprep.subr.mxu0 0.0
  %1369 = vmatpush1.msra.mxu0 0.0
  %1370 = vmatprep.subr.mxu0 0.0
  %1371 = vmatpush1.msra.mxu0 0.0
  %1372 = vmatprep.subr.mxu0 0.0
  %1373 = vmatpush1.msra.mxu0 0.0
  %1374 = vmatprep.subr.mxu0 0.0
  %1375 = vmatpush1.msra.mxu0 0.0
  %1376 = vmatprep.subr.mxu0 0.0
  %1377 = vmatpush1.msra.mxu0 0.0
  %1378 = vmatprep.subr.mxu0 0.0
  %1379 = vmatpush1.msra.mxu0 0.0
  %1380 = vmatprep.subr.mxu0 0.0
  %1381 = vmatpush1.msra.mxu0 0.0
  %1382 = vmatprep.subr.mxu0 0.0
  %1383 = vmatpush1.msra.mxu0 0.0
  %1384 = vmatprep.subr.mxu0 0.0
  %1385 = vmatpush1.msra.mxu0 0.0
  %1386 = vmatprep.subr.mxu0 0.0
  %1387 = vmatpush1.msra.mxu0 0.0
  %1388 = vmatprep.subr.mxu0 0.0
  %1389 = vmatpush1.msra.mxu0 0.0
  %1390 = vmatprep.subr.mxu0 0.0
  %1391 = vmatpush1.msra.mxu0 0.0
  %1392 = vmatprep.subr.mxu0 0.0
  %1393 = vmatpush1.msra.mxu0 0.0
  %1394 = vmatprep.subr.mxu0 0.0
  %1395 = vmatpush1.msra.mxu0 0.0
  %1396 = vmatprep.subr.mxu0 0.0
  %1397 = vmatpush1.msra.mxu0 0.0
  %1398 = vmatprep.subr.mxu0 0.0
  %1399 = vmatpush1.msra.mxu0 0.0
  %1400 = vmatprep.subr.mxu0 0.0
  %1401 = vmatpush1.msra.mxu0 0.0
  %1402 = vmatprep.subr.mxu0 0.0
  %1403 = vmatpush1.msra.mxu0 0.0
  %1404 = vmatprep.subr.mxu0 0.0
  %1405 = vmatpush1.msra.mxu0 0.0
  %1406 = vmatprep.mubr.f32.mxu0 0.0
  %1407 = vmatmul.mubr.f32.gmra.mrb[0].mxu0 %v1340
  %v1408 = vpop.f32.mrb[0].mxu0
  %v1409 = vadd.f32 0.0, %v1408
  %v1410 = vpop.f32.mrb[0].mxu0
  %1411 = vdwg.mxu0
  %v1412 = vsel %vm50, %v1336, 0
  %1414 = vmatprep.subr.mxu0 0.0
  %1415 = vmatpush1.msra.mxu0 %v40
  %1416 = vmatprep.subr.mxu0 0.0
  %1417 = vmatpush1.msra.mxu0 %v41
  %1418 = vmatprep.subr.mxu0 0.0
  %1419 = vmatpush1.msra.mxu0 %v42
  %1420 = vmatprep.subr.mxu0 0.0
  %1421 = vmatpush1.msra.mxu0 %v43
  %1422 = vmatprep.subr.mxu0 0.0
  %1423 = vmatpush1.msra.mxu0 0.0
  %1424 = vmatprep.subr.mxu0 0.0
  %1425 = vmatpush1.msra.mxu0 0.0
  %1426 = vmatprep.subr.mxu0 0.0
  %1427 = vmatpush1.msra.mxu0 0.0
  %1428 = vmatprep.subr.mxu0 0.0
  %1429 = vmatpush1.msra.mxu0 0.0
  %1430 = vmatprep.subr.mxu0 0.0
  %1431 = vmatpush1.msra.mxu0 0.0
  %1432 = vmatprep.subr.mxu0 0.0
  %1433 = vmatpush1.msra.mxu0 0.0
  %1434 = vmatprep.subr.mxu0 0.0
  %1435 = vmatpush1.msra.mxu0 0.0
  %1436 = vmatprep.subr.mxu0 0.0
  %1437 = vmatpush1.msra.mxu0 0.0
  %1438 = vmatprep.subr.mxu0 0.0
  %1439 = vmatpush1.msra.mxu0 0.0
  %1440 = vmatprep.subr.mxu0 0.0
  %1441 = vmatpush1.msra.mxu0 0.0
  %1442 = vmatprep.subr.mxu0 0.0
  %1443 = vmatpush1.msra.mxu0 0.0
  %1444 = vmatprep.subr.mxu0 0.0
  %1445 = vmatpush1.msra.mxu0 0.0
  %1446 = vmatprep.subr.mxu0 0.0
  %1447 = vmatpush1.msra.mxu0 0.0
  %1448 = vmatprep.subr.mxu0 0.0
  %1449 = vmatpush1.msra.mxu0 0.0
  %1450 = vmatprep.subr.mxu0 0.0
  %1451 = vmatpush1.msra.mxu0 0.0
  %1452 = vmatprep.subr.mxu0 0.0
  %1453 = vmatpush1.msra.mxu0 0.0
  %1454 = vmatprep.subr.mxu0 0.0
  %1455 = vmatpush1.msra.mxu0 0.0
  %1456 = vmatprep.subr.mxu0 0.0
  %1457 = vmatpush1.msra.mxu0 0.0
  %1458 = vmatprep.subr.mxu0 0.0
  %1459 = vmatpush1.msra.mxu0 0.0
  %1460 = vmatprep.subr.mxu0 0.0
  %1461 = vmatpush1.msra.mxu0 0.0
  %1462 = vmatprep.subr.mxu0 0.0
  %1463 = vmatpush1.msra.mxu0 0.0
  %1464 = vmatprep.subr.mxu0 0.0
  %1465 = vmatpush1.msra.mxu0 0.0
  %1466 = vmatprep.subr.mxu0 0.0
  %1467 = vmatpush1.msra.mxu0 0.0
  %1468 = vmatprep.subr.mxu0 0.0
  %1469 = vmatpush1.msra.mxu0 0.0
  %1470 = vmatprep.subr.mxu0 0.0
  %1471 = vmatpush1.msra.mxu0 0.0
  %1472 = vmatprep.subr.mxu0 0.0
  %1473 = vmatpush1.msra.mxu0 0.0
  %1474 = vmatprep.subr.mxu0 0.0
  %1475 = vmatpush1.msra.mxu0 0.0
  %1476 = vmatprep.subr.mxu0 0.0
  %1477 = vmatpush1.msra.mxu0 0.0
  %1478 = vmatprep.mubr.f32.mxu0 0.0
  %1479 = vmatmul.mubr.f32.gmra.mrb[0].mxu0 %v1412
  %v1480 = vpop.f32.mrb[0].mxu0
  %v1481 = vadd.f32 0.0, %v1480
  %v1482 = vpop.f32.mrb[0].mxu0
  %1483 = vdwg.mxu0
  %v1486 = vunpack.c.l.s4 1966171168
  %v1487 = vunpack.c.0.s8 %v1486
  %v1488 = vlaneseq
  %v1489 = vshrl.u32 %v1488, 7
  %v1490 = vsub.s32 %v1487, %v1489
  %v1491 = vrot.slane %v1409, %v1490
  %v1492 = vcombine.high %v1491, %v1491
  %v1494 = vunpack.c.l.s4 1966171168
  %v1495 = vunpack.c.0.s8 %v1494
  %v1496 = vlaneseq
  %v1497 = vshrl.u32 %v1496, 7
  %v1498 = vsub.s32 %v1495, %v1497
  %v1499 = vrot.slane %v1491, %v1498
  %v1501 = vunpack.c.l.s4 1966171168
  %v1502 = vunpack.c.0.s8 %v1501
  %v1503 = vlaneseq
  %v1504 = vshrl.u32 %v1503, 7
  %v1505 = vsub.s32 %v1502, %v1504
  %v1506 = vrot.slane %v1492, %v1505
  %v1507 = vlaneseq
  %v1508 = vshrl.u32 %v1507, 7
  %v1509 = vsub.s32 0, %v1508
  %v1510 = vrot.slane %v1499, %v1509
  %v1511 = vlaneseq
  %v1512 = vshrl.u32 %v1511, 7
  %v1513 = vsub.s32 0, %v1512
  %v1514 = vrot.slane %v1506, %v1513
  %v1517 = vadd.f32 %v136, %v1510
  %v1518 = vadd.f32 %v137, %v1514
  %v1519 = vtanh.pop %v1517
  %v1520 = vtanh.pop %v1518
  %v1521 = vmul.f32 %v1519, %v324
  %v1522 = vmul.f32 %v1520, %v324
  %v1523 = vsel %vm50, %v1521, 0.0
  %1524 = vadd.xlane.f32.xlu0 %v1523
  %v1525 = vpop.xlane.xlu0 %1524
  %v1526 = vsel %vm50, %v1522, 0.0
  %1527 = vadd.xlane.f32.xlu0 %v1526
  %v1528 = vpop.xlane.xlu0 %1527
  %v1529 = vrot.slane %v1525, 4
  %v1530 = vmax.f32 %v1525, %v1529
  %v1531 = vrot.slane %v1530, 2
  %v1532 = vmax.f32 %v1530, %v1531
  %v1533 = vrot.slane %v1532, 1
  %v1534 = vmax.f32 %v1532, %v1533
  %v1535 = vrot.slane %v1528, 4
  %v1536 = vmax.f32 %v1528, %v1535
  %v1537 = vrot.slane %v1536, 2
  %v1538 = vmax.f32 %v1536, %v1537
  %v1539 = vrot.slane %v1538, 1
  %v1540 = vmax.f32 %v1538, %v1539
  %v1541 = vsub.f32 %v1525, %v1534
  %v1542 = vsub.f32 %v1528, %v1540
  %v1543 = vmul.f32 %v1541, 1.442695
  %v1544 = vpow.pop %v1543
  %v1545 = vmul.f32 %v1542, 1.442695
  %v1546 = vpow.pop %v1545
  %v1547 = vrot.slane %v1544, 4
  %v1548 = vadd.f32 %v1544, %v1547
  %v1549 = vrot.slane %v1548, 2
  %v1550 = vadd.f32 %v1548, %v1549
  %v1551 = vrot.slane %v1550, 1
  %v1552 = vadd.f32 %v1550, %v1551
  %v1553 = vrot.slane %v1546, 4
  %v1554 = vadd.f32 %v1546, %v1553
  %v1555 = vrot.slane %v1554, 2
  %v1556 = vadd.f32 %v1554, %v1555
  %v1557 = vrot.slane %v1556, 1
  %v1558 = vadd.f32 %v1556, %v1557
  %v1559 = vrcp.pop %v1552
  %v1560 = vrcp.pop %v1558
  %v1561 = vmul.f32 %v1544, %v1559
  %v1562 = vmul.f32 %v1546, %v1560
  %v1563 = vmul.f32 %v1561, %v20
  %v1564 = vmul.f32 %v1562, %v21
  %v1565 = vsel %vm50, %v1563, 0.0
  %v1566 = vrot.slane %v1565, 4
  %v1567 = vadd.f32 %v1565, %v1566
  %v1568 = vrot.slane %v1567, 2
  %v1569 = vadd.f32 %v1567, %v1568
  %v1570 = vrot.slane %v1569, 1
  %v1571 = vadd.f32 %v1569, %v1570
  %v1572 = vsel %vm50, %v1564, 0.0
  %v1573 = vrot.slane %v1572, 4
  %v1574 = vadd.f32 %v1572, %v1573
  %v1575 = vrot.slane %v1574, 2
  %v1576 = vadd.f32 %v1574, %v1575
  %v1577 = vrot.slane %v1576, 1
  %v1578 = vadd.f32 %v1576, %v1577
  %v1579 = vmul.f32 %v1571, %v386
  %v1580 = vmul.f32 %v1578, %v386
  %v1583 = vrot.slane %v1580, 7
  %v1584 = vsel %vm392, %v1583, %v1579
  %v1586 = vsel %vm395, %v1584, 0.0
  %1587 = vadd.xlane.f32.xlu0 %v1586
  %v1588 = vpop.xlane.xlu0 %1587
  %v1589 = vrot.slane %v403, 4
  %v1590 = vrot.slane %v404, 3
  %v1591 = vsel %vm392, %v1590, %v1589
  %v1593 = vadd.f32 %v1588, %v1591
  %v1594 = vadd.f32 %v1593, %v414
  %1596 = vset.pattern.permute.xlu0 0
  %1597 = vperm.xlu0 %1596, %v1594
  %v1598 = vpop.permute.xlu0 %1597
  %v1600 = vmul.f32 %v1598, %v424
  %v1601 = vadd.f32 %v1600, %v1481
  %v1602 = vadd.f32 %v1601, %v430
  %v1603 = vxor.u32 %v1602, 2147483648
  %v1604 = vmul.f32 %v1603, 1.442695
  %v1605 = vpow.pop %v1604
  %v1606 = vadd.f32 %v1605, 1.0
  %v1607 = vrcp.pop %v1606
  %v1608 = vmul.f32 1.0, %v1607
  %v1609 = vtanh.pop %v1602
  %v1610 = vmul.f32 %v1608, %v1327
  %1612 = vrot.lane.b32.xlu0 %v1609, 64
  %v1613 = vpop.permute.xlu0 %1612
  %v1615 = vmul.f32 %v1608, %v1613
  %1617 = vrot.lane.b32.xlu0 %v1615, 32
  %v1618 = vpop.permute.xlu0 %1617
  %v1620 = vadd.f32 %v1610, %v1618
  %v1621 = vtanh.pop %v1620
  %1623 = vrot.lane.b32.xlu0 %v1621, 64
  %v1624 = vpop.permute.xlu0 %1623
  %v1626 = vmul.f32 %v1608, %v1624
  %1628 = vrot.lane.b32.xlu0 %v1626, 32
  %v1629 = vpop.permute.xlu0 %1628
  %v1631 = vsel %vm50, %v1629, %v1620
  %v1633 = vsel %vm138, %v1631, 0
  %1635 = vmatprep.subr.mxu0 0.0
  %1636 = vmatpush1.msra.mxu0 %v24
  %1637 = vmatprep.subr.mxu0 0.0
  %1638 = vmatpush1.msra.mxu0 %v25
  %1639 = vmatprep.subr.mxu0 0.0
  %1640 = vmatpush1.msra.mxu0 %v26
  %1641 = vmatprep.subr.mxu0 0.0
  %1642 = vmatpush1.msra.mxu0 %v27
  %1643 = vmatprep.subr.mxu0 0.0
  %1644 = vmatpush1.msra.mxu0 %v28
  %1645 = vmatprep.subr.mxu0 0.0
  %1646 = vmatpush1.msra.mxu0 %v29
  %1647 = vmatprep.subr.mxu0 0.0
  %1648 = vmatpush1.msra.mxu0 %v30
  %1649 = vmatprep.subr.mxu0 0.0
  %1650 = vmatpush1.msra.mxu0 %v31
  %1651 = vmatprep.subr.mxu0 0.0
  %1652 = vmatpush1.msra.mxu0 0.0
  %1653 = vmatprep.subr.mxu0 0.0
  %1654 = vmatpush1.msra.mxu0 0.0
  %1655 = vmatprep.subr.mxu0 0.0
  %1656 = vmatpush1.msra.mxu0 0.0
  %1657 = vmatprep.subr.mxu0 0.0
  %1658 = vmatpush1.msra.mxu0 0.0
  %1659 = vmatprep.subr.mxu0 0.0
  %1660 = vmatpush1.msra.mxu0 0.0
  %1661 = vmatprep.subr.mxu0 0.0
  %1662 = vmatpush1.msra.mxu0 0.0
  %1663 = vmatprep.subr.mxu0 0.0
  %1664 = vmatpush1.msra.mxu0 0.0
  %1665 = vmatprep.subr.mxu0 0.0
  %1666 = vmatpush1.msra.mxu0 0.0
  %1667 = vmatprep.subr.mxu0 0.0
  %1668 = vmatpush1.msra.mxu0 0.0
  %1669 = vmatprep.subr.mxu0 0.0
  %1670 = vmatpush1.msra.mxu0 0.0
  %1671 = vmatprep.subr.mxu0 0.0
  %1672 = vmatpush1.msra.mxu0 0.0
  %1673 = vmatprep.subr.mxu0 0.0
  %1674 = vmatpush1.msra.mxu0 0.0
  %1675 = vmatprep.subr.mxu0 0.0
  %1676 = vmatpush1.msra.mxu0 0.0
  %1677 = vmatprep.subr.mxu0 0.0
  %1678 = vmatpush1.msra.mxu0 0.0
  %1679 = vmatprep.subr.mxu0 0.0
  %1680 = vmatpush1.msra.mxu0 0.0
  %1681 = vmatprep.subr.mxu0 0.0
  %1682 = vmatpush1.msra.mxu0 0.0
  %1683 = vmatprep.subr.mxu0 0.0
  %1684 = vmatpush1.msra.mxu0 0.0
  %1685 = vmatprep.subr.mxu0 0.0
  %1686 = vmatpush1.msra.mxu0 0.0
  %1687 = vmatprep.subr.mxu0 0.0
  %1688 = vmatpush1.msra.mxu0 0.0
  %1689 = vmatprep.subr.mxu0 0.0
  %1690 = vmatpush1.msra.mxu0 0.0
  %1691 = vmatprep.subr.mxu0 0.0
  %1692 = vmatpush1.msra.mxu0 0.0
  %1693 = vmatprep.subr.mxu0 0.0
  %1694 = vmatpush1.msra.mxu0 0.0
  %1695 = vmatprep.subr.mxu0 0.0
  %1696 = vmatpush1.msra.mxu0 0.0
  %1697 = vmatprep.subr.mxu0 0.0
  %1698 = vmatpush1.msra.mxu0 0.0
  %1699 = vmatprep.mubr.f32.mxu0 0.0
  %1700 = vmatmul.mubr.f32.gmra.mrb[0].mxu0 %v1633
  %v1701 = vpop.f32.mrb[0].mxu0
  %v1702 = vadd.f32 0.0, %v1701
  %v1703 = vpop.f32.mrb[0].mxu0
  %1704 = vdwg.mxu0
  %v1705 = vsel %vm50, %v1629, 0
  %1707 = vmatprep.subr.mxu0 0.0
  %1708 = vmatpush1.msra.mxu0 %v40
  %1709 = vmatprep.subr.mxu0 0.0
  %1710 = vmatpush1.msra.mxu0 %v41
  %1711 = vmatprep.subr.mxu0 0.0
  %1712 = vmatpush1.msra.mxu0 %v42
  %1713 = vmatprep.subr.mxu0 0.0
  %1714 = vmatpush1.msra.mxu0 %v43
  %1715 = vmatprep.subr.mxu0 0.0
  %1716 = vmatpush1.msra.mxu0 0.0
  %1717 = vmatprep.subr.mxu0 0.0
  %1718 = vmatpush1.msra.mxu0 0.0
  %1719 = vmatprep.subr.mxu0 0.0
  %1720 = vmatpush1.msra.mxu0 0.0
  %1721 = vmatprep.subr.mxu0 0.0
  %1722 = vmatpush1.msra.mxu0 0.0
  %1723 = vmatprep.subr.mxu0 0.0
  %1724 = vmatpush1.msra.mxu0 0.0
  %1725 = vmatprep.subr.mxu0 0.0
  %1726 = vmatpush1.msra.mxu0 0.0
  %1727 = vmatprep.subr.mxu0 0.0
  %1728 = vmatpush1.msra.mxu0 0.0
  %1729 = vmatprep.subr.mxu0 0.0
  %1730 = vmatpush1.msra.mxu0 0.0
  %1731 = vmatprep.subr.mxu0 0.0
  %1732 = vmatpush1.msra.mxu0 0.0
  %1733 = vmatprep.subr.mxu0 0.0
  %1734 = vmatpush1.msra.mxu0 0.0
  %1735 = vmatprep.subr.mxu0 0.0
  %1736 = vmatpush1.msra.mxu0 0.0
  %1737 = vmatprep.subr.mxu0 0.0
  %1738 = vmatpush1.msra.mxu0 0.0
  %1739 = vmatprep.subr.mxu0 0.0
  %1740 = vmatpush1.msra.mxu0 0.0
  %1741 = vmatprep.subr.mxu0 0.0
  %1742 = vmatpush1.msra.mxu0 0.0
  %1743 = vmatprep.subr.mxu0 0.0
  %1744 = vmatpush1.msra.mxu0 0.0
  %1745 = vmatprep.subr.mxu0 0.0
  %1746 = vmatpush1.msra.mxu0 0.0
  %1747 = vmatprep.subr.mxu0 0.0
  %1748 = vmatpush1.msra.mxu0 0.0
  %1749 = vmatprep.subr.mxu0 0.0
  %1750 = vmatpush1.msra.mxu0 0.0
  %1751 = vmatprep.subr.mxu0 0.0
  %1752 = vmatpush1.msra.mxu0 0.0
  %1753 = vmatprep.subr.mxu0 0.0
  %1754 = vmatpush1.msra.mxu0 0.0
  %1755 = vmatprep.subr.mxu0 0.0
  %1756 = vmatpush1.msra.mxu0 0.0
  %1757 = vmatprep.subr.mxu0 0.0
  %1758 = vmatpush1.msra.mxu0 0.0
  %1759 = vmatprep.subr.mxu0 0.0
  %1760 = vmatpush1.msra.mxu0 0.0
  %1761 = vmatprep.subr.mxu0 0.0
  %1762 = vmatpush1.msra.mxu0 0.0
  %1763 = vmatprep.subr.mxu0 0.0
  %1764 = vmatpush1.msra.mxu0 0.0
  %1765 = vmatprep.subr.mxu0 0.0
  %1766 = vmatpush1.msra.mxu0 0.0
  %1767 = vmatprep.subr.mxu0 0.0
  %1768 = vmatpush1.msra.mxu0 0.0
  %1769 = vmatprep.subr.mxu0 0.0
  %1770 = vmatpush1.msra.mxu0 0.0
  %1771 = vmatprep.mubr.f32.mxu0 0.0
  %1772 = vmatmul.mubr.f32.gmra.mrb[0].mxu0 %v1705
  %v1773 = vpop.f32.mrb[0].mxu0
  %v1774 = vadd.f32 0.0, %v1773
  %v1775 = vpop.f32.mrb[0].mxu0
  %1776 = vdwg.mxu0
  %v1779 = vunpack.c.l.s4 1966171168
  %v1780 = vunpack.c.0.s8 %v1779
  %v1781 = vlaneseq
  %v1782 = vshrl.u32 %v1781, 7
  %v1783 = vsub.s32 %v1780, %v1782
  %v1784 = vrot.slane %v1702, %v1783
  %v1785 = vcombine.high %v1784, %v1784
  %v1787 = vunpack.c.l.s4 1966171168
  %v1788 = vunpack.c.0.s8 %v1787
  %v1789 = vlaneseq
  %v1790 = vshrl.u32 %v1789, 7
  %v1791 = vsub.s32 %v1788, %v1790
  %v1792 = vrot.slane %v1784, %v1791
  %v1794 = vunpack.c.l.s4 1966171168
  %v1795 = vunpack.c.0.s8 %v1794
  %v1796 = vlaneseq
  %v1797 = vshrl.u32 %v1796, 7
  %v1798 = vsub.s32 %v1795, %v1797
  %v1799 = vrot.slane %v1785, %v1798
  %v1800 = vlaneseq
  %v1801 = vshrl.u32 %v1800, 7
  %v1802 = vsub.s32 0, %v1801
  %v1803 = vrot.slane %v1792, %v1802
  %v1804 = vlaneseq
  %v1805 = vshrl.u32 %v1804, 7
  %v1806 = vsub.s32 0, %v1805
  %v1807 = vrot.slane %v1799, %v1806
  %v1810 = vadd.f32 %v136, %v1803
  %v1811 = vadd.f32 %v137, %v1807
  %v1812 = vtanh.pop %v1810
  %v1813 = vtanh.pop %v1811
  %v1814 = vmul.f32 %v1812, %v324
  %v1815 = vmul.f32 %v1813, %v324
  %v1816 = vsel %vm50, %v1814, 0.0
  %1817 = vadd.xlane.f32.xlu0 %v1816
  %v1818 = vpop.xlane.xlu0 %1817
  %v1819 = vsel %vm50, %v1815, 0.0
  %1820 = vadd.xlane.f32.xlu0 %v1819
  %v1821 = vpop.xlane.xlu0 %1820
  %v1822 = vrot.slane %v1818, 4
  %v1823 = vmax.f32 %v1818, %v1822
  %v1824 = vrot.slane %v1823, 2
  %v1825 = vmax.f32 %v1823, %v1824
  %v1826 = vrot.slane %v1825, 1
  %v1827 = vmax.f32 %v1825, %v1826
  %v1828 = vrot.slane %v1821, 4
  %v1829 = vmax.f32 %v1821, %v1828
  %v1830 = vrot.slane %v1829, 2
  %v1831 = vmax.f32 %v1829, %v1830
  %v1832 = vrot.slane %v1831, 1
  %v1833 = vmax.f32 %v1831, %v1832
  %v1834 = vsub.f32 %v1818, %v1827
  %v1835 = vsub.f32 %v1821, %v1833
  %v1836 = vmul.f32 %v1834, 1.442695
  %v1837 = vpow.pop %v1836
  %v1838 = vmul.f32 %v1835, 1.442695
  %v1839 = vpow.pop %v1838
  %v1840 = vrot.slane %v1837, 4
  %v1841 = vadd.f32 %v1837, %v1840
  %v1842 = vrot.slane %v1841, 2
  %v1843 = vadd.f32 %v1841, %v1842
  %v1844 = vrot.slane %v1843, 1
  %v1845 = vadd.f32 %v1843, %v1844
  %v1846 = vrot.slane %v1839, 4
  %v1847 = vadd.f32 %v1839, %v1846
  %v1848 = vrot.slane %v1847, 2
  %v1849 = vadd.f32 %v1847, %v1848
  %v1850 = vrot.slane %v1849, 1
  %v1851 = vadd.f32 %v1849, %v1850
  %v1852 = vrcp.pop %v1845
  %v1853 = vrcp.pop %v1851
  %v1854 = vmul.f32 %v1837, %v1852
  %v1855 = vmul.f32 %v1839, %v1853
  %v1856 = vmul.f32 %v1854, %v20
  %v1857 = vmul.f32 %v1855, %v21
  %v1858 = vsel %vm50, %v1856, 0.0
  %v1859 = vrot.slane %v1858, 4
  %v1860 = vadd.f32 %v1858, %v1859
  %v1861 = vrot.slane %v1860, 2
  %v1862 = vadd.f32 %v1860, %v1861
  %v1863 = vrot.slane %v1862, 1
  %v1864 = vadd.f32 %v1862, %v1863
  %v1865 = vsel %vm50, %v1857, 0.0
  %v1866 = vrot.slane %v1865, 4
  %v1867 = vadd.f32 %v1865, %v1866
  %v1868 = vrot.slane %v1867, 2
  %v1869 = vadd.f32 %v1867, %v1868
  %v1870 = vrot.slane %v1869, 1
  %v1871 = vadd.f32 %v1869, %v1870
  %v1872 = vmul.f32 %v1864, %v386
  %v1873 = vmul.f32 %v1871, %v386
  %v1876 = vrot.slane %v1873, 7
  %v1877 = vsel %vm392, %v1876, %v1872
  %v1879 = vsel %vm395, %v1877, 0.0
  %1880 = vadd.xlane.f32.xlu0 %v1879
  %v1881 = vpop.xlane.xlu0 %1880
  %v1882 = vrot.slane %v403, 5
  %v1883 = vrot.slane %v404, 4
  %v1884 = vsel %vm392, %v1883, %v1882
  %v1886 = vadd.f32 %v1881, %v1884
  %v1887 = vadd.f32 %v1886, %v414
  %1889 = vset.pattern.permute.xlu0 0
  %1890 = vperm.xlu0 %1889, %v1887
  %v1891 = vpop.permute.xlu0 %1890
  %v1893 = vmul.f32 %v1891, %v424
  %v1894 = vadd.f32 %v1893, %v1774
  %v1895 = vadd.f32 %v1894, %v430
  %v1896 = vxor.u32 %v1895, 2147483648
  %v1897 = vmul.f32 %v1896, 1.442695
  %v1898 = vpow.pop %v1897
  %v1899 = vadd.f32 %v1898, 1.0
  %v1900 = vrcp.pop %v1899
  %v1901 = vmul.f32 1.0, %v1900
  %v1902 = vtanh.pop %v1895
  %v1903 = vmul.f32 %v1901, %v1620
  %1905 = vrot.lane.b32.xlu0 %v1902, 64
  %v1906 = vpop.permute.xlu0 %1905
  %v1908 = vmul.f32 %v1901, %v1906
  %1910 = vrot.lane.b32.xlu0 %v1908, 32
  %v1911 = vpop.permute.xlu0 %1910
  %v1913 = vadd.f32 %v1903, %v1911
  %v1914 = vtanh.pop %v1913
  %1916 = vrot.lane.b32.xlu0 %v1914, 64
  %v1917 = vpop.permute.xlu0 %1916
  %v1919 = vmul.f32 %v1901, %v1917
  %1921 = vrot.lane.b32.xlu0 %v1919, 32
  %v1922 = vpop.permute.xlu0 %1921
  %v1924 = vsel %vm50, %v1922, %v1913
  %v1926 = vsel %vm138, %v1924, 0
  %1928 = vmatprep.subr.mxu0 0.0
  %1929 = vmatpush1.msra.mxu0 %v24
  %1930 = vmatprep.subr.mxu0 0.0
  %1931 = vmatpush1.msra.mxu0 %v25
  %1932 = vmatprep.subr.mxu0 0.0
  %1933 = vmatpush1.msra.mxu0 %v26
  %1934 = vmatprep.subr.mxu0 0.0
  %1935 = vmatpush1.msra.mxu0 %v27
  %1936 = vmatprep.subr.mxu0 0.0
  %1937 = vmatpush1.msra.mxu0 %v28
  %1938 = vmatprep.subr.mxu0 0.0
  %1939 = vmatpush1.msra.mxu0 %v29
  %1940 = vmatprep.subr.mxu0 0.0
  %1941 = vmatpush1.msra.mxu0 %v30
  %1942 = vmatprep.subr.mxu0 0.0
  %1943 = vmatpush1.msra.mxu0 %v31
  %1944 = vmatprep.subr.mxu0 0.0
  %1945 = vmatpush1.msra.mxu0 0.0
  %1946 = vmatprep.subr.mxu0 0.0
  %1947 = vmatpush1.msra.mxu0 0.0
  %1948 = vmatprep.subr.mxu0 0.0
  %1949 = vmatpush1.msra.mxu0 0.0
  %1950 = vmatprep.subr.mxu0 0.0
  %1951 = vmatpush1.msra.mxu0 0.0
  %1952 = vmatprep.subr.mxu0 0.0
  %1953 = vmatpush1.msra.mxu0 0.0
  %1954 = vmatprep.subr.mxu0 0.0
  %1955 = vmatpush1.msra.mxu0 0.0
  %1956 = vmatprep.subr.mxu0 0.0
  %1957 = vmatpush1.msra.mxu0 0.0
  %1958 = vmatprep.subr.mxu0 0.0
  %1959 = vmatpush1.msra.mxu0 0.0
  %1960 = vmatprep.subr.mxu0 0.0
  %1961 = vmatpush1.msra.mxu0 0.0
  %1962 = vmatprep.subr.mxu0 0.0
  %1963 = vmatpush1.msra.mxu0 0.0
  %1964 = vmatprep.subr.mxu0 0.0
  %1965 = vmatpush1.msra.mxu0 0.0
  %1966 = vmatprep.subr.mxu0 0.0
  %1967 = vmatpush1.msra.mxu0 0.0
  %1968 = vmatprep.subr.mxu0 0.0
  %1969 = vmatpush1.msra.mxu0 0.0
  %1970 = vmatprep.subr.mxu0 0.0
  %1971 = vmatpush1.msra.mxu0 0.0
  %1972 = vmatprep.subr.mxu0 0.0
  %1973 = vmatpush1.msra.mxu0 0.0
  %1974 = vmatprep.subr.mxu0 0.0
  %1975 = vmatpush1.msra.mxu0 0.0
  %1976 = vmatprep.subr.mxu0 0.0
  %1977 = vmatpush1.msra.mxu0 0.0
  %1978 = vmatprep.subr.mxu0 0.0
  %1979 = vmatpush1.msra.mxu0 0.0
  %1980 = vmatprep.subr.mxu0 0.0
  %1981 = vmatpush1.msra.mxu0 0.0
  %1982 = vmatprep.subr.mxu0 0.0
  %1983 = vmatpush1.msra.mxu0 0.0
  %1984 = vmatprep.subr.mxu0 0.0
  %1985 = vmatpush1.msra.mxu0 0.0
  %1986 = vmatprep.subr.mxu0 0.0
  %1987 = vmatpush1.msra.mxu0 0.0
  %1988 = vmatprep.subr.mxu0 0.0
  %1989 = vmatpush1.msra.mxu0 0.0
  %1990 = vmatprep.subr.mxu0 0.0
  %1991 = vmatpush1.msra.mxu0 0.0
  %1992 = vmatprep.mubr.f32.mxu0 0.0
  %1993 = vmatmul.mubr.f32.gmra.mrb[0].mxu0 %v1926
  %v1994 = vpop.f32.mrb[0].mxu0
  %v1995 = vadd.f32 0.0, %v1994
  %v1996 = vpop.f32.mrb[0].mxu0
  %1997 = vdwg.mxu0
  %v1998 = vsel %vm50, %v1922, 0
  %2000 = vmatprep.subr.mxu0 0.0
  %2001 = vmatpush1.msra.mxu0 %v40
  %2002 = vmatprep.subr.mxu0 0.0
  %2003 = vmatpush1.msra.mxu0 %v41
  %2004 = vmatprep.subr.mxu0 0.0
  %2005 = vmatpush1.msra.mxu0 %v42
  %2006 = vmatprep.subr.mxu0 0.0
  %2007 = vmatpush1.msra.mxu0 %v43
  %2008 = vmatprep.subr.mxu0 0.0
  %2009 = vmatpush1.msra.mxu0 0.0
  %2010 = vmatprep.subr.mxu0 0.0
  %2011 = vmatpush1.msra.mxu0 0.0
  %2012 = vmatprep.subr.mxu0 0.0
  %2013 = vmatpush1.msra.mxu0 0.0
  %2014 = vmatprep.subr.mxu0 0.0
  %2015 = vmatpush1.msra.mxu0 0.0
  %2016 = vmatprep.subr.mxu0 0.0
  %2017 = vmatpush1.msra.mxu0 0.0
  %2018 = vmatprep.subr.mxu0 0.0
  %2019 = vmatpush1.msra.mxu0 0.0
  %2020 = vmatprep.subr.mxu0 0.0
  %2021 = vmatpush1.msra.mxu0 0.0
  %2022 = vmatprep.subr.mxu0 0.0
  %2023 = vmatpush1.msra.mxu0 0.0
  %2024 = vmatprep.subr.mxu0 0.0
  %2025 = vmatpush1.msra.mxu0 0.0
  %2026 = vmatprep.subr.mxu0 0.0
  %2027 = vmatpush1.msra.mxu0 0.0
  %2028 = vmatprep.subr.mxu0 0.0
  %2029 = vmatpush1.msra.mxu0 0.0
  %2030 = vmatprep.subr.mxu0 0.0
  %2031 = vmatpush1.msra.mxu0 0.0
  %2032 = vmatprep.subr.mxu0 0.0
  %2033 = vmatpush1.msra.mxu0 0.0
  %2034 = vmatprep.subr.mxu0 0.0
  %2035 = vmatpush1.msra.mxu0 0.0
  %2036 = vmatprep.subr.mxu0 0.0
  %2037 = vmatpush1.msra.mxu0 0.0
  %2038 = vmatprep.subr.mxu0 0.0
  %2039 = vmatpush1.msra.mxu0 0.0
  %2040 = vmatprep.subr.mxu0 0.0
  %2041 = vmatpush1.msra.mxu0 0.0
  %2042 = vmatprep.subr.mxu0 0.0
  %2043 = vmatpush1.msra.mxu0 0.0
  %2044 = vmatprep.subr.mxu0 0.0
  %2045 = vmatpush1.msra.mxu0 0.0
  %2046 = vmatprep.subr.mxu0 0.0
  %2047 = vmatpush1.msra.mxu0 0.0
  %2048 = vmatprep.subr.mxu0 0.0
  %2049 = vmatpush1.msra.mxu0 0.0
  %2050 = vmatprep.subr.mxu0 0.0
  %2051 = vmatpush1.msra.mxu0 0.0
  %2052 = vmatprep.subr.mxu0 0.0
  %2053 = vmatpush1.msra.mxu0 0.0
  %2054 = vmatprep.subr.mxu0 0.0
  %2055 = vmatpush1.msra.mxu0 0.0
  %2056 = vmatprep.subr.mxu0 0.0
  %2057 = vmatpush1.msra.mxu0 0.0
  %2058 = vmatprep.subr.mxu0 0.0
  %2059 = vmatpush1.msra.mxu0 0.0
  %2060 = vmatprep.subr.mxu0 0.0
  %2061 = vmatpush1.msra.mxu0 0.0
  %2062 = vmatprep.subr.mxu0 0.0
  %2063 = vmatpush1.msra.mxu0 0.0
  %2064 = vmatprep.mubr.f32.mxu0 0.0
  %2065 = vmatmul.mubr.f32.gmra.mrb[0].mxu0 %v1998
  %v2066 = vpop.f32.mrb[0].mxu0
  %v2067 = vadd.f32 0.0, %v2066
  %v2068 = vpop.f32.mrb[0].mxu0
  %2069 = vdwg.mxu0
  %v2072 = vunpack.c.l.s4 1966171168
  %v2073 = vunpack.c.0.s8 %v2072
  %v2074 = vlaneseq
  %v2075 = vshrl.u32 %v2074, 7
  %v2076 = vsub.s32 %v2073, %v2075
  %v2077 = vrot.slane %v1995, %v2076
  %v2078 = vcombine.high %v2077, %v2077
  %v2080 = vunpack.c.l.s4 1966171168
  %v2081 = vunpack.c.0.s8 %v2080
  %v2082 = vlaneseq
  %v2083 = vshrl.u32 %v2082, 7
  %v2084 = vsub.s32 %v2081, %v2083
  %v2085 = vrot.slane %v2077, %v2084
  %v2087 = vunpack.c.l.s4 1966171168
  %v2088 = vunpack.c.0.s8 %v2087
  %v2089 = vlaneseq
  %v2090 = vshrl.u32 %v2089, 7
  %v2091 = vsub.s32 %v2088, %v2090
  %v2092 = vrot.slane %v2078, %v2091
  %v2093 = vlaneseq
  %v2094 = vshrl.u32 %v2093, 7
  %v2095 = vsub.s32 0, %v2094
  %v2096 = vrot.slane %v2085, %v2095
  %v2097 = vlaneseq
  %v2098 = vshrl.u32 %v2097, 7
  %v2099 = vsub.s32 0, %v2098
  %v2100 = vrot.slane %v2092, %v2099
  %v2103 = vadd.f32 %v136, %v2096
  %v2104 = vadd.f32 %v137, %v2100
  %v2105 = vtanh.pop %v2103
  %v2106 = vtanh.pop %v2104
  %v2107 = vmul.f32 %v2105, %v324
  %v2108 = vmul.f32 %v2106, %v324
  %v2109 = vsel %vm50, %v2107, 0.0
  %2110 = vadd.xlane.f32.xlu0 %v2109
  %v2111 = vpop.xlane.xlu0 %2110
  %v2112 = vsel %vm50, %v2108, 0.0
  %2113 = vadd.xlane.f32.xlu0 %v2112
  %v2114 = vpop.xlane.xlu0 %2113
  %v2115 = vrot.slane %v2111, 4
  %v2116 = vmax.f32 %v2111, %v2115
  %v2117 = vrot.slane %v2116, 2
  %v2118 = vmax.f32 %v2116, %v2117
  %v2119 = vrot.slane %v2118, 1
  %v2120 = vmax.f32 %v2118, %v2119
  %v2121 = vrot.slane %v2114, 4
  %v2122 = vmax.f32 %v2114, %v2121
  %v2123 = vrot.slane %v2122, 2
  %v2124 = vmax.f32 %v2122, %v2123
  %v2125 = vrot.slane %v2124, 1
  %v2126 = vmax.f32 %v2124, %v2125
  %v2127 = vsub.f32 %v2111, %v2120
  %v2128 = vsub.f32 %v2114, %v2126
  %v2129 = vmul.f32 %v2127, 1.442695
  %v2130 = vpow.pop %v2129
  %v2131 = vmul.f32 %v2128, 1.442695
  %v2132 = vpow.pop %v2131
  %v2133 = vrot.slane %v2130, 4
  %v2134 = vadd.f32 %v2130, %v2133
  %v2135 = vrot.slane %v2134, 2
  %v2136 = vadd.f32 %v2134, %v2135
  %v2137 = vrot.slane %v2136, 1
  %v2138 = vadd.f32 %v2136, %v2137
  %v2139 = vrot.slane %v2132, 4
  %v2140 = vadd.f32 %v2132, %v2139
  %v2141 = vrot.slane %v2140, 2
  %v2142 = vadd.f32 %v2140, %v2141
  %v2143 = vrot.slane %v2142, 1
  %v2144 = vadd.f32 %v2142, %v2143
  %v2145 = vrcp.pop %v2138
  %v2146 = vrcp.pop %v2144
  %v2147 = vmul.f32 %v2130, %v2145
  %v2148 = vmul.f32 %v2132, %v2146
  %v2149 = vmul.f32 %v2147, %v20
  %v2150 = vmul.f32 %v2148, %v21
  %v2151 = vsel %vm50, %v2149, 0.0
  %v2152 = vrot.slane %v2151, 4
  %v2153 = vadd.f32 %v2151, %v2152
  %v2154 = vrot.slane %v2153, 2
  %v2155 = vadd.f32 %v2153, %v2154
  %v2156 = vrot.slane %v2155, 1
  %v2157 = vadd.f32 %v2155, %v2156
  %v2158 = vsel %vm50, %v2150, 0.0
  %v2159 = vrot.slane %v2158, 4
  %v2160 = vadd.f32 %v2158, %v2159
  %v2161 = vrot.slane %v2160, 2
  %v2162 = vadd.f32 %v2160, %v2161
  %v2163 = vrot.slane %v2162, 1
  %v2164 = vadd.f32 %v2162, %v2163
  %v2165 = vmul.f32 %v2157, %v386
  %v2166 = vmul.f32 %v2164, %v386
  %v2169 = vrot.slane %v2166, 7
  %v2170 = vsel %vm392, %v2169, %v2165
  %v2172 = vsel %vm395, %v2170, 0.0
  %2173 = vadd.xlane.f32.xlu0 %v2172
  %v2174 = vpop.xlane.xlu0 %2173
  %v2175 = vrot.slane %v403, 6
  %v2176 = vrot.slane %v404, 5
  %v2177 = vsel %vm392, %v2176, %v2175
  %v2179 = vadd.f32 %v2174, %v2177
  %v2180 = vadd.f32 %v2179, %v414
  %2182 = vset.pattern.permute.xlu0 0
  %2183 = vperm.xlu0 %2182, %v2180
  %v2184 = vpop.permute.xlu0 %2183
  %v2186 = vmul.f32 %v2184, %v424
  %v2187 = vadd.f32 %v2186, %v2067
  %v2188 = vadd.f32 %v2187, %v430
  %v2189 = vxor.u32 %v2188, 2147483648
  %v2190 = vmul.f32 %v2189, 1.442695
  %v2191 = vpow.pop %v2190
  %v2192 = vadd.f32 %v2191, 1.0
  %v2193 = vrcp.pop %v2192
  %v2194 = vmul.f32 1.0, %v2193
  %v2195 = vtanh.pop %v2188
  %v2196 = vmul.f32 %v2194, %v1913
  %2198 = vrot.lane.b32.xlu0 %v2195, 64
  %v2199 = vpop.permute.xlu0 %2198
  %v2201 = vmul.f32 %v2194, %v2199
  %2203 = vrot.lane.b32.xlu0 %v2201, 32
  %v2204 = vpop.permute.xlu0 %2203
  %v2206 = vadd.f32 %v2196, %v2204
  %v2207 = vtanh.pop %v2206
  %2209 = vrot.lane.b32.xlu0 %v2207, 64
  %v2210 = vpop.permute.xlu0 %2209
  %v2212 = vmul.f32 %v2194, %v2210
  %2214 = vrot.lane.b32.xlu0 %v2212, 32
  %v2215 = vpop.permute.xlu0 %2214
  %v2217 = vsel %vm50, %v2215, %v2206
  %v2219 = vsel %vm138, %v2217, 0
  %2221 = vmatprep.subr.mxu0 0.0
  %2222 = vmatpush1.msra.mxu0 %v24
  %2223 = vmatprep.subr.mxu0 0.0
  %2224 = vmatpush1.msra.mxu0 %v25
  %2225 = vmatprep.subr.mxu0 0.0
  %2226 = vmatpush1.msra.mxu0 %v26
  %2227 = vmatprep.subr.mxu0 0.0
  %2228 = vmatpush1.msra.mxu0 %v27
  %2229 = vmatprep.subr.mxu0 0.0
  %2230 = vmatpush1.msra.mxu0 %v28
  %2231 = vmatprep.subr.mxu0 0.0
  %2232 = vmatpush1.msra.mxu0 %v29
  %2233 = vmatprep.subr.mxu0 0.0
  %2234 = vmatpush1.msra.mxu0 %v30
  %2235 = vmatprep.subr.mxu0 0.0
  %2236 = vmatpush1.msra.mxu0 %v31
  %2237 = vmatprep.subr.mxu0 0.0
  %2238 = vmatpush1.msra.mxu0 0.0
  %2239 = vmatprep.subr.mxu0 0.0
  %2240 = vmatpush1.msra.mxu0 0.0
  %2241 = vmatprep.subr.mxu0 0.0
  %2242 = vmatpush1.msra.mxu0 0.0
  %2243 = vmatprep.subr.mxu0 0.0
  %2244 = vmatpush1.msra.mxu0 0.0
  %2245 = vmatprep.subr.mxu0 0.0
  %2246 = vmatpush1.msra.mxu0 0.0
  %2247 = vmatprep.subr.mxu0 0.0
  %2248 = vmatpush1.msra.mxu0 0.0
  %2249 = vmatprep.subr.mxu0 0.0
  %2250 = vmatpush1.msra.mxu0 0.0
  %2251 = vmatprep.subr.mxu0 0.0
  %2252 = vmatpush1.msra.mxu0 0.0
  %2253 = vmatprep.subr.mxu0 0.0
  %2254 = vmatpush1.msra.mxu0 0.0
  %2255 = vmatprep.subr.mxu0 0.0
  %2256 = vmatpush1.msra.mxu0 0.0
  %2257 = vmatprep.subr.mxu0 0.0
  %2258 = vmatpush1.msra.mxu0 0.0
  %2259 = vmatprep.subr.mxu0 0.0
  %2260 = vmatpush1.msra.mxu0 0.0
  %2261 = vmatprep.subr.mxu0 0.0
  %2262 = vmatpush1.msra.mxu0 0.0
  %2263 = vmatprep.subr.mxu0 0.0
  %2264 = vmatpush1.msra.mxu0 0.0
  %2265 = vmatprep.subr.mxu0 0.0
  %2266 = vmatpush1.msra.mxu0 0.0
  %2267 = vmatprep.subr.mxu0 0.0
  %2268 = vmatpush1.msra.mxu0 0.0
  %2269 = vmatprep.subr.mxu0 0.0
  %2270 = vmatpush1.msra.mxu0 0.0
  %2271 = vmatprep.subr.mxu0 0.0
  %2272 = vmatpush1.msra.mxu0 0.0
  %2273 = vmatprep.subr.mxu0 0.0
  %2274 = vmatpush1.msra.mxu0 0.0
  %2275 = vmatprep.subr.mxu0 0.0
  %2276 = vmatpush1.msra.mxu0 0.0
  %2277 = vmatprep.subr.mxu0 0.0
  %2278 = vmatpush1.msra.mxu0 0.0
  %2279 = vmatprep.subr.mxu0 0.0
  %2280 = vmatpush1.msra.mxu0 0.0
  %2281 = vmatprep.subr.mxu0 0.0
  %2282 = vmatpush1.msra.mxu0 0.0
  %2283 = vmatprep.subr.mxu0 0.0
  %2284 = vmatpush1.msra.mxu0 0.0
  %2285 = vmatprep.mubr.f32.mxu0 0.0
  %2286 = vmatmul.mubr.f32.gmra.mrb[0].mxu0 %v2219
  %v2287 = vpop.f32.mrb[0].mxu0
  %v2288 = vadd.f32 0.0, %v2287
  %v2289 = vpop.f32.mrb[0].mxu0
  %2290 = vdwg.mxu0
  %v2291 = vsel %vm50, %v2215, 0
  %2293 = vmatprep.subr.mxu0 0.0
  %2294 = vmatpush1.msra.mxu0 %v40
  %2295 = vmatprep.subr.mxu0 0.0
  %2296 = vmatpush1.msra.mxu0 %v41
  %2297 = vmatprep.subr.mxu0 0.0
  %2298 = vmatpush1.msra.mxu0 %v42
  %2299 = vmatprep.subr.mxu0 0.0
  %2300 = vmatpush1.msra.mxu0 %v43
  %2301 = vmatprep.subr.mxu0 0.0
  %2302 = vmatpush1.msra.mxu0 0.0
  %2303 = vmatprep.subr.mxu0 0.0
  %2304 = vmatpush1.msra.mxu0 0.0
  %2305 = vmatprep.subr.mxu0 0.0
  %2306 = vmatpush1.msra.mxu0 0.0
  %2307 = vmatprep.subr.mxu0 0.0
  %2308 = vmatpush1.msra.mxu0 0.0
  %2309 = vmatprep.subr.mxu0 0.0
  %2310 = vmatpush1.msra.mxu0 0.0
  %2311 = vmatprep.subr.mxu0 0.0
  %2312 = vmatpush1.msra.mxu0 0.0
  %2313 = vmatprep.subr.mxu0 0.0
  %2314 = vmatpush1.msra.mxu0 0.0
  %2315 = vmatprep.subr.mxu0 0.0
  %2316 = vmatpush1.msra.mxu0 0.0
  %2317 = vmatprep.subr.mxu0 0.0
  %2318 = vmatpush1.msra.mxu0 0.0
  %2319 = vmatprep.subr.mxu0 0.0
  %2320 = vmatpush1.msra.mxu0 0.0
  %2321 = vmatprep.subr.mxu0 0.0
  %2322 = vmatpush1.msra.mxu0 0.0
  %2323 = vmatprep.subr.mxu0 0.0
  %2324 = vmatpush1.msra.mxu0 0.0
  %2325 = vmatprep.subr.mxu0 0.0
  %2326 = vmatpush1.msra.mxu0 0.0
  %2327 = vmatprep.subr.mxu0 0.0
  %2328 = vmatpush1.msra.mxu0 0.0
  %2329 = vmatprep.subr.mxu0 0.0
  %2330 = vmatpush1.msra.mxu0 0.0
  %2331 = vmatprep.subr.mxu0 0.0
  %2332 = vmatpush1.msra.mxu0 0.0
  %2333 = vmatprep.subr.mxu0 0.0
  %2334 = vmatpush1.msra.mxu0 0.0
  %2335 = vmatprep.subr.mxu0 0.0
  %2336 = vmatpush1.msra.mxu0 0.0
  %2337 = vmatprep.subr.mxu0 0.0
  %2338 = vmatpush1.msra.mxu0 0.0
  %2339 = vmatprep.subr.mxu0 0.0
  %2340 = vmatpush1.msra.mxu0 0.0
  %2341 = vmatprep.subr.mxu0 0.0
  %2342 = vmatpush1.msra.mxu0 0.0
  %2343 = vmatprep.subr.mxu0 0.0
  %2344 = vmatpush1.msra.mxu0 0.0
  %2345 = vmatprep.subr.mxu0 0.0
  %2346 = vmatpush1.msra.mxu0 0.0
  %2347 = vmatprep.subr.mxu0 0.0
  %2348 = vmatpush1.msra.mxu0 0.0
  %2349 = vmatprep.subr.mxu0 0.0
  %2350 = vmatpush1.msra.mxu0 0.0
  %2351 = vmatprep.subr.mxu0 0.0
  %2352 = vmatpush1.msra.mxu0 0.0
  %2353 = vmatprep.subr.mxu0 0.0
  %2354 = vmatpush1.msra.mxu0 0.0
  %2355 = vmatprep.subr.mxu0 0.0
  %2356 = vmatpush1.msra.mxu0 0.0
  %2357 = vmatprep.mubr.f32.mxu0 0.0
  %2358 = vmatmul.mubr.f32.gmra.mrb[0].mxu0 %v2291
  %v2359 = vpop.f32.mrb[0].mxu0
  %v2360 = vadd.f32 0.0, %v2359
  %v2361 = vpop.f32.mrb[0].mxu0
  %2362 = vdwg.mxu0
  %v2365 = vunpack.c.l.s4 1966171168
  %v2366 = vunpack.c.0.s8 %v2365
  %v2367 = vlaneseq
  %v2368 = vshrl.u32 %v2367, 7
  %v2369 = vsub.s32 %v2366, %v2368
  %v2370 = vrot.slane %v2288, %v2369
  %v2371 = vcombine.high %v2370, %v2370
  %v2373 = vunpack.c.l.s4 1966171168
  %v2374 = vunpack.c.0.s8 %v2373
  %v2375 = vlaneseq
  %v2376 = vshrl.u32 %v2375, 7
  %v2377 = vsub.s32 %v2374, %v2376
  %v2378 = vrot.slane %v2370, %v2377
  %v2380 = vunpack.c.l.s4 1966171168
  %v2381 = vunpack.c.0.s8 %v2380
  %v2382 = vlaneseq
  %v2383 = vshrl.u32 %v2382, 7
  %v2384 = vsub.s32 %v2381, %v2383
  %v2385 = vrot.slane %v2371, %v2384
  %v2386 = vlaneseq
  %v2387 = vshrl.u32 %v2386, 7
  %v2388 = vsub.s32 0, %v2387
  %v2389 = vrot.slane %v2378, %v2388
  %v2390 = vlaneseq
  %v2391 = vshrl.u32 %v2390, 7
  %v2392 = vsub.s32 0, %v2391
  %v2393 = vrot.slane %v2385, %v2392
  %v2396 = vadd.f32 %v136, %v2389
  %v2397 = vadd.f32 %v137, %v2393
  %v2398 = vtanh.pop %v2396
  %v2399 = vtanh.pop %v2397
  %v2400 = vmul.f32 %v2398, %v324
  %v2401 = vmul.f32 %v2399, %v324
  %v2402 = vsel %vm50, %v2400, 0.0
  %2403 = vadd.xlane.f32.xlu0 %v2402
  %v2404 = vpop.xlane.xlu0 %2403
  %v2405 = vsel %vm50, %v2401, 0.0
  %2406 = vadd.xlane.f32.xlu0 %v2405
  %v2407 = vpop.xlane.xlu0 %2406
  %v2408 = vrot.slane %v2404, 4
  %v2409 = vmax.f32 %v2404, %v2408
  %v2410 = vrot.slane %v2409, 2
  %v2411 = vmax.f32 %v2409, %v2410
  %v2412 = vrot.slane %v2411, 1
  %v2413 = vmax.f32 %v2411, %v2412
  %v2414 = vrot.slane %v2407, 4
  %v2415 = vmax.f32 %v2407, %v2414
  %v2416 = vrot.slane %v2415, 2
  %v2417 = vmax.f32 %v2415, %v2416
  %v2418 = vrot.slane %v2417, 1
  %v2419 = vmax.f32 %v2417, %v2418
  %v2420 = vsub.f32 %v2404, %v2413
  %v2421 = vsub.f32 %v2407, %v2419
  %v2422 = vmul.f32 %v2420, 1.442695
  %v2423 = vpow.pop %v2422
  %v2424 = vmul.f32 %v2421, 1.442695
  %v2425 = vpow.pop %v2424
  %v2426 = vrot.slane %v2423, 4
  %v2427 = vadd.f32 %v2423, %v2426
  %v2428 = vrot.slane %v2427, 2
  %v2429 = vadd.f32 %v2427, %v2428
  %v2430 = vrot.slane %v2429, 1
  %v2431 = vadd.f32 %v2429, %v2430
  %v2432 = vrot.slane %v2425, 4
  %v2433 = vadd.f32 %v2425, %v2432
  %v2434 = vrot.slane %v2433, 2
  %v2435 = vadd.f32 %v2433, %v2434
  %v2436 = vrot.slane %v2435, 1
  %v2437 = vadd.f32 %v2435, %v2436
  %v2438 = vrcp.pop %v2431
  %v2439 = vrcp.pop %v2437
  %v2440 = vmul.f32 %v2423, %v2438
  %v2441 = vmul.f32 %v2425, %v2439
  %v2442 = vmul.f32 %v2440, %v20
  %v2443 = vmul.f32 %v2441, %v21
  %v2444 = vsel %vm50, %v2442, 0.0
  %v2445 = vrot.slane %v2444, 4
  %v2446 = vadd.f32 %v2444, %v2445
  %v2447 = vrot.slane %v2446, 2
  %v2448 = vadd.f32 %v2446, %v2447
  %v2449 = vrot.slane %v2448, 1
  %v2450 = vadd.f32 %v2448, %v2449
  %v2451 = vsel %vm50, %v2443, 0.0
  %v2452 = vrot.slane %v2451, 4
  %v2453 = vadd.f32 %v2451, %v2452
  %v2454 = vrot.slane %v2453, 2
  %v2455 = vadd.f32 %v2453, %v2454
  %v2456 = vrot.slane %v2455, 1
  %v2457 = vadd.f32 %v2455, %v2456
  %v2458 = vmul.f32 %v2450, %v386
  %v2459 = vmul.f32 %v2457, %v386
  %v2462 = vrot.slane %v2459, 7
  %v2463 = vsel %vm392, %v2462, %v2458
  %v2465 = vsel %vm395, %v2463, 0.0
  %2466 = vadd.xlane.f32.xlu0 %v2465
  %v2467 = vpop.xlane.xlu0 %2466
  %v2468 = vrot.slane %v403, 7
  %v2469 = vrot.slane %v404, 6
  %v2470 = vsel %vm392, %v2469, %v2468
  %v2472 = vadd.f32 %v2467, %v2470
  %v2473 = vadd.f32 %v2472, %v414
  %2475 = vset.pattern.permute.xlu0 0
  %2476 = vperm.xlu0 %2475, %v2473
  %v2477 = vpop.permute.xlu0 %2476
  %v2479 = vmul.f32 %v2477, %v424
  %v2480 = vadd.f32 %v2479, %v2360
  %v2481 = vadd.f32 %v2480, %v430
  %v2482 = vxor.u32 %v2481, 2147483648
  %v2483 = vmul.f32 %v2482, 1.442695
  %v2484 = vpow.pop %v2483
  %v2485 = vadd.f32 %v2484, 1.0
  %v2486 = vrcp.pop %v2485
  %v2487 = vmul.f32 1.0, %v2486
  %v2488 = vtanh.pop %v2481
  %v2489 = vmul.f32 %v2487, %v2206
  %2491 = vrot.lane.b32.xlu0 %v2488, 64
  %v2492 = vpop.permute.xlu0 %2491
  %v2494 = vmul.f32 %v2487, %v2492
  %2496 = vrot.lane.b32.xlu0 %v2494, 32
  %v2497 = vpop.permute.xlu0 %2496
  %v2499 = vadd.f32 %v2489, %v2497
  %v2500 = vtanh.pop %v2499
  %2502 = vrot.lane.b32.xlu0 %v2500, 64
  %v2503 = vpop.permute.xlu0 %2502
  %v2505 = vmul.f32 %v2487, %v2503
  %v2506 = vlaneseq
  %v2507 = vshrl.u32 %v2506, 7
  %v2508 = vsub.s32 0, %v2507
  %v2509 = vrot.slane %v46, %v2508
  %2511 = vrot.lane.b32.xlu0 %v2509, 96
  %v2512 = vpop.permute.xlu0 %2511
  %v2514 = vmul.f32 %v2505, %v2512
  %2516 = vrot.lane.b32.xlu0 %v2514, 32
  %v2517 = vpop.permute.xlu0 %2516
  %v2519 = vsel %vm395, %v2517, 0.0
  %2520 = vadd.xlane.f32.xlu0 %v2519
  %v2521 = vpop.xlane.xlu0 %2520
  %v2522 = vlaneseq
  %v2523 = vshrl.u32 %v2522, 7
  %v2524 = vsub.s32 0, %v2523
  %v2525 = vrot.slane %v39, %v2524
  %v2526 = vmul.f32 %v2450, %v2525
  %v2527 = vmul.f32 %v2457, %v2525
  %v2530 = vrot.slane %v2527, 7
  %v2531 = vsel %vm392, %v2530, %v2526
  %v2533 = vsel %vm395, %v2531, 0.0
  %2534 = vadd.xlane.f32.xlu0 %v2533
  %v2535 = vpop.xlane.xlu0 %2534
  %v2536 = vadd.f32 %v2521, %v2535
  %v2537 = vlaneseq
  %v2538 = vshrl.u32 %v2537, 7
  %v2539 = vsub.s32 0, %v2538
  %v2540 = vrot.slane %v49, %v2539
  %v2541 = vadd.f32 %v2536, %v2540
  %v2544 = vunpack.c.l.s4 1966171168
  %v2545 = vunpack.c.0.s8 %v2544
  %v2546 = vlaneseq
  %v2547 = vshrl.u32 %v2546, 7
  %v2548 = vsub.s32 %v2545, %v2547
  %v2549 = vrot.slane %v2541, %v2548
  %v2550 = vcombine.high %v2549, %v2549
  %v2552 = vunpack.c.l.s4 1966171168
  %v2553 = vunpack.c.0.s8 %v2552
  %v2554 = vlaneseq
  %v2555 = vshrl.u32 %v2554, 7
  %v2556 = vsub.s32 %v2553, %v2555
  %v2557 = vrot.slane %v2549, %v2556
  %v2559 = vunpack.c.l.s4 1966171168
  %v2560 = vunpack.c.0.s8 %v2559
  %v2561 = vlaneseq
  %v2562 = vshrl.u32 %v2561, 7
  %v2563 = vsub.s32 %v2560, %v2562
  %v2564 = vrot.slane %v2550, %v2563
  %vm2567 = vcmask 0
  %2568 = vst.msk [vmem:[%s5] sm:$0x1] %vm2567, %v2557
  %2569 = vst.msk [vmem:[%s5 + $0x1] sm:$0x1] %vm2567, %v2564
  // Predicated region
  $region22: #{tpu_custom_call.1} parent=0 // pred_check
    _
  $region23: #{tpu_custom_call.1} parent=0 // pred_check_branch
    %2571 = sbr.rel (0) target = $region25
  $region24: #{tpu_custom_call.1} parent=0 // pred_region
    _
  $region25: #{tpu_custom_call.1} parent=0 // pred_fallthru
    _
  // Predicated region
  $region26: #{tpu_custom_call.1} parent=0 // pred_check
    _
  $region27: #{tpu_custom_call.1} parent=0 // pred_check_branch
    %2573 = sbr.rel (0) target = $region29
  $region28: #{tpu_custom_call.1} parent=0 // pred_region
    _
  $region29: #{tpu_custom_call.1} parent=0 // pred_fallthru
    _

</llo_original>
